<compile_context>
chip_gen: v5e
topology: v5e:2x2
jax: 0.10.0
libtpu: 0.0.40
codegen_flags: <defaults>
</compile_context>

<pallas_src>
import math
from functools import partial

import jax
import jax.numpy as jnp
from jax.experimental import pallas as pl
from jax.experimental.pallas import tpu as pltpu


# ------------------------------ Pallas kernels ------------------------------

def _temporal_gated_kernel(x_ref, wp_ref, wq_ref, bp_ref, bq_ref, o_ref, *, kt, n_w, h_out):
    """Fused TemporalConvLayer for one batch element.

    x_ref : (1, c_in, (h_out + kt - 1) * n_w)  time-padded input, lanes = (t, n)
    wp/wq : (kt, c_out, c_in)  conv1 taps split into P / Q halves; the residual branch
                               is pre-folded into wp (identity or conv_reshape taps).
    bp/bq : (c_out, 1)
    o_ref : (1, c_out, h_out * n_w)  = (P + residual) * sigmoid(Q)   (lane-dense)
    """
    x = x_ref[0]                                  # (c_in, (h_out+kt-1)*n_w)
    L = h_out * n_w
    c_out = wp_ref.shape[1]
    acc_p = jnp.zeros((c_out, L), jnp.float32)
    acc_q = jnp.zeros((c_out, L), jnp.float32)
    for d in range(kt):                           # kt MXU pushes, zero im2col copies
        xs = x[:, d * n_w:d * n_w + L]
        acc_p = acc_p + jnp.dot(wp_ref[d], xs, preferred_element_type=jnp.float32)
        acc_q = acc_q + jnp.dot(wq_ref[d], xs, preferred_element_type=jnp.float32)
    p = acc_p + bp_ref[...]
    q = acc_q + bq_ref[...]
    o_ref[0] = (p * jax.nn.sigmoid(q)).astype(o_ref.dtype)


def _matmul_kernel(a_ref, w_ref, o_ref):
    o_ref[...] = jnp.dot(a_ref[...], w_ref[...],
                         preferred_element_type=jnp.float32).astype(o_ref.dtype)


def _matmul_res_relu_kernel(a_ref, w_ref, r_ref, o_ref):
    # relu(a @ w + residual) -- residual add + ReLU fused into the matmul epilogue.
    y = jnp.dot(a_ref[...], w_ref[...], preferred_element_type=jnp.float32) + r_ref[...]
    o_ref[...] = jnp.maximum(y, 0.0).astype(o_ref.dtype)


def _bn_nodes_kernel(x_ref, g_ref, b_ref, o_ref):
    # BatchNorm over nodes (columns), training-mode batch stats, biased var, eps=1e-5.
    x = x_ref[...]
    mean = jnp.mean(x, axis=0, keepdims=True)
    var = jnp.mean(jnp.square(x - mean), axis=0, keepdims=True)
    o_ref[...] = ((x - mean) * jax.lax.rsqrt(var + 1e-5) * g_ref[...]
                  + b_ref[...]).astype(o_ref.dtype)


def _conv1x1_kernel(x_ref, w_ref, b_ref, o_ref):
    o_ref[0] = (jnp.dot(w_ref[...], x_ref[0], preferred_element_type=jnp.float32)
                + b_ref[...]).astype(o_ref.dtype)


# ------------------------------ Pallas wrappers ------------------------------

def _pick_row_tile(m):
    # Largest row tile that still yields >= 2 grid steps (keeps both v7x TensorCores
    # busy); falls back to the full extent (block == full dim is always legal).
    for t in (512, 256, 128, 64, 32, 16, 8):
        if m % t == 0 and m // t >= 2:
            return t
    return m


def matmul(a, w):
    """(M, K) @ (K, N) on the MXU, row-tiled over M."""
    M, K = a.shape
    N = w.shape[1]
    tm = _pick_row_tile(M)
    return pl.pallas_call(
        _matmul_kernel,
        out_shape=jax.ShapeDtypeStruct((M, N), a.dtype),
        grid_spec=pltpu.PrefetchScalarGridSpec(
            num_scalar_prefetch=0,
            grid=(M // tm,),
            in_specs=[pl.BlockSpec((tm, K), lambda i: (i, 0)),
                      pl.BlockSpec((K, N), lambda i: (0, 0))],
            out_specs=pl.BlockSpec((tm, N), lambda i: (i, 0)),
        ),
        compiler_params=pltpu.CompilerParams(dimension_semantics=("parallel",)),
    )(a, w)


def matmul_res_relu(a, w, r):
    """relu((M, K) @ (K, N) + r) with the add/ReLU fused in the epilogue."""
    M, K = a.shape
    N = w.shape[1]
    tm = _pick_row_tile(M)
    return pl.pallas_call(
        _matmul_res_relu_kernel,
        out_shape=jax.ShapeDtypeStruct((M, N), a.dtype),
        grid_spec=pltpu.PrefetchScalarGridSpec(
            num_scalar_prefetch=0,
            grid=(M // tm,),
            in_specs=[pl.BlockSpec((tm, K), lambda i: (i, 0)),
                      pl.BlockSpec((K, N), lambda i: (0, 0)),
                      pl.BlockSpec((tm, N), lambda i: (i, 0))],
            out_specs=pl.BlockSpec((tm, N), lambda i: (i, 0)),
        ),
        compiler_params=pltpu.CompilerParams(dimension_semantics=("parallel",)),
    )(a, w, r)


def temporal_gated_conv(x, wp, wq, bp, bq):
    """Fused TemporalConvLayer: (conv_P + residual) * sigmoid(conv_Q), grid over batch."""
    B, C, H, W = x.shape
    kt, c_out, _ = wp.shape
    hp = H + 2                                        # padding=(1, 0), as in the reference
    xp = jnp.pad(x, ((0, 0), (0, 0), (1, 1), (0, 0))).reshape(B, C, hp * W)
    L = H * W
    out = pl.pallas_call(
        partial(_temporal_gated_kernel, kt=kt, n_w=W, h_out=H),
        out_shape=jax.ShapeDtypeStruct((B, c_out, L), x.dtype),
        grid_spec=pltpu.PrefetchScalarGridSpec(
            num_scalar_prefetch=0,
            grid=(B,),
            in_specs=[
                pl.BlockSpec((1, C, hp * W), lambda b: (b, 0, 0)),
                pl.BlockSpec((kt, c_out, C), lambda b: (0, 0, 0)),
                pl.BlockSpec((kt, c_out, C), lambda b: (0, 0, 0)),
                pl.BlockSpec((c_out, 1), lambda b: (0, 0)),
                pl.BlockSpec((c_out, 1), lambda b: (0, 0)),
            ],
            out_specs=pl.BlockSpec((1, c_out, L), lambda b: (b, 0, 0)),
        ),
        compiler_params=pltpu.CompilerParams(dimension_semantics=("parallel",)),
    )(xp, wp, wq, bp.reshape(c_out, 1), bq.reshape(c_out, 1))
    return out.reshape(B, c_out, H, W)


def batch_norm_nodes(x, gamma, beta):
    """BatchNorm2d(n_nodes), training-mode batch stats, computed directly in NCHW:
    per-node (column) statistics of the (B*C*T, N) view — no transposes needed."""
    B, C, T, N = x.shape
    x2 = x.reshape(B * C * T, N)                      # free contiguous reinterpret
    y = pl.pallas_call(
        _bn_nodes_kernel,
        out_shape=jax.ShapeDtypeStruct(x2.shape, x.dtype),
    )(x2, gamma.reshape(1, N), beta.reshape(1, N))
    # TODO(synk): at production sizes switch to a row-tiled two-pass (stats, normalize).
    return y.reshape(B, C, T, N)


def conv1x1_nchw(x, w, b):
    """1x1 Conv2d: per-batch (c_out, C) @ (C, H*W) on the MXU."""
    B, C, H, W = x.shape
    c_out = w.shape[0]
    x2 = x.reshape(B, C, H * W)
    out = pl.pallas_call(
        _conv1x1_kernel,
        out_shape=jax.ShapeDtypeStruct((B, c_out, H * W), x.dtype),
        grid_spec=pltpu.PrefetchScalarGridSpec(
            num_scalar_prefetch=0,
            grid=(B,),
            in_specs=[pl.BlockSpec((1, C, H * W), lambda b: (b, 0, 0)),
                      pl.BlockSpec((c_out, C), lambda b: (0, 0)),
                      pl.BlockSpec((c_out, 1), lambda b: (0, 0))],
            out_specs=pl.BlockSpec((1, c_out, H * W), lambda b: (b, 0, 0)),
        ),
        compiler_params=pltpu.CompilerParams(dimension_semantics=("parallel",)),
    )(x2, w, b.reshape(c_out, 1))
    return out.reshape(B, c_out, H, W)


# ------------------------------ model (glue + Pallas) ------------------------------

def _prepare_temporal_params(p, c_in, c_out, kt):
    """Fold GLU split, residual branch and (c_in > c_out) conv_reshape into one pair of
    (kt, c_out, c_in) tap matrices + biases -> the whole TemporalConvLayer is 1 kernel."""
    assert kt == 3  # reference hard-codes padding=(1, 0); residual aligns with tap d=1
    w1 = p["w1"][:, :, :, 0]                          # (2*c_out, c_in, kt) torch layout
    wp = jnp.transpose(w1[:c_out], (2, 0, 1))         # (kt, c_out, c_in)
    wq = jnp.transpose(w1[c_out:], (2, 0, 1))
    bp = p["b1"][:c_out]
    bq = p["b1"][c_out:]
    if c_in > c_out:
        # residual = conv_reshape(X): same taps / padding -> add directly into P taps
        wr = jnp.transpose(p["w_reshape"][:, :, :, 0], (2, 0, 1))
        wp = wp + wr
        bp = bp + p["b_reshape"]
    else:
        # residual = channel-zero-padded X: identity folded into the centre tap of P
        n_pad = round((c_out - c_in) / 2)
        assert n_pad + c_in <= c_out
        sel = jnp.zeros((c_out, c_in), wp.dtype).at[n_pad:n_pad + c_in, :].set(
            jnp.eye(c_in, dtype=wp.dtype))
        wp = wp.at[1].add(sel)                        # tap d=1 == unshifted input
    return wp, wq, bp, bq


def temporal_conv_layer(x, p, c_in, c_out, kt=3):
    wp, wq, bp, bq = _prepare_temporal_params(p, c_in, c_out, kt)
    return temporal_gated_conv(x, wp, wq, bp, bq)


def spatial_conv_layer(x, theta, graph_kernel, ks):
    """SpatialConvLayer with c_in == c_out (the only configuration STConvBlock uses).
    The flat reshapes reproduce the torch reshape semantics exactly (pure memory
    reinterpretation, free in XLA); residual + ReLU are fused into the theta matmul."""
    B, C, T, N = x.shape
    x1 = matmul(x.reshape(-1, N), graph_kernel)       # (B*C*T, ks*N)
    x2 = x1.reshape(-1, C * ks)                       # free contiguous reinterpret
    res = x.reshape(-1, C)                            # residual in x3's flat order
    x3 = matmul_res_relu(x2, theta, res)              # relu(x2 @ theta + res)
    return x3.reshape(B, C, T, N)


def st_conv_block(x, graph_kernel, p, channels, ks, kt):
    c_in, c_hid, c_out = channels
    out = temporal_conv_layer(x, p["t1"], c_in, c_hid, kt)
    out = spatial_conv_layer(out, p["theta"], graph_kernel, ks)
    out = temporal_conv_layer(out, p["t2"], c_hid, c_out, kt)
    out = batch_norm_nodes(out, p["bn_gamma"], p["bn_beta"])
    # Dropout2d(p=0.0) is the identity.
    return out


def output_layer_fwd(x, p, channels, n_t_in, kt=3):
    c_in, c_out = channels
    xp = jnp.transpose(x, (0, 2, 1, 3))[:, :n_t_in, :, :]   # (B, n_t_in, c_in, N)
    out = temporal_conv_layer(xp, p["tcl"], n_t_in, 1, kt)  # (B, 1, c_in, N)
    out = jnp.transpose(out, (0, 2, 1, 3))                  # (B, c_in, 1, N)
    return conv1x1_nchw(out, p["fc_w"], p["fc_b"])          # (B, c_out, 1, N)


def stgcn_forward(params, x, graph_kernel, blocks, n_t_in, ks=5, kt=3):
    out = st_conv_block(x, graph_kernel, params["block1"], blocks[0], ks, kt)
    out = st_conv_block(out, graph_kernel, params["block2"], blocks[1], ks, kt)
    return output_layer_fwd(out, params["out"], blocks[2], n_t_in, kt)


# ------------------------------ deterministic init ------------------------------

def _init_conv(key, c_in, c_out, kt):
    k1, k2 = jax.random.split(key)
    bound = 1.0 / math.sqrt(c_in * kt)
    w = jax.random.uniform(k1, (c_out, c_in, kt, 1), jnp.float32, -bound, bound)
    b = jax.random.uniform(k2, (c_out,), jnp.float32, -bound, bound)
    return w, b


def _init_temporal_layer(key, c_in, c_out, kt):
    k1, k2 = jax.random.split(key)
    w1, b1 = _init_conv(k1, c_in, 2 * c_out, kt)
    wr, br = _init_conv(k2, c_in, c_out, kt)
    return {"w1": w1, "b1": b1, "w_reshape": wr, "b_reshape": br}


def _init_block(key, channels, n_nodes, ks, kt):
    c_in, c_hid, c_out = channels
    k1, k2, k3 = jax.random.split(key, 3)
    std = 1.0 / math.sqrt(c_hid)
    return {
        "t1": _init_temporal_layer(k1, c_in, c_hid, kt),
        "theta": jax.random.uniform(k3, (ks * c_hid, c_hid), jnp.float32, -std, std),
        "t2": _init_temporal_layer(k2, c_hid, c_out, kt),
        "bn_gamma": jnp.ones((n_nodes,), jnp.float32),
        "bn_beta": jnp.zeros((n_nodes,), jnp.float32),
    }


def _init_output_layer(key, channels, n_t_in, kt):
    c_in, c_out = channels
    k1, k2, k3 = jax.random.split(key, 3)
    bound = 1.0 / math.sqrt(c_in)
    return {
        "tcl": _init_temporal_layer(k1, n_t_in, 1, kt),
        "fc_w": jax.random.uniform(k2, (c_out, c_in), jnp.float32, -bound, bound),
        "fc_b": jax.random.uniform(k3, (c_out,), jnp.float32, -bound, bound),
    }


# ------------------------------ main ------------------------------

if __name__ == "__main__":
    B, T, N = 2, 8, 16
    ks, kt = 5, 3
    blocks = [[4, 8, 16], [16, 8, 32], [32, 2]]

    key = jax.random.PRNGKey(0)
    kx, kg, kp1, kp2, kp3 = jax.random.split(key, 5)

    x = jax.random.normal(kx, (B, blocks[0][0], T, N), jnp.float32)
    graph_kernel = jax.random.normal(kg, (N, ks * N), jnp.float32) / math.sqrt(ks * N)

    params = {
        "block1": _init_block(kp1, blocks[0], N, ks, kt),
        "block2": _init_block(kp2, blocks[1], N, ks, kt),
        "out": _init_output_layer(kp3, blocks[2], T, kt),
    }

    fwd = jax.jit(partial(stgcn_forward, blocks=blocks, n_t_in=T, ks=ks, kt=kt))
    y = fwd(params, x, graph_kernel)
    jax.block_until_ready(y)
    assert y.shape == (B, blocks[2][1], 1, N), y.shape
    assert bool(jnp.all(jnp.isfinite(y)))
    print("KERNEL_OK")
</pallas_src>

<mosaic_0001>
module attributes {stable_mosaic.version = 11 : i64} {
  func.func @_temporal_gated_kernel(%arg0: i32, %arg1: memref<1x4x160xf32, #tpu.memory_space<vmem>>, %arg2: memref<3x8x4xf32, #tpu.memory_space<vmem>>, %arg3: memref<3x8x4xf32, #tpu.memory_space<vmem>>, %arg4: memref<8x1xf32, #tpu.memory_space<vmem>>, %arg5: memref<8x1xf32, #tpu.memory_space<vmem>>, %arg6: memref<1x8x128xf32, #tpu.memory_space<vmem>>) attributes {dimension_semantics = [#tpu.dimension_semantics<parallel>], iteration_bounds = array<i64: 2>, scalar_prefetch = 0 : i64, scratch_operands = 0 : i64, tpu.core_type = #tpu.core_type<tc>, window_params = [{transform_indices = @transform_0, window_bounds = array<i64: 1, 4, 160>}, {pipeline_mode = #tpu.pipeline_mode<synchronous>, transform_indices = @transform_1, window_bounds = array<i64: 3, 8, 4>}, {pipeline_mode = #tpu.pipeline_mode<synchronous>, transform_indices = @transform_2, window_bounds = array<i64: 3, 8, 4>}, {pipeline_mode = #tpu.pipeline_mode<synchronous>, transform_indices = @transform_3, window_bounds = array<i64: 8, 1>}, {pipeline_mode = #tpu.pipeline_mode<synchronous>, transform_indices = @transform_4, window_bounds = array<i64: 8, 1>}, {transform_indices = @transform_5, window_bounds = array<i64: 1, 8, 128>}]} {
    %c0 = arith.constant 0 : index
    %c0_0 = arith.constant 0 : index
    %c0_1 = arith.constant 0 : index
    %0 = vector.load %arg1[%c0, %c0_0, %c0_1] : memref<1x4x160xf32, #tpu.memory_space<vmem>>, vector<1x4x160xf32>
    %1 = vector.shape_cast %0 : vector<1x4x160xf32> to vector<4x160xf32>
    %cst = arith.constant 0.000000e+00 : f32
    %2 = vector.broadcast %cst : f32 to vector<8x128xf32>
    %cst_2 = arith.constant 0.000000e+00 : f32
    %3 = vector.broadcast %cst_2 : f32 to vector<8x128xf32>
    %4 = vector.extract_strided_slice %1 {offsets = [0, 0], sizes = [4, 128], strides = [1, 1]} : vector<4x160xf32> to vector<4x128xf32>
    %c0_3 = arith.constant 0 : index
    %c0_4 = arith.constant 0 : index
    %c0_5 = arith.constant 0 : index
    %5 = vector.load %arg2[%c0_3, %c0_4, %c0_5] : memref<3x8x4xf32, #tpu.memory_space<vmem>>, vector<1x8x4xf32>
    %6 = vector.shape_cast %5 : vector<1x8x4xf32> to vector<8x4xf32>
    %cst_6 = arith.constant dense<0.000000e+00> : vector<8x128xf32>
    %7 = tpu.matmul %6, %4, %cst_6 {dimension_numbers = #tpu.dot_dimension_numbers<[1], [0], [0], [1], [0, 0, 1, 1], [], []>} : vector<8x4xf32>, vector<4x128xf32>, vector<8x128xf32> -> vector<8x128xf32>
    %8 = arith.addf %2, %7 : vector<8x128xf32>
    %c0_7 = arith.constant 0 : index
    %c0_8 = arith.constant 0 : index
    %c0_9 = arith.constant 0 : index
    %9 = vector.load %arg3[%c0_7, %c0_8, %c0_9] : memref<3x8x4xf32, #tpu.memory_space<vmem>>, vector<1x8x4xf32>
    %10 = vector.shape_cast %9 : vector<1x8x4xf32> to vector<8x4xf32>
    %cst_10 = arith.constant dense<0.000000e+00> : vector<8x128xf32>
    %11 = tpu.matmul %10, %4, %cst_10 {dimension_numbers = #tpu.dot_dimension_numbers<[1], [0], [0], [1], [0, 0, 1, 1], [], []>} : vector<8x4xf32>, vector<4x128xf32>, vector<8x128xf32> -> vector<8x128xf32>
    %12 = arith.addf %3, %11 : vector<8x128xf32>
    %13 = vector.extract_strided_slice %1 {offsets = [0, 16], sizes = [4, 128], strides = [1, 1]} : vector<4x160xf32> to vector<4x128xf32>
    %c1 = arith.constant 1 : index
    %c0_11 = arith.constant 0 : index
    %c0_12 = arith.constant 0 : index
    %14 = vector.load %arg2[%c1, %c0_11, %c0_12] : memref<3x8x4xf32, #tpu.memory_space<vmem>>, vector<1x8x4xf32>
    %15 = vector.shape_cast %14 : vector<1x8x4xf32> to vector<8x4xf32>
    %cst_13 = arith.constant dense<0.000000e+00> : vector<8x128xf32>
    %16 = tpu.matmul %15, %13, %cst_13 {dimension_numbers = #tpu.dot_dimension_numbers<[1], [0], [0], [1], [0, 0, 1, 1], [], []>} : vector<8x4xf32>, vector<4x128xf32>, vector<8x128xf32> -> vector<8x128xf32>
    %17 = arith.addf %8, %16 : vector<8x128xf32>
    %c1_14 = arith.constant 1 : index
    %c0_15 = arith.constant 0 : index
    %c0_16 = arith.constant 0 : index
    %18 = vector.load %arg3[%c1_14, %c0_15, %c0_16] : memref<3x8x4xf32, #tpu.memory_space<vmem>>, vector<1x8x4xf32>
    %19 = vector.shape_cast %18 : vector<1x8x4xf32> to vector<8x4xf32>
    %cst_17 = arith.constant dense<0.000000e+00> : vector<8x128xf32>
    %20 = tpu.matmul %19, %13, %cst_17 {dimension_numbers = #tpu.dot_dimension_numbers<[1], [0], [0], [1], [0, 0, 1, 1], [], []>} : vector<8x4xf32>, vector<4x128xf32>, vector<8x128xf32> -> vector<8x128xf32>
    %21 = arith.addf %12, %20 : vector<8x128xf32>
    %22 = vector.extract_strided_slice %1 {offsets = [0, 32], sizes = [4, 128], strides = [1, 1]} : vector<4x160xf32> to vector<4x128xf32>
    %c2 = arith.constant 2 : index
    %c0_18 = arith.constant 0 : index
    %c0_19 = arith.constant 0 : index
    %23 = vector.load %arg2[%c2, %c0_18, %c0_19] : memref<3x8x4xf32, #tpu.memory_space<vmem>>, vector<1x8x4xf32>
    %24 = vector.shape_cast %23 : vector<1x8x4xf32> to vector<8x4xf32>
    %cst_20 = arith.constant dense<0.000000e+00> : vector<8x128xf32>
    %25 = tpu.matmul %24, %22, %cst_20 {dimension_numbers = #tpu.dot_dimension_numbers<[1], [0], [0], [1], [0, 0, 1, 1], [], []>} : vector<8x4xf32>, vector<4x128xf32>, vector<8x128xf32> -> vector<8x128xf32>
    %26 = arith.addf %17, %25 : vector<8x128xf32>
    %c2_21 = arith.constant 2 : index
    %c0_22 = arith.constant 0 : index
    %c0_23 = arith.constant 0 : index
    %27 = vector.load %arg3[%c2_21, %c0_22, %c0_23] : memref<3x8x4xf32, #tpu.memory_space<vmem>>, vector<1x8x4xf32>
    %28 = vector.shape_cast %27 : vector<1x8x4xf32> to vector<8x4xf32>
    %cst_24 = arith.constant dense<0.000000e+00> : vector<8x128xf32>
    %29 = tpu.matmul %28, %22, %cst_24 {dimension_numbers = #tpu.dot_dimension_numbers<[1], [0], [0], [1], [0, 0, 1, 1], [], []>} : vector<8x4xf32>, vector<4x128xf32>, vector<8x128xf32> -> vector<8x128xf32>
    %30 = arith.addf %21, %29 : vector<8x128xf32>
    %c0_25 = arith.constant 0 : index
    %c0_26 = arith.constant 0 : index
    %31 = vector.load %arg4[%c0_25, %c0_26] : memref<8x1xf32, #tpu.memory_space<vmem>>, vector<8x1xf32>
    %32 = vector.broadcast %31 : vector<8x1xf32> to vector<8x128xf32>
    %33 = arith.addf %26, %32 : vector<8x128xf32>
    %c0_27 = arith.constant 0 : index
    %c0_28 = arith.constant 0 : index
    %34 = vector.load %arg5[%c0_27, %c0_28] : memref<8x1xf32, #tpu.memory_space<vmem>>, vector<8x1xf32>
    %35 = vector.broadcast %34 : vector<8x1xf32> to vector<8x128xf32>
    %36 = arith.addf %30, %35 : vector<8x128xf32>
    %37 = arith.negf %36 : vector<8x128xf32>
    %38 = math.exp %37 : vector<8x128xf32>
    %cst_29 = arith.constant 1.000000e+00 : f32
    %39 = vector.broadcast %cst_29 : f32 to vector<8x128xf32>
    %40 = arith.addf %39, %38 : vector<8x128xf32>
    %41 = arith.divf %39, %40 : vector<8x128xf32>
    %42 = arith.mulf %33, %41 : vector<8x128xf32>
    %c0_30 = arith.constant 0 : index
    %c0_31 = arith.constant 0 : index
    %c0_32 = arith.constant 0 : index
    %43 = vector.load %arg6[%c0_30, %c0_31, %c0_32] : memref<1x8x128xf32, #tpu.memory_space<vmem>>, vector<1x8x128xf32>
    %44 = vector.shape_cast %43 : vector<1x8x128xf32> to vector<8x128xf32>
    %45 = vector.shape_cast %42 : vector<8x128xf32> to vector<1x8x128xf32>
    tpu.vector_store %arg6[%c0_30, %c0_31, %c0_32], %45 {strides = array<i32>} : memref<1x8x128xf32, #tpu.memory_space<vmem>>, vector<1x8x128xf32>,
    return
  }
  func.func @transform_0(%arg0: i32) -> (i32, i32, i32) {
    %c0_i32 = arith.constant 0 : i32
    %c0_i32_0 = arith.constant 0 : i32
    %c0_i32_1 = arith.constant 0 : i32
    return %arg0, %c0_i32, %c0_i32_0 : i32, i32, i32
  }
  func.func @transform_1(%arg0: i32) -> (i32, i32, i32) {
    %c0_i32 = arith.constant 0 : i32
    %c0_i32_0 = arith.constant 0 : i32
    %c0_i32_1 = arith.constant 0 : i32
    %c0_i32_2 = arith.constant 0 : i32
    return %c0_i32, %c0_i32_0, %c0_i32_1 : i32, i32, i32
  }
  func.func @transform_2(%arg0: i32) -> (i32, i32, i32) {
    %c0_i32 = arith.constant 0 : i32
    %c0_i32_0 = arith.constant 0 : i32
    %c0_i32_1 = arith.constant 0 : i32
    %c0_i32_2 = arith.constant 0 : i32
    return %c0_i32, %c0_i32_0, %c0_i32_1 : i32, i32, i32
  }
  func.func @transform_3(%arg0: i32) -> (i32, i32) {
    %c0_i32 = arith.constant 0 : i32
    %c0_i32_0 = arith.constant 0 : i32
    %c0_i32_1 = arith.constant 0 : i32
    return %c0_i32, %c0_i32_0 : i32, i32
  }
  func.func @transform_4(%arg0: i32) -> (i32, i32) {
    %c0_i32 = arith.constant 0 : i32
    %c0_i32_0 = arith.constant 0 : i32
    %c0_i32_1 = arith.constant 0 : i32
    return %c0_i32, %c0_i32_0 : i32, i32
  }
  func.func @transform_5(%arg0: i32) -> (i32, i32, i32) {
    %c0_i32 = arith.constant 0 : i32
    %c0_i32_0 = arith.constant 0 : i32
    %c0_i32_1 = arith.constant 0 : i32
    return %arg0, %c0_i32, %c0_i32_0 : i32, i32, i32
  }
}

module attributes {stable_mosaic.version = 11 : i64} {
  func.func @_matmul_kernel(%arg0: i32, %arg1: memref<64x16xf32, #tpu.memory_space<vmem>>, %arg2: memref<16x80xf32, #tpu.memory_space<vmem>>, %arg3: memref<64x80xf32, #tpu.memory_space<vmem>>) attributes {dimension_semantics = [#tpu.dimension_semantics<parallel>], iteration_bounds = array<i64: 2>, scalar_prefetch = 0 : i64, scratch_operands = 0 : i64, tpu.core_type = #tpu.core_type<tc>, window_params = [{transform_indices = @transform_0, window_bounds = array<i64: 64, 16>}, {pipeline_mode = #tpu.pipeline_mode<synchronous>, transform_indices = @transform_1, window_bounds = array<i64: 16, 80>}, {transform_indices = @transform_2, window_bounds = array<i64: 64, 80>}]} {
    %c0 = arith.constant 0 : index
    %c0_0 = arith.constant 0 : index
    %0 = vector.load %arg1[%c0, %c0_0] : memref<64x16xf32, #tpu.memory_space<vmem>>, vector<64x16xf32>
    %c0_1 = arith.constant 0 : index
    %c0_2 = arith.constant 0 : index
    %1 = vector.load %arg2[%c0_1, %c0_2] : memref<16x80xf32, #tpu.memory_space<vmem>>, vector<16x80xf32>
    %cst = arith.constant dense<0.000000e+00> : vector<64x80xf32>
    %2 = tpu.matmul %0, %1, %cst {dimension_numbers = #tpu.dot_dimension_numbers<[1], [0], [0], [1], [0, 0, 1, 1], [], []>} : vector<64x16xf32>, vector<16x80xf32>, vector<64x80xf32> -> vector<64x80xf32>
    %c0_3 = arith.constant 0 : index
    %c0_4 = arith.constant 0 : index
    %3 = vector.load %arg3[%c0_3, %c0_4] : memref<64x80xf32, #tpu.memory_space<vmem>>, vector<64x80xf32>
    tpu.vector_store %arg3[%c0_3, %c0_4], %2 {strides = array<i32>} : memref<64x80xf32, #tpu.memory_space<vmem>>, vector<64x80xf32>,
    return
  }
  func.func @transform_0(%arg0: i32) -> (i32, i32) {
    %c0_i32 = arith.constant 0 : i32
    %c0_i32_0 = arith.constant 0 : i32
    return %arg0, %c0_i32 : i32, i32
  }
  func.func @transform_1(%arg0: i32) -> (i32, i32) {
    %c0_i32 = arith.constant 0 : i32
    %c0_i32_0 = arith.constant 0 : i32
    %c0_i32_1 = arith.constant 0 : i32
    return %c0_i32, %c0_i32_0 : i32, i32
  }
  func.func @transform_2(%arg0: i32) -> (i32, i32) {
    %c0_i32 = arith.constant 0 : i32
    %c0_i32_0 = arith.constant 0 : i32
    return %arg0, %c0_i32 : i32, i32
  }
}

module attributes {stable_mosaic.version = 11 : i64} {
  func.func @_matmul_res_relu_kernel(%arg0: i32, %arg1: memref<128x40xf32, #tpu.memory_space<vmem>>, %arg2: memref<40x8xf32, #tpu.memory_space<vmem>>, %arg3: memref<128x8xf32, #tpu.memory_space<vmem>>, %arg4: memref<128x8xf32, #tpu.memory_space<vmem>>) attributes {dimension_semantics = [#tpu.dimension_semantics<parallel>], iteration_bounds = array<i64: 2>, scalar_prefetch = 0 : i64, scratch_operands = 0 : i64, tpu.core_type = #tpu.core_type<tc>, window_params = [{transform_indices = @transform_0, window_bounds = array<i64: 128, 40>}, {pipeline_mode = #tpu.pipeline_mode<synchronous>, transform_indices = @transform_1, window_bounds = array<i64: 40, 8>}, {transform_indices = @transform_2, window_bounds = array<i64: 128, 8>}, {transform_indices = @transform_3, window_bounds = array<i64: 128, 8>}]} {
    %c0 = arith.constant 0 : index
    %c0_0 = arith.constant 0 : index
    %0 = vector.load %arg1[%c0, %c0_0] : memref<128x40xf32, #tpu.memory_space<vmem>>, vector<128x40xf32>
    %c0_1 = arith.constant 0 : index
    %c0_2 = arith.constant 0 : index
    %1 = vector.load %arg2[%c0_1, %c0_2] : memref<40x8xf32, #tpu.memory_space<vmem>>, vector<40x8xf32>
    %cst = arith.constant dense<0.000000e+00> : vector<128x8xf32>
    %2 = tpu.matmul %0, %1, %cst {dimension_numbers = #tpu.dot_dimension_numbers<[1], [0], [0], [1], [0, 0, 1, 1], [], []>} : vector<128x40xf32>, vector<40x8xf32>, vector<128x8xf32> -> vector<128x8xf32>
    %c0_3 = arith.constant 0 : index
    %c0_4 = arith.constant 0 : index
    %3 = vector.load %arg3[%c0_3, %c0_4] : memref<128x8xf32, #tpu.memory_space<vmem>>, vector<128x8xf32>
    %4 = arith.addf %2, %3 : vector<128x8xf32>
    %cst_5 = arith.constant 0.000000e+00 : f32
    %5 = vector.broadcast %cst_5 : f32 to vector<128x8xf32>
    %6 = arith.maximumf %4, %5 : vector<128x8xf32>
    %c0_6 = arith.constant 0 : index
    %c0_7 = arith.constant 0 : index
    %7 = vector.load %arg4[%c0_6, %c0_7] : memref<128x8xf32, #tpu.memory_space<vmem>>, vector<128x8xf32>
    tpu.vector_store %arg4[%c0_6, %c0_7], %6 {strides = array<i32>} : memref<128x8xf32, #tpu.memory_space<vmem>>, vector<128x8xf32>,
    return
  }
  func.func @transform_0(%arg0: i32) -> (i32, i32) {
    %c0_i32 = arith.constant 0 : i32
    %c0_i32_0 = arith.constant 0 : i32
    return %arg0, %c0_i32 : i32, i32
  }
  func.func @transform_1(%arg0: i32) -> (i32, i32) {
    %c0_i32 = arith.constant 0 : i32
    %c0_i32_0 = arith.constant 0 : i32
    %c0_i32_1 = arith.constant 0 : i32
    return %c0_i32, %c0_i32_0 : i32, i32
  }
  func.func @transform_2(%arg0: i32) -> (i32, i32) {
    %c0_i32 = arith.constant 0 : i32
    %c0_i32_0 = arith.constant 0 : i32
    return %arg0, %c0_i32 : i32, i32
  }
  func.func @transform_3(%arg0: i32) -> (i32, i32) {
    %c0_i32 = arith.constant 0 : i32
    %c0_i32_0 = arith.constant 0 : i32
    return %arg0, %c0_i32 : i32, i32
  }
}

module attributes {stable_mosaic.version = 11 : i64} {
  func.func @_bn_nodes_kernel(%arg0: memref<256x16xf32, #tpu.memory_space<vmem>>, %arg1: memref<1x16xf32, #tpu.memory_space<vmem>>, %arg2: memref<1x16xf32, #tpu.memory_space<vmem>>, %arg3: memref<256x16xf32, #tpu.memory_space<vmem>>) attributes {dimension_semantics = [], scalar_prefetch = 0 : i64, scratch_operands = 0 : i64, tpu.core_type = #tpu.core_type<tc>} {
    %c0 = arith.constant 0 : index
    %c0_0 = arith.constant 0 : index
    %0 = vector.load %arg0[%c0, %c0_0] : memref<256x16xf32, #tpu.memory_space<vmem>>, vector<256x16xf32>
    %cst = arith.constant dense<0.000000e+00> : vector<16xf32>
    %1 = vector.multi_reduction <add>, %0, %cst [0] : vector<256x16xf32> to vector<16xf32>
    %2 = vector.shape_cast %1 : vector<16xf32> to vector<1x16xf32>
    %cst_1 = arith.constant 2.560000e+02 : f32
    %3 = vector.broadcast %cst_1 : f32 to vector<1x16xf32>
    %4 = arith.divf %2, %3 : vector<1x16xf32>
    %5 = vector.broadcast %4 : vector<1x16xf32> to vector<256x16xf32>
    %6 = arith.subf %0, %5 : vector<256x16xf32>
    %7 = arith.mulf %6, %6 : vector<256x16xf32>
    %cst_2 = arith.constant dense<0.000000e+00> : vector<16xf32>
    %8 = vector.multi_reduction <add>, %7, %cst_2 [0] : vector<256x16xf32> to vector<16xf32>
    %9 = vector.shape_cast %8 : vector<16xf32> to vector<1x16xf32>
    %cst_3 = arith.constant 2.560000e+02 : f32
    %10 = vector.broadcast %cst_3 : f32 to vector<1x16xf32>
    %11 = arith.divf %9, %10 : vector<1x16xf32>
    %12 = vector.broadcast %4 : vector<1x16xf32> to vector<256x16xf32>
    %13 = arith.subf %0, %12 : vector<256x16xf32>
    %cst_4 = arith.constant 9.99999974E-6 : f32
    %14 = vector.broadcast %cst_4 : f32 to vector<1x16xf32>
    %15 = arith.addf %11, %14 : vector<1x16xf32>
    %16 = math.rsqrt %15 : vector<1x16xf32>
    %17 = vector.broadcast %16 : vector<1x16xf32> to vector<256x16xf32>
    %18 = arith.mulf %13, %17 : vector<256x16xf32>
    %c0_5 = arith.constant 0 : index
    %c0_6 = arith.constant 0 : index
    %19 = vector.load %arg1[%c0_5, %c0_6] : memref<1x16xf32, #tpu.memory_space<vmem>>, vector<1x16xf32>
    %20 = vector.broadcast %19 : vector<1x16xf32> to vector<256x16xf32>
    %21 = arith.mulf %18, %20 : vector<256x16xf32>
    %c0_7 = arith.constant 0 : index
    %c0_8 = arith.constant 0 : index
    %22 = vector.load %arg2[%c0_7, %c0_8] : memref<1x16xf32, #tpu.memory_space<vmem>>, vector<1x16xf32>
    %23 = vector.broadcast %22 : vector<1x16xf32> to vector<256x16xf32>
    %24 = arith.addf %21, %23 : vector<256x16xf32>
    %c0_9 = arith.constant 0 : index
    %c0_10 = arith.constant 0 : index
    %25 = vector.load %arg3[%c0_9, %c0_10] : memref<256x16xf32, #tpu.memory_space<vmem>>, vector<256x16xf32>
    tpu.vector_store %arg3[%c0_9, %c0_10], %24 {strides = array<i32>} : memref<256x16xf32, #tpu.memory_space<vmem>>, vector<256x16xf32>,
    return
  }
}

module attributes {stable_mosaic.version = 11 : i64} {
  func.func @_temporal_gated_kernel(%arg0: i32, %arg1: memref<1x8x160xf32, #tpu.memory_space<vmem>>, %arg2: memref<3x16x8xf32, #tpu.memory_space<vmem>>, %arg3: memref<3x16x8xf32, #tpu.memory_space<vmem>>, %arg4: memref<16x1xf32, #tpu.memory_space<vmem>>, %arg5: memref<16x1xf32, #tpu.memory_space<vmem>>, %arg6: memref<1x16x128xf32, #tpu.memory_space<vmem>>) attributes {dimension_semantics = [#tpu.dimension_semantics<parallel>], iteration_bounds = array<i64: 2>, scalar_prefetch = 0 : i64, scratch_operands = 0 : i64, tpu.core_type = #tpu.core_type<tc>, window_params = [{transform_indices = @transform_0, window_bounds = array<i64: 1, 8, 160>}, {pipeline_mode = #tpu.pipeline_mode<synchronous>, transform_indices = @transform_1, window_bounds = array<i64: 3, 16, 8>}, {pipeline_mode = #tpu.pipeline_mode<synchronous>, transform_indices = @transform_2, window_bounds = array<i64: 3, 16, 8>}, {pipeline_mode = #tpu.pipeline_mode<synchronous>, transform_indices = @transform_3, window_bounds = array<i64: 16, 1>}, {pipeline_mode = #tpu.pipeline_mode<synchronous>, transform_indices = @transform_4, window_bounds = array<i64: 16, 1>}, {transform_indices = @transform_5, window_bounds = array<i64: 1, 16, 128>}]} {
    %c0 = arith.constant 0 : index
    %c0_0 = arith.constant 0 : index
    %c0_1 = arith.constant 0 : index
    %0 = vector.load %arg1[%c0, %c0_0, %c0_1] : memref<1x8x160xf32, #tpu.memory_space<vmem>>, vector<1x8x160xf32>
    %1 = vector.shape_cast %0 : vector<1x8x160xf32> to vector<8x160xf32>
    %cst = arith.constant 0.000000e+00 : f32
    %2 = vector.broadcast %cst : f32 to vector<16x128xf32>
    %cst_2 = arith.constant 0.000000e+00 : f32
    %3 = vector.broadcast %cst_2 : f32 to vector<16x128xf32>
    %4 = vector.extract_strided_slice %1 {offsets = [0, 0], sizes = [8, 128], strides = [1, 1]} : vector<8x160xf32> to vector<8x128xf32>
    %c0_3 = arith.constant 0 : index
    %c0_4 = arith.constant 0 : index
    %c0_5 = arith.constant 0 : index
    %5 = vector.load %arg2[%c0_3, %c0_4, %c0_5] : memref<3x16x8xf32, #tpu.memory_space<vmem>>, vector<1x16x8xf32>
    %6 = vector.shape_cast %5 : vector<1x16x8xf32> to vector<16x8xf32>
    %cst_6 = arith.constant dense<0.000000e+00> : vector<16x128xf32>
    %7 = tpu.matmul %6, %4, %cst_6 {dimension_numbers = #tpu.dot_dimension_numbers<[1], [0], [0], [1], [0, 0, 1, 1], [], []>} : vector<16x8xf32>, vector<8x128xf32>, vector<16x128xf32> -> vector<16x128xf32>
    %8 = arith.addf %2, %7 : vector<16x128xf32>
    %c0_7 = arith.constant 0 : index
    %c0_8 = arith.constant 0 : index
    %c0_9 = arith.constant 0 : index
    %9 = vector.load %arg3[%c0_7, %c0_8, %c0_9] : memref<3x16x8xf32, #tpu.memory_space<vmem>>, vector<1x16x8xf32>
    %10 = vector.shape_cast %9 : vector<1x16x8xf32> to vector<16x8xf32>
    %cst_10 = arith.constant dense<0.000000e+00> : vector<16x128xf32>
    %11 = tpu.matmul %10, %4, %cst_10 {dimension_numbers = #tpu.dot_dimension_numbers<[1], [0], [0], [1], [0, 0, 1, 1], [], []>} : vector<16x8xf32>, vector<8x128xf32>, vector<16x128xf32> -> vector<16x128xf32>
    %12 = arith.addf %3, %11 : vector<16x128xf32>
    %13 = vector.extract_strided_slice %1 {offsets = [0, 16], sizes = [8, 128], strides = [1, 1]} : vector<8x160xf32> to vector<8x128xf32>
    %c1 = arith.constant 1 : index
    %c0_11 = arith.constant 0 : index
    %c0_12 = arith.constant 0 : index
    %14 = vector.load %arg2[%c1, %c0_11, %c0_12] : memref<3x16x8xf32, #tpu.memory_space<vmem>>, vector<1x16x8xf32>
    %15 = vector.shape_cast %14 : vector<1x16x8xf32> to vector<16x8xf32>
    %cst_13 = arith.constant dense<0.000000e+00> : vector<16x128xf32>
    %16 = tpu.matmul %15, %13, %cst_13 {dimension_numbers = #tpu.dot_dimension_numbers<[1], [0], [0], [1], [0, 0, 1, 1], [], []>} : vector<16x8xf32>, vector<8x128xf32>, vector<16x128xf32> -> vector<16x128xf32>
    %17 = arith.addf %8, %16 : vector<16x128xf32>
    %c1_14 = arith.constant 1 : index
    %c0_15 = arith.constant 0 : index
    %c0_16 = arith.constant 0 : index
    %18 = vector.load %arg3[%c1_14, %c0_15, %c0_16] : memref<3x16x8xf32, #tpu.memory_space<vmem>>, vector<1x16x8xf32>
    %19 = vector.shape_cast %18 : vector<1x16x8xf32> to vector<16x8xf32>
    %cst_17 = arith.constant dense<0.000000e+00> : vector<16x128xf32>
    %20 = tpu.matmul %19, %13, %cst_17 {dimension_numbers = #tpu.dot_dimension_numbers<[1], [0], [0], [1], [0, 0, 1, 1], [], []>} : vector<16x8xf32>, vector<8x128xf32>, vector<16x128xf32> -> vector<16x128xf32>
    %21 = arith.addf %12, %20 : vector<16x128xf32>
    %22 = vector.extract_strided_slice %1 {offsets = [0, 32], sizes = [8, 128], strides = [1, 1]} : vector<8x160xf32> to vector<8x128xf32>
    %c2 = arith.constant 2 : index
    %c0_18 = arith.constant 0 : index
    %c0_19 = arith.constant 0 : index
    %23 = vector.load %arg2[%c2, %c0_18, %c0_19] : memref<3x16x8xf32, #tpu.memory_space<vmem>>, vector<1x16x8xf32>
    %24 = vector.shape_cast %23 : vector<1x16x8xf32> to vector<16x8xf32>
    %cst_20 = arith.constant dense<0.000000e+00> : vector<16x128xf32>
    %25 = tpu.matmul %24, %22, %cst_20 {dimension_numbers = #tpu.dot_dimension_numbers<[1], [0], [0], [1], [0, 0, 1, 1], [], []>} : vector<16x8xf32>, vector<8x128xf32>, vector<16x128xf32> -> vector<16x128xf32>
    %26 = arith.addf %17, %25 : vector<16x128xf32>
    %c2_21 = arith.constant 2 : index
    %c0_22 = arith.constant 0 : index
    %c0_23 = arith.constant 0 : index
    %27 = vector.load %arg3[%c2_21, %c0_22, %c0_23] : memref<3x16x8xf32, #tpu.memory_space<vmem>>, vector<1x16x8xf32>
    %28 = vector.shape_cast %27 : vector<1x16x8xf32> to vector<16x8xf32>
    %cst_24 = arith.constant dense<0.000000e+00> : vector<16x128xf32>
    %29 = tpu.matmul %28, %22, %cst_24 {dimension_numbers = #tpu.dot_dimension_numbers<[1], [0], [0], [1], [0, 0, 1, 1], [], []>} : vector<16x8xf32>, vector<8x128xf32>, vector<16x128xf32> -> vector<16x128xf32>
    %30 = arith.addf %21, %29 : vector<16x128xf32>
    %c0_25 = arith.constant 0 : index
    %c0_26 = arith.constant 0 : index
    %31 = vector.load %arg4[%c0_25, %c0_26] : memref<16x1xf32, #tpu.memory_space<vmem>>, vector<16x1xf32>
    %32 = vector.broadcast %31 : vector<16x1xf32> to vector<16x128xf32>
    %33 = arith.addf %26, %32 : vector<16x128xf32>
    %c0_27 = arith.constant 0 : index
    %c0_28 = arith.constant 0 : index
    %34 = vector.load %arg5[%c0_27, %c0_28] : memref<16x1xf32, #tpu.memory_space<vmem>>, vector<16x1xf32>
    %35 = vector.broadcast %34 : vector<16x1xf32> to vector<16x128xf32>
    %36 = arith.addf %30, %35 : vector<16x128xf32>
    %37 = arith.negf %36 : vector<16x128xf32>
    %38 = math.exp %37 : vector<16x128xf32>
    %cst_29 = arith.constant 1.000000e+00 : f32
    %39 = vector.broadcast %cst_29 : f32 to vector<16x128xf32>
    %40 = arith.addf %39, %38 : vector<16x128xf32>
    %41 = arith.divf %39, %40 : vector<16x128xf32>
    %42 = arith.mulf %33, %41 : vector<16x128xf32>
    %c0_30 = arith.constant 0 : index
    %c0_31 = arith.constant 0 : index
    %c0_32 = arith.constant 0 : index
    %43 = vector.load %arg6[%c0_30, %c0_31, %c0_32] : memref<1x16x128xf32, #tpu.memory_space<vmem>>, vector<1x16x128xf32>
    %44 = vector.shape_cast %43 : vector<1x16x128xf32> to vector<16x128xf32>
    %45 = vector.shape_cast %42 : vector<16x128xf32> to vector<1x16x128xf32>
    tpu.vector_store %arg6[%c0_30, %c0_31, %c0_32], %45 {strides = array<i32>} : memref<1x16x128xf32, #tpu.memory_space<vmem>>, vector<1x16x128xf32>,
    return
  }
  func.func @transform_0(%arg0: i32) -> (i32, i32, i32) {
    %c0_i32 = arith.constant 0 : i32
    %c0_i32_0 = arith.constant 0 : i32
    %c0_i32_1 = arith.constant 0 : i32
    return %arg0, %c0_i32, %c0_i32_0 : i32, i32, i32
  }
  func.func @transform_1(%arg0: i32) -> (i32, i32, i32) {
    %c0_i32 = arith.constant 0 : i32
    %c0_i32_0 = arith.constant 0 : i32
    %c0_i32_1 = arith.constant 0 : i32
    %c0_i32_2 = arith.constant 0 : i32
    return %c0_i32, %c0_i32_0, %c0_i32_1 : i32, i32, i32
  }
  func.func @transform_2(%arg0: i32) -> (i32, i32, i32) {
    %c0_i32 = arith.constant 0 : i32
    %c0_i32_0 = arith.constant 0 : i32
    %c0_i32_1 = arith.constant 0 : i32
    %c0_i32_2 = arith.constant 0 : i32
    return %c0_i32, %c0_i32_0, %c0_i32_1 : i32, i32, i32
  }
  func.func @transform_3(%arg0: i32) -> (i32, i32) {
    %c0_i32 = arith.constant 0 : i32
    %c0_i32_0 = arith.constant 0 : i32
    %c0_i32_1 = arith.constant 0 : i32
    return %c0_i32, %c0_i32_0 : i32, i32
  }
  func.func @transform_4(%arg0: i32) -> (i32, i32) {
    %c0_i32 = arith.constant 0 : i32
    %c0_i32_0 = arith.constant 0 : i32
    %c0_i32_1 = arith.constant 0 : i32
    return %c0_i32, %c0_i32_0 : i32, i32
  }
  func.func @transform_5(%arg0: i32) -> (i32, i32, i32) {
    %c0_i32 = arith.constant 0 : i32
    %c0_i32_0 = arith.constant 0 : i32
    %c0_i32_1 = arith.constant 0 : i32
    return %arg0, %c0_i32, %c0_i32_0 : i32, i32, i32
  }
}

module attributes {stable_mosaic.version = 11 : i64} {
  func.func @_temporal_gated_kernel(%arg0: i32, %arg1: memref<1x16x160xf32, #tpu.memory_space<vmem>>, %arg2: memref<3x8x16xf32, #tpu.memory_space<vmem>>, %arg3: memref<3x8x16xf32, #tpu.memory_space<vmem>>, %arg4: memref<8x1xf32, #tpu.memory_space<vmem>>, %arg5: memref<8x1xf32, #tpu.memory_space<vmem>>, %arg6: memref<1x8x128xf32, #tpu.memory_space<vmem>>) attributes {dimension_semantics = [#tpu.dimension_semantics<parallel>], iteration_bounds = array<i64: 2>, scalar_prefetch = 0 : i64, scratch_operands = 0 : i64, tpu.core_type = #tpu.core_type<tc>, window_params = [{transform_indices = @transform_0, window_bounds = array<i64: 1, 16, 160>}, {pipeline_mode = #tpu.pipeline_mode<synchronous>, transform_indices = @transform_1, window_bounds = array<i64: 3, 8, 16>}, {pipeline_mode = #tpu.pipeline_mode<synchronous>, transform_indices = @transform_2, window_bounds = array<i64: 3, 8, 16>}, {pipeline_mode = #tpu.pipeline_mode<synchronous>, transform_indices = @transform_3, window_bounds = array<i64: 8, 1>}, {pipeline_mode = #tpu.pipeline_mode<synchronous>, transform_indices = @transform_4, window_bounds = array<i64: 8, 1>}, {transform_indices = @transform_5, window_bounds = array<i64: 1, 8, 128>}]} {
    %c0 = arith.constant 0 : index
    %c0_0 = arith.constant 0 : index
    %c0_1 = arith.constant 0 : index
    %0 = vector.load %arg1[%c0, %c0_0, %c0_1] : memref<1x16x160xf32, #tpu.memory_space<vmem>>, vector<1x16x160xf32>
    %1 = vector.shape_cast %0 : vector<1x16x160xf32> to vector<16x160xf32>
    %cst = arith.constant 0.000000e+00 : f32
    %2 = vector.broadcast %cst : f32 to vector<8x128xf32>
    %cst_2 = arith.constant 0.000000e+00 : f32
    %3 = vector.broadcast %cst_2 : f32 to vector<8x128xf32>
    %4 = vector.extract_strided_slice %1 {offsets = [0, 0], sizes = [16, 128], strides = [1, 1]} : vector<16x160xf32> to vector<16x128xf32>
    %c0_3 = arith.constant 0 : index
    %c0_4 = arith.constant 0 : index
    %c0_5 = arith.constant 0 : index
    %5 = vector.load %arg2[%c0_3, %c0_4, %c0_5] : memref<3x8x16xf32, #tpu.memory_space<vmem>>, vector<1x8x16xf32>
    %6 = vector.shape_cast %5 : vector<1x8x16xf32> to vector<8x16xf32>
    %cst_6 = arith.constant dense<0.000000e+00> : vector<8x128xf32>
    %7 = tpu.matmul %6, %4, %cst_6 {dimension_numbers = #tpu.dot_dimension_numbers<[1], [0], [0], [1], [0, 0, 1, 1], [], []>} : vector<8x16xf32>, vector<16x128xf32>, vector<8x128xf32> -> vector<8x128xf32>
    %8 = arith.addf %2, %7 : vector<8x128xf32>
    %c0_7 = arith.constant 0 : index
    %c0_8 = arith.constant 0 : index
    %c0_9 = arith.constant 0 : index
    %9 = vector.load %arg3[%c0_7, %c0_8, %c0_9] : memref<3x8x16xf32, #tpu.memory_space<vmem>>, vector<1x8x16xf32>
    %10 = vector.shape_cast %9 : vector<1x8x16xf32> to vector<8x16xf32>
    %cst_10 = arith.constant dense<0.000000e+00> : vector<8x128xf32>
    %11 = tpu.matmul %10, %4, %cst_10 {dimension_numbers = #tpu.dot_dimension_numbers<[1], [0], [0], [1], [0, 0, 1, 1], [], []>} : vector<8x16xf32>, vector<16x128xf32>, vector<8x128xf32> -> vector<8x128xf32>
    %12 = arith.addf %3, %11 : vector<8x128xf32>
    %13 = vector.extract_strided_slice %1 {offsets = [0, 16], sizes = [16, 128], strides = [1, 1]} : vector<16x160xf32> to vector<16x128xf32>
    %c1 = arith.constant 1 : index
    %c0_11 = arith.constant 0 : index
    %c0_12 = arith.constant 0 : index
    %14 = vector.load %arg2[%c1, %c0_11, %c0_12] : memref<3x8x16xf32, #tpu.memory_space<vmem>>, vector<1x8x16xf32>
    %15 = vector.shape_cast %14 : vector<1x8x16xf32> to vector<8x16xf32>
    %cst_13 = arith.constant dense<0.000000e+00> : vector<8x128xf32>
    %16 = tpu.matmul %15, %13, %cst_13 {dimension_numbers = #tpu.dot_dimension_numbers<[1], [0], [0], [1], [0, 0, 1, 1], [], []>} : vector<8x16xf32>, vector<16x128xf32>, vector<8x128xf32> -> vector<8x128xf32>
    %17 = arith.addf %8, %16 : vector<8x128xf32>
    %c1_14 = arith.constant 1 : index
    %c0_15 = arith.constant 0 : index
    %c0_16 = arith.constant 0 : index
    %18 = vector.load %arg3[%c1_14, %c0_15, %c0_16] : memref<3x8x16xf32, #tpu.memory_space<vmem>>, vector<1x8x16xf32>
    %19 = vector.shape_cast %18 : vector<1x8x16xf32> to vector<8x16xf32>
    %cst_17 = arith.constant dense<0.000000e+00> : vector<8x128xf32>
    %20 = tpu.matmul %19, %13, %cst_17 {dimension_numbers = #tpu.dot_dimension_numbers<[1], [0], [0], [1], [0, 0, 1, 1], [], []>} : vector<8x16xf32>, vector<16x128xf32>, vector<8x128xf32> -> vector<8x128xf32>
    %21 = arith.addf %12, %20 : vector<8x128xf32>
    %22 = vector.extract_strided_slice %1 {offsets = [0, 32], sizes = [16, 128], strides = [1, 1]} : vector<16x160xf32> to vector<16x128xf32>
    %c2 = arith.constant 2 : index
    %c0_18 = arith.constant 0 : index
    %c0_19 = arith.constant 0 : index
    %23 = vector.load %arg2[%c2, %c0_18, %c0_19] : memref<3x8x16xf32, #tpu.memory_space<vmem>>, vector<1x8x16xf32>
    %24 = vector.shape_cast %23 : vector<1x8x16xf32> to vector<8x16xf32>
    %cst_20 = arith.constant dense<0.000000e+00> : vector<8x128xf32>
    %25 = tpu.matmul %24, %22, %cst_20 {dimension_numbers = #tpu.dot_dimension_numbers<[1], [0], [0], [1], [0, 0, 1, 1], [], []>} : vector<8x16xf32>, vector<16x128xf32>, vector<8x128xf32> -> vector<8x128xf32>
    %26 = arith.addf %17, %25 : vector<8x128xf32>
    %c2_21 = arith.constant 2 : index
    %c0_22 = arith.constant 0 : index
    %c0_23 = arith.constant 0 : index
    %27 = vector.load %arg3[%c2_21, %c0_22, %c0_23] : memref<3x8x16xf32, #tpu.memory_space<vmem>>, vector<1x8x16xf32>
    %28 = vector.shape_cast %27 : vector<1x8x16xf32> to vector<8x16xf32>
    %cst_24 = arith.constant dense<0.000000e+00> : vector<8x128xf32>
    %29 = tpu.matmul %28, %22, %cst_24 {dimension_numbers = #tpu.dot_dimension_numbers<[1], [0], [0], [1], [0, 0, 1, 1], [], []>} : vector<8x16xf32>, vector<16x128xf32>, vector<8x128xf32> -> vector<8x128xf32>
    %30 = arith.addf %21, %29 : vector<8x128xf32>
    %c0_25 = arith.constant 0 : index
    %c0_26 = arith.constant 0 : index
    %31 = vector.load %arg4[%c0_25, %c0_26] : memref<8x1xf32, #tpu.memory_space<vmem>>, vector<8x1xf32>
    %32 = vector.broadcast %31 : vector<8x1xf32> to vector<8x128xf32>
    %33 = arith.addf %26, %32 : vector<8x128xf32>
    %c0_27 = arith.constant 0 : index
    %c0_28 = arith.constant 0 : index
    %34 = vector.load %arg5[%c0_27, %c0_28] : memref<8x1xf32, #tpu.memory_space<vmem>>, vector<8x1xf32>
    %35 = vector.broadcast %34 : vector<8x1xf32> to vector<8x128xf32>
    %36 = arith.addf %30, %35 : vector<8x128xf32>
    %37 = arith.negf %36 : vector<8x128xf32>
    %38 = math.exp %37 : vector<8x128xf32>
    %cst_29 = arith.constant 1.000000e+00 : f32
    %39 = vector.broadcast %cst_29 : f32 to vector<8x128xf32>
    %40 = arith.addf %39, %38 : vector<8x128xf32>
    %41 = arith.divf %39, %40 : vector<8x128xf32>
    %42 = arith.mulf %33, %41 : vector<8x128xf32>
    %c0_30 = arith.constant 0 : index
    %c0_31 = arith.constant 0 : index
    %c0_32 = arith.constant 0 : index
    %43 = vector.load %arg6[%c0_30, %c0_31, %c0_32] : memref<1x8x128xf32, #tpu.memory_space<vmem>>, vector<1x8x128xf32>
    %44 = vector.shape_cast %43 : vector<1x8x128xf32> to vector<8x128xf32>
    %45 = vector.shape_cast %42 : vector<8x128xf32> to vector<1x8x128xf32>
    tpu.vector_store %arg6[%c0_30, %c0_31, %c0_32], %45 {strides = array<i32>} : memref<1x8x128xf32, #tpu.memory_space<vmem>>, vector<1x8x128xf32>,
    return
  }
  func.func @transform_0(%arg0: i32) -> (i32, i32, i32) {
    %c0_i32 = arith.constant 0 : i32
    %c0_i32_0 = arith.constant 0 : i32
    %c0_i32_1 = arith.constant 0 : i32
    return %arg0, %c0_i32, %c0_i32_0 : i32, i32, i32
  }
  func.func @transform_1(%arg0: i32) -> (i32, i32, i32) {
    %c0_i32 = arith.constant 0 : i32
    %c0_i32_0 = arith.constant 0 : i32
    %c0_i32_1 = arith.constant 0 : i32
    %c0_i32_2 = arith.constant 0 : i32
    return %c0_i32, %c0_i32_0, %c0_i32_1 : i32, i32, i32
  }
  func.func @transform_2(%arg0: i32) -> (i32, i32, i32) {
    %c0_i32 = arith.constant 0 : i32
    %c0_i32_0 = arith.constant 0 : i32
    %c0_i32_1 = arith.constant 0 : i32
    %c0_i32_2 = arith.constant 0 : i32
    return %c0_i32, %c0_i32_0, %c0_i32_1 : i32, i32, i32
  }
  func.func @transform_3(%arg0: i32) -> (i32, i32) {
    %c0_i32 = arith.constant 0 : i32
    %c0_i32_0 = arith.constant 0 : i32
    %c0_i32_1 = arith.constant 0 : i32
    return %c0_i32, %c0_i32_0 : i32, i32
  }
  func.func @transform_4(%arg0: i32) -> (i32, i32) {
    %c0_i32 = arith.constant 0 : i32
    %c0_i32_0 = arith.constant 0 : i32
    %c0_i32_1 = arith.constant 0 : i32
    return %c0_i32, %c0_i32_0 : i32, i32
  }
  func.func @transform_5(%arg0: i32) -> (i32, i32, i32) {
    %c0_i32 = arith.constant 0 : i32
    %c0_i32_0 = arith.constant 0 : i32
    %c0_i32_1 = arith.constant 0 : i32
    return %arg0, %c0_i32, %c0_i32_0 : i32, i32, i32
  }
}

module attributes {stable_mosaic.version = 11 : i64} {
  func.func @_temporal_gated_kernel(%arg0: i32, %arg1: memref<1x8x160xf32, #tpu.memory_space<vmem>>, %arg2: memref<3x32x8xf32, #tpu.memory_space<vmem>>, %arg3: memref<3x32x8xf32, #tpu.memory_space<vmem>>, %arg4: memref<32x1xf32, #tpu.memory_space<vmem>>, %arg5: memref<32x1xf32, #tpu.memory_space<vmem>>, %arg6: memref<1x32x128xf32, #tpu.memory_space<vmem>>) attributes {dimension_semantics = [#tpu.dimension_semantics<parallel>], iteration_bounds = array<i64: 2>, scalar_prefetch = 0 : i64, scratch_operands = 0 : i64, tpu.core_type = #tpu.core_type<tc>, window_params = [{transform_indices = @transform_0, window_bounds = array<i64: 1, 8, 160>}, {pipeline_mode = #tpu.pipeline_mode<synchronous>, transform_indices = @transform_1, window_bounds = array<i64: 3, 32, 8>}, {pipeline_mode = #tpu.pipeline_mode<synchronous>, transform_indices = @transform_2, window_bounds = array<i64: 3, 32, 8>}, {pipeline_mode = #tpu.pipeline_mode<synchronous>, transform_indices = @transform_3, window_bounds = array<i64: 32, 1>}, {pipeline_mode = #tpu.pipeline_mode<synchronous>, transform_indices = @transform_4, window_bounds = array<i64: 32, 1>}, {transform_indices = @transform_5, window_bounds = array<i64: 1, 32, 128>}]} {
    %c0 = arith.constant 0 : index
    %c0_0 = arith.constant 0 : index
    %c0_1 = arith.constant 0 : index
    %0 = vector.load %arg1[%c0, %c0_0, %c0_1] : memref<1x8x160xf32, #tpu.memory_space<vmem>>, vector<1x8x160xf32>
    %1 = vector.shape_cast %0 : vector<1x8x160xf32> to vector<8x160xf32>
    %cst = arith.constant 0.000000e+00 : f32
    %2 = vector.broadcast %cst : f32 to vector<32x128xf32>
    %cst_2 = arith.constant 0.000000e+00 : f32
    %3 = vector.broadcast %cst_2 : f32 to vector<32x128xf32>
    %4 = vector.extract_strided_slice %1 {offsets = [0, 0], sizes = [8, 128], strides = [1, 1]} : vector<8x160xf32> to vector<8x128xf32>
    %c0_3 = arith.constant 0 : index
    %c0_4 = arith.constant 0 : index
    %c0_5 = arith.constant 0 : index
    %5 = vector.load %arg2[%c0_3, %c0_4, %c0_5] : memref<3x32x8xf32, #tpu.memory_space<vmem>>, vector<1x32x8xf32>
    %6 = vector.shape_cast %5 : vector<1x32x8xf32> to vector<32x8xf32>
    %cst_6 = arith.constant dense<0.000000e+00> : vector<32x128xf32>
    %7 = tpu.matmul %6, %4, %cst_6 {dimension_numbers = #tpu.dot_dimension_numbers<[1], [0], [0], [1], [0, 0, 1, 1], [], []>} : vector<32x8xf32>, vector<8x128xf32>, vector<32x128xf32> -> vector<32x128xf32>
    %8 = arith.addf %2, %7 : vector<32x128xf32>
    %c0_7 = arith.constant 0 : index
    %c0_8 = arith.constant 0 : index
    %c0_9 = arith.constant 0 : index
    %9 = vector.load %arg3[%c0_7, %c0_8, %c0_9] : memref<3x32x8xf32, #tpu.memory_space<vmem>>, vector<1x32x8xf32>
    %10 = vector.shape_cast %9 : vector<1x32x8xf32> to vector<32x8xf32>
    %cst_10 = arith.constant dense<0.000000e+00> : vector<32x128xf32>
    %11 = tpu.matmul %10, %4, %cst_10 {dimension_numbers = #tpu.dot_dimension_numbers<[1], [0], [0], [1], [0, 0, 1, 1], [], []>} : vector<32x8xf32>, vector<8x128xf32>, vector<32x128xf32> -> vector<32x128xf32>
    %12 = arith.addf %3, %11 : vector<32x128xf32>
    %13 = vector.extract_strided_slice %1 {offsets = [0, 16], sizes = [8, 128], strides = [1, 1]} : vector<8x160xf32> to vector<8x128xf32>
    %c1 = arith.constant 1 : index
    %c0_11 = arith.constant 0 : index
    %c0_12 = arith.constant 0 : index
    %14 = vector.load %arg2[%c1, %c0_11, %c0_12] : memref<3x32x8xf32, #tpu.memory_space<vmem>>, vector<1x32x8xf32>
    %15 = vector.shape_cast %14 : vector<1x32x8xf32> to vector<32x8xf32>
    %cst_13 = arith.constant dense<0.000000e+00> : vector<32x128xf32>
    %16 = tpu.matmul %15, %13, %cst_13 {dimension_numbers = #tpu.dot_dimension_numbers<[1], [0], [0], [1], [0, 0, 1, 1], [], []>} : vector<32x8xf32>, vector<8x128xf32>, vector<32x128xf32> -> vector<32x128xf32>
    %17 = arith.addf %8, %16 : vector<32x128xf32>
    %c1_14 = arith.constant 1 : index
    %c0_15 = arith.constant 0 : index
    %c0_16 = arith.constant 0 : index
    %18 = vector.load %arg3[%c1_14, %c0_15, %c0_16] : memref<3x32x8xf32, #tpu.memory_space<vmem>>, vector<1x32x8xf32>
    %19 = vector.shape_cast %18 : vector<1x32x8xf32> to vector<32x8xf32>
    %cst_17 = arith.constant dense<0.000000e+00> : vector<32x128xf32>
    %20 = tpu.matmul %19, %13, %cst_17 {dimension_numbers = #tpu.dot_dimension_numbers<[1], [0], [0], [1], [0, 0, 1, 1], [], []>} : vector<32x8xf32>, vector<8x128xf32>, vector<32x128xf32> -> vector<32x128xf32>
    %21 = arith.addf %12, %20 : vector<32x128xf32>
    %22 = vector.extract_strided_slice %1 {offsets = [0, 32], sizes = [8, 128], strides = [1, 1]} : vector<8x160xf32> to vector<8x128xf32>
    %c2 = arith.constant 2 : index
    %c0_18 = arith.constant 0 : index
    %c0_19 = arith.constant 0 : index
    %23 = vector.load %arg2[%c2, %c0_18, %c0_19] : memref<3x32x8xf32, #tpu.memory_space<vmem>>, vector<1x32x8xf32>
    %24 = vector.shape_cast %23 : vector<1x32x8xf32> to vector<32x8xf32>
    %cst_20 = arith.constant dense<0.000000e+00> : vector<32x128xf32>
    %25 = tpu.matmul %24, %22, %cst_20 {dimension_numbers = #tpu.dot_dimension_numbers<[1], [0], [0], [1], [0, 0, 1, 1], [], []>} : vector<32x8xf32>, vector<8x128xf32>, vector<32x128xf32> -> vector<32x128xf32>
    %26 = arith.addf %17, %25 : vector<32x128xf32>
    %c2_21 = arith.constant 2 : index
    %c0_22 = arith.constant 0 : index
    %c0_23 = arith.constant 0 : index
    %27 = vector.load %arg3[%c2_21, %c0_22, %c0_23] : memref<3x32x8xf32, #tpu.memory_space<vmem>>, vector<1x32x8xf32>
    %28 = vector.shape_cast %27 : vector<1x32x8xf32> to vector<32x8xf32>
    %cst_24 = arith.constant dense<0.000000e+00> : vector<32x128xf32>
    %29 = tpu.matmul %28, %22, %cst_24 {dimension_numbers = #tpu.dot_dimension_numbers<[1], [0], [0], [1], [0, 0, 1, 1], [], []>} : vector<32x8xf32>, vector<8x128xf32>, vector<32x128xf32> -> vector<32x128xf32>
    %30 = arith.addf %21, %29 : vector<32x128xf32>
    %c0_25 = arith.constant 0 : index
    %c0_26 = arith.constant 0 : index
    %31 = vector.load %arg4[%c0_25, %c0_26] : memref<32x1xf32, #tpu.memory_space<vmem>>, vector<32x1xf32>
    %32 = vector.broadcast %31 : vector<32x1xf32> to vector<32x128xf32>
    %33 = arith.addf %26, %32 : vector<32x128xf32>
    %c0_27 = arith.constant 0 : index
    %c0_28 = arith.constant 0 : index
    %34 = vector.load %arg5[%c0_27, %c0_28] : memref<32x1xf32, #tpu.memory_space<vmem>>, vector<32x1xf32>
    %35 = vector.broadcast %34 : vector<32x1xf32> to vector<32x128xf32>
    %36 = arith.addf %30, %35 : vector<32x128xf32>
    %37 = arith.negf %36 : vector<32x128xf32>
    %38 = math.exp %37 : vector<32x128xf32>
    %cst_29 = arith.constant 1.000000e+00 : f32
    %39 = vector.broadcast %cst_29 : f32 to vector<32x128xf32>
    %40 = arith.addf %39, %38 : vector<32x128xf32>
    %41 = arith.divf %39, %40 : vector<32x128xf32>
    %42 = arith.mulf %33, %41 : vector<32x128xf32>
    %c0_30 = arith.constant 0 : index
    %c0_31 = arith.constant 0 : index
    %c0_32 = arith.constant 0 : index
    %43 = vector.load %arg6[%c0_30, %c0_31, %c0_32] : memref<1x32x128xf32, #tpu.memory_space<vmem>>, vector<1x32x128xf32>
    %44 = vector.shape_cast %43 : vector<1x32x128xf32> to vector<32x128xf32>
    %45 = vector.shape_cast %42 : vector<32x128xf32> to vector<1x32x128xf32>
    tpu.vector_store %arg6[%c0_30, %c0_31, %c0_32], %45 {strides = array<i32>} : memref<1x32x128xf32, #tpu.memory_space<vmem>>, vector<1x32x128xf32>,
    return
  }
  func.func @transform_0(%arg0: i32) -> (i32, i32, i32) {
    %c0_i32 = arith.constant 0 : i32
    %c0_i32_0 = arith.constant 0 : i32
    %c0_i32_1 = arith.constant 0 : i32
    return %arg0, %c0_i32, %c0_i32_0 : i32, i32, i32
  }
  func.func @transform_1(%arg0: i32) -> (i32, i32, i32) {
    %c0_i32 = arith.constant 0 : i32
    %c0_i32_0 = arith.constant 0 : i32
    %c0_i32_1 = arith.constant 0 : i32
    %c0_i32_2 = arith.constant 0 : i32
    return %c0_i32, %c0_i32_0, %c0_i32_1 : i32, i32, i32
  }
  func.func @transform_2(%arg0: i32) -> (i32, i32, i32) {
    %c0_i32 = arith.constant 0 : i32
    %c0_i32_0 = arith.constant 0 : i32
    %c0_i32_1 = arith.constant 0 : i32
    %c0_i32_2 = arith.constant 0 : i32
    return %c0_i32, %c0_i32_0, %c0_i32_1 : i32, i32, i32
  }
  func.func @transform_3(%arg0: i32) -> (i32, i32) {
    %c0_i32 = arith.constant 0 : i32
    %c0_i32_0 = arith.constant 0 : i32
    %c0_i32_1 = arith.constant 0 : i32
    return %c0_i32, %c0_i32_0 : i32, i32
  }
  func.func @transform_4(%arg0: i32) -> (i32, i32) {
    %c0_i32 = arith.constant 0 : i32
    %c0_i32_0 = arith.constant 0 : i32
    %c0_i32_1 = arith.constant 0 : i32
    return %c0_i32, %c0_i32_0 : i32, i32
  }
  func.func @transform_5(%arg0: i32) -> (i32, i32, i32) {
    %c0_i32 = arith.constant 0 : i32
    %c0_i32_0 = arith.constant 0 : i32
    %c0_i32_1 = arith.constant 0 : i32
    return %arg0, %c0_i32, %c0_i32_0 : i32, i32, i32
  }
}

module attributes {stable_mosaic.version = 11 : i64} {
  func.func @_bn_nodes_kernel(%arg0: memref<512x16xf32, #tpu.memory_space<vmem>>, %arg1: memref<1x16xf32, #tpu.memory_space<vmem>>, %arg2: memref<1x16xf32, #tpu.memory_space<vmem>>, %arg3: memref<512x16xf32, #tpu.memory_space<vmem>>) attributes {dimension_semantics = [], scalar_prefetch = 0 : i64, scratch_operands = 0 : i64, tpu.core_type = #tpu.core_type<tc>} {
    %c0 = arith.constant 0 : index
    %c0_0 = arith.constant 0 : index
    %0 = vector.load %arg0[%c0, %c0_0] : memref<512x16xf32, #tpu.memory_space<vmem>>, vector<512x16xf32>
    %cst = arith.constant dense<0.000000e+00> : vector<16xf32>
    %1 = vector.multi_reduction <add>, %0, %cst [0] : vector<512x16xf32> to vector<16xf32>
    %2 = vector.shape_cast %1 : vector<16xf32> to vector<1x16xf32>
    %cst_1 = arith.constant 5.120000e+02 : f32
    %3 = vector.broadcast %cst_1 : f32 to vector<1x16xf32>
    %4 = arith.divf %2, %3 : vector<1x16xf32>
    %5 = vector.broadcast %4 : vector<1x16xf32> to vector<512x16xf32>
    %6 = arith.subf %0, %5 : vector<512x16xf32>
    %7 = arith.mulf %6, %6 : vector<512x16xf32>
    %cst_2 = arith.constant dense<0.000000e+00> : vector<16xf32>
    %8 = vector.multi_reduction <add>, %7, %cst_2 [0] : vector<512x16xf32> to vector<16xf32>
    %9 = vector.shape_cast %8 : vector<16xf32> to vector<1x16xf32>
    %cst_3 = arith.constant 5.120000e+02 : f32
    %10 = vector.broadcast %cst_3 : f32 to vector<1x16xf32>
    %11 = arith.divf %9, %10 : vector<1x16xf32>
    %12 = vector.broadcast %4 : vector<1x16xf32> to vector<512x16xf32>
    %13 = arith.subf %0, %12 : vector<512x16xf32>
    %cst_4 = arith.constant 9.99999974E-6 : f32
    %14 = vector.broadcast %cst_4 : f32 to vector<1x16xf32>
    %15 = arith.addf %11, %14 : vector<1x16xf32>
    %16 = math.rsqrt %15 : vector<1x16xf32>
    %17 = vector.broadcast %16 : vector<1x16xf32> to vector<512x16xf32>
    %18 = arith.mulf %13, %17 : vector<512x16xf32>
    %c0_5 = arith.constant 0 : index
    %c0_6 = arith.constant 0 : index
    %19 = vector.load %arg1[%c0_5, %c0_6] : memref<1x16xf32, #tpu.memory_space<vmem>>, vector<1x16xf32>
    %20 = vector.broadcast %19 : vector<1x16xf32> to vector<512x16xf32>
    %21 = arith.mulf %18, %20 : vector<512x16xf32>
    %c0_7 = arith.constant 0 : index
    %c0_8 = arith.constant 0 : index
    %22 = vector.load %arg2[%c0_7, %c0_8] : memref<1x16xf32, #tpu.memory_space<vmem>>, vector<1x16xf32>
    %23 = vector.broadcast %22 : vector<1x16xf32> to vector<512x16xf32>
    %24 = arith.addf %21, %23 : vector<512x16xf32>
    %c0_9 = arith.constant 0 : index
    %c0_10 = arith.constant 0 : index
    %25 = vector.load %arg3[%c0_9, %c0_10] : memref<512x16xf32, #tpu.memory_space<vmem>>, vector<512x16xf32>
    tpu.vector_store %arg3[%c0_9, %c0_10], %24 {strides = array<i32>} : memref<512x16xf32, #tpu.memory_space<vmem>>, vector<512x16xf32>,
    return
  }
}

module attributes {stable_mosaic.version = 11 : i64} {
  func.func @_temporal_gated_kernel(%arg0: i32, %arg1: memref<1x8x544xf32, #tpu.memory_space<vmem>>, %arg2: memref<3x1x8xf32, #tpu.memory_space<vmem>>, %arg3: memref<3x1x8xf32, #tpu.memory_space<vmem>>, %arg4: memref<1x1xf32, #tpu.memory_space<vmem>>, %arg5: memref<1x1xf32, #tpu.memory_space<vmem>>, %arg6: memref<1x1x512xf32, #tpu.memory_space<vmem>>) attributes {dimension_semantics = [#tpu.dimension_semantics<parallel>], iteration_bounds = array<i64: 2>, scalar_prefetch = 0 : i64, scratch_operands = 0 : i64, tpu.core_type = #tpu.core_type<tc>, window_params = [{transform_indices = @transform_0, window_bounds = array<i64: 1, 8, 544>}, {pipeline_mode = #tpu.pipeline_mode<synchronous>, transform_indices = @transform_1, window_bounds = array<i64: 3, 1, 8>}, {pipeline_mode = #tpu.pipeline_mode<synchronous>, transform_indices = @transform_2, window_bounds = array<i64: 3, 1, 8>}, {pipeline_mode = #tpu.pipeline_mode<synchronous>, transform_indices = @transform_3, window_bounds = array<i64: 1, 1>}, {pipeline_mode = #tpu.pipeline_mode<synchronous>, transform_indices = @transform_4, window_bounds = array<i64: 1, 1>}, {transform_indices = @transform_5, window_bounds = array<i64: 1, 1, 512>}]} {
    %c0 = arith.constant 0 : index
    %c0_0 = arith.constant 0 : index
    %c0_1 = arith.constant 0 : index
    %0 = vector.load %arg1[%c0, %c0_0, %c0_1] : memref<1x8x544xf32, #tpu.memory_space<vmem>>, vector<1x8x544xf32>
    %1 = vector.shape_cast %0 : vector<1x8x544xf32> to vector<8x544xf32>
    %cst = arith.constant 0.000000e+00 : f32
    %2 = vector.broadcast %cst : f32 to vector<1x512xf32>
    %cst_2 = arith.constant 0.000000e+00 : f32
    %3 = vector.broadcast %cst_2 : f32 to vector<1x512xf32>
    %4 = vector.extract_strided_slice %1 {offsets = [0, 0], sizes = [8, 512], strides = [1, 1]} : vector<8x544xf32> to vector<8x512xf32>
    %c0_3 = arith.constant 0 : index
    %c0_4 = arith.constant 0 : index
    %c0_5 = arith.constant 0 : index
    %5 = vector.load %arg2[%c0_3, %c0_4, %c0_5] : memref<3x1x8xf32, #tpu.memory_space<vmem>>, vector<1x1x8xf32>
    %6 = vector.shape_cast %5 : vector<1x1x8xf32> to vector<1x8xf32>
    %cst_6 = arith.constant dense<0.000000e+00> : vector<1x512xf32>
    %7 = tpu.matmul %6, %4, %cst_6 {dimension_numbers = #tpu.dot_dimension_numbers<[1], [0], [0], [1], [0, 0, 1, 1], [], []>} : vector<1x8xf32>, vector<8x512xf32>, vector<1x512xf32> -> vector<1x512xf32>
    %8 = arith.addf %2, %7 : vector<1x512xf32>
    %c0_7 = arith.constant 0 : index
    %c0_8 = arith.constant 0 : index
    %c0_9 = arith.constant 0 : index
    %9 = vector.load %arg3[%c0_7, %c0_8, %c0_9] : memref<3x1x8xf32, #tpu.memory_space<vmem>>, vector<1x1x8xf32>
    %10 = vector.shape_cast %9 : vector<1x1x8xf32> to vector<1x8xf32>
    %cst_10 = arith.constant dense<0.000000e+00> : vector<1x512xf32>
    %11 = tpu.matmul %10, %4, %cst_10 {dimension_numbers = #tpu.dot_dimension_numbers<[1], [0], [0], [1], [0, 0, 1, 1], [], []>} : vector<1x8xf32>, vector<8x512xf32>, vector<1x512xf32> -> vector<1x512xf32>
    %12 = arith.addf %3, %11 : vector<1x512xf32>
    %13 = vector.extract_strided_slice %1 {offsets = [0, 16], sizes = [8, 512], strides = [1, 1]} : vector<8x544xf32> to vector<8x512xf32>
    %c1 = arith.constant 1 : index
    %c0_11 = arith.constant 0 : index
    %c0_12 = arith.constant 0 : index
    %14 = vector.load %arg2[%c1, %c0_11, %c0_12] : memref<3x1x8xf32, #tpu.memory_space<vmem>>, vector<1x1x8xf32>
    %15 = vector.shape_cast %14 : vector<1x1x8xf32> to vector<1x8xf32>
    %cst_13 = arith.constant dense<0.000000e+00> : vector<1x512xf32>
    %16 = tpu.matmul %15, %13, %cst_13 {dimension_numbers = #tpu.dot_dimension_numbers<[1], [0], [0], [1], [0, 0, 1, 1], [], []>} : vector<1x8xf32>, vector<8x512xf32>, vector<1x512xf32> -> vector<1x512xf32>
    %17 = arith.addf %8, %16 : vector<1x512xf32>
    %c1_14 = arith.constant 1 : index
    %c0_15 = arith.constant 0 : index
    %c0_16 = arith.constant 0 : index
    %18 = vector.load %arg3[%c1_14, %c0_15, %c0_16] : memref<3x1x8xf32, #tpu.memory_space<vmem>>, vector<1x1x8xf32>
    %19 = vector.shape_cast %18 : vector<1x1x8xf32> to vector<1x8xf32>
    %cst_17 = arith.constant dense<0.000000e+00> : vector<1x512xf32>
    %20 = tpu.matmul %19, %13, %cst_17 {dimension_numbers = #tpu.dot_dimension_numbers<[1], [0], [0], [1], [0, 0, 1, 1], [], []>} : vector<1x8xf32>, vector<8x512xf32>, vector<1x512xf32> -> vector<1x512xf32>
    %21 = arith.addf %12, %20 : vector<1x512xf32>
    %22 = vector.extract_strided_slice %1 {offsets = [0, 32], sizes = [8, 512], strides = [1, 1]} : vector<8x544xf32> to vector<8x512xf32>
    %c2 = arith.constant 2 : index
    %c0_18 = arith.constant 0 : index
    %c0_19 = arith.constant 0 : index
    %23 = vector.load %arg2[%c2, %c0_18, %c0_19] : memref<3x1x8xf32, #tpu.memory_space<vmem>>, vector<1x1x8xf32>
    %24 = vector.shape_cast %23 : vector<1x1x8xf32> to vector<1x8xf32>
    %cst_20 = arith.constant dense<0.000000e+00> : vector<1x512xf32>
    %25 = tpu.matmul %24, %22, %cst_20 {dimension_numbers = #tpu.dot_dimension_numbers<[1], [0], [0], [1], [0, 0, 1, 1], [], []>} : vector<1x8xf32>, vector<8x512xf32>, vector<1x512xf32> -> vector<1x512xf32>
    %26 = arith.addf %17, %25 : vector<1x512xf32>
    %c2_21 = arith.constant 2 : index
    %c0_22 = arith.constant 0 : index
    %c0_23 = arith.constant 0 : index
    %27 = vector.load %arg3[%c2_21, %c0_22, %c0_23] : memref<3x1x8xf32, #tpu.memory_space<vmem>>, vector<1x1x8xf32>
    %28 = vector.shape_cast %27 : vector<1x1x8xf32> to vector<1x8xf32>
    %cst_24 = arith.constant dense<0.000000e+00> : vector<1x512xf32>
    %29 = tpu.matmul %28, %22, %cst_24 {dimension_numbers = #tpu.dot_dimension_numbers<[1], [0], [0], [1], [0, 0, 1, 1], [], []>} : vector<1x8xf32>, vector<8x512xf32>, vector<1x512xf32> -> vector<1x512xf32>
    %30 = arith.addf %21, %29 : vector<1x512xf32>
    %c0_25 = arith.constant 0 : index
    %c0_26 = arith.constant 0 : index
    %31 = vector.load %arg4[%c0_25, %c0_26] : memref<1x1xf32, #tpu.memory_space<vmem>>, vector<1x1xf32>
    %32 = vector.broadcast %31 : vector<1x1xf32> to vector<1x512xf32>
    %33 = arith.addf %26, %32 : vector<1x512xf32>
    %c0_27 = arith.constant 0 : index
    %c0_28 = arith.constant 0 : index
    %34 = vector.load %arg5[%c0_27, %c0_28] : memref<1x1xf32, #tpu.memory_space<vmem>>, vector<1x1xf32>
    %35 = vector.broadcast %34 : vector<1x1xf32> to vector<1x512xf32>
    %36 = arith.addf %30, %35 : vector<1x512xf32>
    %37 = arith.negf %36 : vector<1x512xf32>
    %38 = math.exp %37 : vector<1x512xf32>
    %cst_29 = arith.constant 1.000000e+00 : f32
    %39 = vector.broadcast %cst_29 : f32 to vector<1x512xf32>
    %40 = arith.addf %39, %38 : vector<1x512xf32>
    %41 = arith.divf %39, %40 : vector<1x512xf32>
    %42 = arith.mulf %33, %41 : vector<1x512xf32>
    %c0_30 = arith.constant 0 : index
    %c0_31 = arith.constant 0 : index
    %c0_32 = arith.constant 0 : index
    %43 = vector.load %arg6[%c0_30, %c0_31, %c0_32] : memref<1x1x512xf32, #tpu.memory_space<vmem>>, vector<1x1x512xf32>
    %44 = vector.shape_cast %43 : vector<1x1x512xf32> to vector<1x512xf32>
    %45 = vector.shape_cast %42 : vector<1x512xf32> to vector<1x1x512xf32>
    tpu.vector_store %arg6[%c0_30, %c0_31, %c0_32], %45 {strides = array<i32>} : memref<1x1x512xf32, #tpu.memory_space<vmem>>, vector<1x1x512xf32>,
    return
  }
  func.func @transform_0(%arg0: i32) -> (i32, i32, i32) {
    %c0_i32 = arith.constant 0 : i32
    %c0_i32_0 = arith.constant 0 : i32
    %c0_i32_1 = arith.constant 0 : i32
    return %arg0, %c0_i32, %c0_i32_0 : i32, i32, i32
  }
  func.func @transform_1(%arg0: i32) -> (i32, i32, i32) {
    %c0_i32 = arith.constant 0 : i32
    %c0_i32_0 = arith.constant 0 : i32
    %c0_i32_1 = arith.constant 0 : i32
    %c0_i32_2 = arith.constant 0 : i32
    return %c0_i32, %c0_i32_0, %c0_i32_1 : i32, i32, i32
  }
  func.func @transform_2(%arg0: i32) -> (i32, i32, i32) {
    %c0_i32 = arith.constant 0 : i32
    %c0_i32_0 = arith.constant 0 : i32
    %c0_i32_1 = arith.constant 0 : i32
    %c0_i32_2 = arith.constant 0 : i32
    return %c0_i32, %c0_i32_0, %c0_i32_1 : i32, i32, i32
  }
  func.func @transform_3(%arg0: i32) -> (i32, i32) {
    %c0_i32 = arith.constant 0 : i32
    %c0_i32_0 = arith.constant 0 : i32
    %c0_i32_1 = arith.constant 0 : i32
    return %c0_i32, %c0_i32_0 : i32, i32
  }
  func.func @transform_4(%arg0: i32) -> (i32, i32) {
    %c0_i32 = arith.constant 0 : i32
    %c0_i32_0 = arith.constant 0 : i32
    %c0_i32_1 = arith.constant 0 : i32
    return %c0_i32, %c0_i32_0 : i32, i32
  }
  func.func @transform_5(%arg0: i32) -> (i32, i32, i32) {
    %c0_i32 = arith.constant 0 : i32
    %c0_i32_0 = arith.constant 0 : i32
    %c0_i32_1 = arith.constant 0 : i32
    return %arg0, %c0_i32, %c0_i32_0 : i32, i32, i32
  }
}

module attributes {stable_mosaic.version = 11 : i64} {
  func.func @_conv1x1_kernel(%arg0: i32, %arg1: memref<1x32x16xf32, #tpu.memory_space<vmem>>, %arg2: memref<2x32xf32, #tpu.memory_space<vmem>>, %arg3: memref<2x1xf32, #tpu.memory_space<vmem>>, %arg4: memref<1x2x16xf32, #tpu.memory_space<vmem>>) attributes {dimension_semantics = [#tpu.dimension_semantics<parallel>], iteration_bounds = array<i64: 2>, scalar_prefetch = 0 : i64, scratch_operands = 0 : i64, tpu.core_type = #tpu.core_type<tc>, window_params = [{transform_indices = @transform_0, window_bounds = array<i64: 1, 32, 16>}, {pipeline_mode = #tpu.pipeline_mode<synchronous>, transform_indices = @transform_1, window_bounds = array<i64: 2, 32>}, {pipeline_mode = #tpu.pipeline_mode<synchronous>, transform_indices = @transform_2, window_bounds = array<i64: 2, 1>}, {transform_indices = @transform_3, window_bounds = array<i64: 1, 2, 16>}]} {
    %c0 = arith.constant 0 : index
    %c0_0 = arith.constant 0 : index
    %0 = vector.load %arg2[%c0, %c0_0] : memref<2x32xf32, #tpu.memory_space<vmem>>, vector<2x32xf32>
    %c0_1 = arith.constant 0 : index
    %c0_2 = arith.constant 0 : index
    %c0_3 = arith.constant 0 : index
    %1 = vector.load %arg1[%c0_1, %c0_2, %c0_3] : memref<1x32x16xf32, #tpu.memory_space<vmem>>, vector<1x32x16xf32>
    %2 = vector.shape_cast %1 : vector<1x32x16xf32> to vector<32x16xf32>
    %cst = arith.constant dense<0.000000e+00> : vector<2x16xf32>
    %3 = tpu.matmul %0, %2, %cst {dimension_numbers = #tpu.dot_dimension_numbers<[1], [0], [0], [1], [0, 0, 1, 1], [], []>} : vector<2x32xf32>, vector<32x16xf32>, vector<2x16xf32> -> vector<2x16xf32>
    %c0_4 = arith.constant 0 : index
    %c0_5 = arith.constant 0 : index
    %4 = vector.load %arg3[%c0_4, %c0_5] : memref<2x1xf32, #tpu.memory_space<vmem>>, vector<2x1xf32>
    %5 = vector.broadcast %4 : vector<2x1xf32> to vector<2x16xf32>
    %6 = arith.addf %3, %5 : vector<2x16xf32>
    %c0_6 = arith.constant 0 : index
    %c0_7 = arith.constant 0 : index
    %c0_8 = arith.constant 0 : index
    %7 = vector.load %arg4[%c0_6, %c0_7, %c0_8] : memref<1x2x16xf32, #tpu.memory_space<vmem>>, vector<1x2x16xf32>
    %8 = vector.shape_cast %7 : vector<1x2x16xf32> to vector<2x16xf32>
    %9 = vector.shape_cast %6 : vector<2x16xf32> to vector<1x2x16xf32>
    tpu.vector_store %arg4[%c0_6, %c0_7, %c0_8], %9 {strides = array<i32>} : memref<1x2x16xf32, #tpu.memory_space<vmem>>, vector<1x2x16xf32>,
    return
  }
  func.func @transform_0(%arg0: i32) -> (i32, i32, i32) {
    %c0_i32 = arith.constant 0 : i32
    %c0_i32_0 = arith.constant 0 : i32
    %c0_i32_1 = arith.constant 0 : i32
    return %arg0, %c0_i32, %c0_i32_0 : i32, i32, i32
  }
  func.func @transform_1(%arg0: i32) -> (i32, i32) {
    %c0_i32 = arith.constant 0 : i32
    %c0_i32_0 = arith.constant 0 : i32
    %c0_i32_1 = arith.constant 0 : i32
    return %c0_i32, %c0_i32_0 : i32, i32
  }
  func.func @transform_2(%arg0: i32) -> (i32, i32) {
    %c0_i32 = arith.constant 0 : i32
    %c0_i32_0 = arith.constant 0 : i32
    %c0_i32_1 = arith.constant 0 : i32
    return %c0_i32, %c0_i32_0 : i32, i32
  }
  func.func @transform_3(%arg0: i32) -> (i32, i32, i32) {
    %c0_i32 = arith.constant 0 : i32
    %c0_i32_0 = arith.constant 0 : i32
    %c0_i32_1 = arith.constant 0 : i32
    return %arg0, %c0_i32, %c0_i32_0 : i32, i32, i32
  }
}

</mosaic_0001>

<llo_original>
// kernel: stgcn_forward.13
$region0: #{stgcn_forward.13}
  #allocation0 [shape = 'u32[]', space=smem, size = 0x4, offset = 0x4, fixed_abs, tag = 'smem constant byte address 0x4 - core index']
  #allocation1 [shape = 'u32[72,128]{1,0:T(1,128)}', space=vmem, size = 0x9000, scoped, tag = 'internal scratch']
  %s0 = inlined_call_operand.vmem [shape: f32[128,16], index: 0, kind: input, shape index: {}]
  %s1 = inlined_call_operand.vmem [shape: f32[16,80], index: 1, kind: input, shape index: {}]
  %s2 = inlined_call_operand.vmem [shape: f32[128,80], index: 2, kind: output, shape index: {}]
  %s3 = sld [smem:[#allocation0]]
  $region41: #{stgcn_forward.13} parent=0
    _
  %s5 = ssub.s32 1, %s3
  %s6 = scalar_select 0, %s5, %s3
  loop: start=0, step=1, limit=4
  $region2: #{stgcn_forward.13} parent=0 // loop_pre_header
    _
  $region3: #{stgcn_forward.13} parent=0 // loop_header
    %s8 = sphi 0, %s12
    %p9 = scmp.ge.s32.totalorder %s8, 4
    %s18 = sphi 0, %s20
    %s21 = sphi 0, %s18
    %s22 = sphi 0, %s21
    %s38 = sphi 0, %s22
    %s42 = sphi 0, %s42
    %s44 = sphi 0, %s42
    %s45 = sphi 0, %s44
    %s59 = sphi 0, %s45
    %s65 = sphi 0, %s67
    %s68 = sphi 0, %s65
    %s69 = sphi 0, %s68
    %s85 = sphi 0, %s69
  $region4: #{stgcn_forward.13} parent=0 // loop_header_branch
    %11 = sbr.rel (%p9) target = $region8
  $region5: #{stgcn_forward.13} parent=0 // loop_body
    %s13 = ssub.s32 %s8, 1
    %s14 = ssub.s32 %s8, 2
    %s15 = sadd.s32 %s8, 1
    %s16 = ssub.s32 %s8, %s15
    %p17 = scmp.eq.s32.totalorder %s16, 0
    %s19 = sadd.s32 %s18, 1
    %s20 = scalar_select %p17, %s18, %s19
    %p23 = pneg %p17
    %p24 = scmp.eq.s32.totalorder %s8, 1
    %p25 = por %p23, %p24
    %p26 = scmp.ne.s32.totalorder %s18, %s21
    %p27 = scmp.eq.s32.totalorder %s8, 0
    %p28 = por %p26, %p27
    %p29 = scmp.ne.s32.totalorder %s18, %s21
    %p30 = scmp.eq.s32.totalorder %s13, 1
    %p31 = por %p29, %p30
    %p32 = scmp.ne.s32.totalorder %s21, %s22
    %p33 = scmp.eq.s32.totalorder %s13, 0
    %p34 = por %p32, %p33
    %p35 = scmp.ne.s32.totalorder %s21, %s22
    %p36 = scmp.eq.s32.totalorder %s14, 1
    %p37 = por %p35, %p36
    %p39 = scmp.ne.s32.totalorder %s22, %s38
    %p40 = scmp.eq.s32.totalorder %s14, 0
    %p41 = por %p39, %p40
    %s43 = sadd.s32 %s42, 1
    %p46 = scmp.eq.s32.totalorder %s8, 1
    %p47 = scmp.ne.s32.totalorder %s42, %s44
    %p48 = scmp.eq.s32.totalorder %s8, 0
    %p49 = por %p47, %p48
    %p50 = scmp.ne.s32.totalorder %s42, %s44
    %p51 = scmp.eq.s32.totalorder %s13, 1
    %p52 = por %p50, %p51
    %p53 = scmp.ne.s32.totalorder %s44, %s45
    %p54 = scmp.eq.s32.totalorder %s13, 0
    %p55 = por %p53, %p54
    %p56 = scmp.ne.s32.totalorder %s44, %s45
    %p57 = scmp.eq.s32.totalorder %s14, 1
    %p58 = por %p56, %p57
    %p60 = scmp.ne.s32.totalorder %s45, %s59
    %p61 = scmp.eq.s32.totalorder %s14, 0
    %p62 = por %p60, %p61
    %s63 = ssub.s32 %s8, %s15
    %p64 = scmp.eq.s32.totalorder %s63, 0
    %s66 = sadd.s32 %s65, 1
    %s67 = scalar_select %p64, %s65, %s66
    %p70 = pneg %p64
    %p71 = scmp.eq.s32.totalorder %s8, 1
    %p72 = por %p70, %p71
    %p73 = scmp.ne.s32.totalorder %s65, %s68
    %p74 = scmp.eq.s32.totalorder %s8, 0
    %p75 = por %p73, %p74
    %p76 = scmp.ne.s32.totalorder %s65, %s68
    %p77 = scmp.eq.s32.totalorder %s13, 1
    %p78 = por %p76, %p77
    %p79 = scmp.ne.s32.totalorder %s68, %s69
    %p80 = scmp.eq.s32.totalorder %s13, 0
    %p81 = por %p79, %p80
    %p82 = scmp.ne.s32.totalorder %s68, %s69
    %p83 = scmp.eq.s32.totalorder %s14, 1
    %p84 = por %p82, %p83
    %p86 = scmp.ne.s32.totalorder %s69, %s85
    %p87 = scmp.eq.s32.totalorder %s14, 0
    %p88 = por %p86, %p87
    %p89 = scmp.le.s32.totalorder 1, %s8
    %p90 = scmp.lt.s32.totalorder %s8, 3
    %p91 = pnand %p89, %p90
    %p92 = pneg %p91
    // Predicated region
    $region9: #{stgcn_forward.13} parent=5 // pred_check
      _
    $region10: #{stgcn_forward.13} parent=5 // pred_check_branch
      %94 = sbr.rel (%p91) target = $region12
    $region11: #{stgcn_forward.13} parent=5 // pred_region
      %s95 = ssub.s32 %s8, 1
      // Predicated region
      $region13: #{stgcn_forward.13} parent=11 // pred_check
        %p96 = pneg %p55
      $region14: #{stgcn_forward.13} parent=11 // pred_check_branch
        %98 = sbr.rel (%p96) target = $region16
      $region15: #{stgcn_forward.13} parent=11 // pred_region
        _
      $region16: #{stgcn_forward.13} parent=11 // pred_fallthru
        _
    $region12: #{stgcn_forward.13} parent=5 // pred_fallthru
      _
    %p99 = scmp.lt.s32.totalorder %s8, 2
    // Predicated region
    $region17: #{stgcn_forward.13} parent=5 // pred_check
      %p100 = pneg %p99
    $region18: #{stgcn_forward.13} parent=5 // pred_check_branch
      %102 = sbr.rel (%p100) target = $region20
    $region19: #{stgcn_forward.13} parent=5 // pred_region
      // Predicated region
      $region21: #{stgcn_forward.13} parent=19 // pred_check
        %p103 = pneg %p28
      $region22: #{stgcn_forward.13} parent=19 // pred_check_branch
        %105 = sbr.rel (%p103) target = $region24
      $region23: #{stgcn_forward.13} parent=19 // pred_region
        %s106 = smul.u32 8, %s8
        %p107 = scmp.lt.s32.totalorder %s106, 15
        %s108 = scalar_select %p107, %s106, 15
        %s109 = smul.addr %s108, 8
        %s110 = scalar_lea.vmem %s0, %s109
        %s111 = smul.u32 8, %s8
      $region24: #{stgcn_forward.13} parent=19 // pred_fallthru
        _
    $region20: #{stgcn_forward.13} parent=5 // pred_fallthru
      _
    %p112 = scmp.le.s32.totalorder 1, %s8
    %p113 = scmp.lt.s32.totalorder %s8, 3
    %p114 = pnand %p112, %p113
    %p115 = pneg %p114
    // Predicated region
    $region25: #{stgcn_forward.13} parent=5 // pred_check
      _
    $region26: #{stgcn_forward.13} parent=5 // pred_check_branch
      %117 = sbr.rel (%p114) target = $region28
    $region27: #{stgcn_forward.13} parent=5 // pred_region
      %s118 = ssub.s32 %s8, 1
      %s119 = smul.u32 8, %s13
      %p120 = scmp.lt.s32.totalorder %s119, 15
      %s121 = scalar_select %p120, %s119, 15
      %s122 = smul.addr %s121, 8
      %s123 = scalar_lea.vmem %s0, %s122
      %p124 = pneg %p34
      %p125 = pneg %p31
      %p126 = pneg %p55
      %p127 = pneg %p52
      %p128 = pneg %p81
      %p129 = pneg %p78
      %s130 = smul.u32 8, %s13
      %p131 = scmp.lt.s32.totalorder %s130, 15
      %s132 = scalar_select %p131, %s130, 15
      %s133 = smul.addr %s132, 8
      %s134 = scalar_lea.vmem %s2, %s133
      %s135 = smul.u32 8, %s13
      %p136 = scmp.lt.s32.totalorder %s135, 15
      %s137 = scalar_select %p136, %s135, 15
      %s138 = smul.addr %s137, 8
      %s139 = scalar_lea.vmem %s0, %s138
      %s140 = smul.u32 8, %s13
      %s141 = smul.u32 8, %s13
      %p142 = scmp.lt.s32.totalorder %s141, 15
      %s143 = scalar_select %p142, %s141, 15
      %s144 = smul.addr %s143, 8
      %s145 = scalar_lea.vmem %s2, %s144
      %s146 = smul.u32 8, %s13
      %v147 = vld [vmem:[%s139] sm:$0xff]
      %v148 = vld [vmem:[%s139 + $0x8] sm:$0xff]
      %v149 = vld [vmem:[%s139 + $0x10] sm:$0xff]
      %v150 = vld [vmem:[%s139 + $0x18] sm:$0xff]
      %v151 = vld [vmem:[%s139 + $0x20] sm:$0xff]
      %v152 = vld [vmem:[%s139 + $0x28] sm:$0xff]
      %v153 = vld [vmem:[%s139 + $0x30] sm:$0xff]
      %v154 = vld [vmem:[%s139 + $0x38] sm:$0xff]
      %v155 = vld [vmem:[%s1] sm:$0xff]
      %v156 = vld [vmem:[%s1 + $0x8] sm:$0xff]
      %vm157 = vcmask 130048
      %v159 = vsel %vm157, %v147, 0
      %v162 = vsel %vm157, %v148, 0
      %v165 = vsel %vm157, %v149, 0
      %v168 = vsel %vm157, %v150, 0
      %v171 = vsel %vm157, %v151, 0
      %v174 = vsel %vm157, %v152, 0
      %v177 = vsel %vm157, %v153, 0
      %v180 = vsel %vm157, %v154, 0
      %182 = vmatpush.msra.mxu0 0.0
      %183 = vmatpush.msra.mxu0 0.0
      %184 = vmatpush.msra.mxu0 0.0
      %185 = vmatpush.msra.mxu0 0.0
      %186 = vmatpush.msra.mxu0 0.0
      %187 = vmatpush.msra.mxu0 0.0
      %188 = vmatpush.msra.mxu0 0.0
      %189 = vmatpush.msra.mxu0 0.0
      %190 = vmatpush.msra.mxu0 0.0
      %191 = vmatpush.msra.mxu0 0.0
      %192 = vmatpush.msra.mxu0 0.0
      %193 = vmatpush.msra.mxu0 0.0
      %194 = vmatpush.msra.mxu0 0.0
      %195 = vmatpush.msra.mxu0 0.0
      %196 = vmatpush.msra.mxu0 %v156
      %197 = vmatpush.msra.mxu0 %v155
      %198 = vmatmul.f32.gmra.mxu0 %v159
      %v199 = vpop.f32.mrf.mxu0
      %v200 = vadd.f32 0.0, %v199
      %201 = vmatmul.f32.gmra.mxu0 %v162
      %v202 = vpop.f32.mrf.mxu0
      %v203 = vadd.f32 0.0, %v202
      %204 = vmatmul.f32.gmra.mxu0 %v165
      %v205 = vpop.f32.mrf.mxu0
      %v206 = vadd.f32 0.0, %v205
      %207 = vmatmul.f32.gmra.mxu0 %v168
      %v208 = vpop.f32.mrf.mxu0
      %v209 = vadd.f32 0.0, %v208
      %210 = vmatmul.f32.gmra.mxu0 %v171
      %v211 = vpop.f32.mrf.mxu0
      %v212 = vadd.f32 0.0, %v211
      %213 = vmatmul.f32.gmra.mxu0 %v174
      %v214 = vpop.f32.mrf.mxu0
      %v215 = vadd.f32 0.0, %v214
      %216 = vmatmul.f32.gmra.mxu0 %v177
      %v217 = vpop.f32.mrf.mxu0
      %v218 = vadd.f32 0.0, %v217
      %219 = vmatmul.f32.gmra.mxu0 %v180
      %v220 = vpop.f32.mrf.mxu0
      %v221 = vadd.f32 0.0, %v220
      %222 = vdwg.mxu0
      %vm223 = vcmask 654336
      %224 = vst.msk [vmem:[%s145] sm:$0xff] %vm223, %v200
      %225 = vst.msk [vmem:[%s145 + $0x8] sm:$0xff] %vm223, %v203
      %226 = vst.msk [vmem:[%s145 + $0x10] sm:$0xff] %vm223, %v206
      %227 = vst.msk [vmem:[%s145 + $0x18] sm:$0xff] %vm223, %v209
      %228 = vst.msk [vmem:[%s145 + $0x20] sm:$0xff] %vm223, %v212
      %229 = vst.msk [vmem:[%s145 + $0x28] sm:$0xff] %vm223, %v215
      %230 = vst.msk [vmem:[%s145 + $0x30] sm:$0xff] %vm223, %v218
      %231 = vst.msk [vmem:[%s145 + $0x38] sm:$0xff] %vm223, %v221
      %s232 = smul.u32 8, %s13
      %p233 = scmp.lt.s32.totalorder %s232, 15
      %s234 = scalar_select %p233, %s232, 15
      %s235 = smul.addr %s234, 8
      %s236 = scalar_lea.vmem %s2, %s235
      // Predicated region
      $region29: #{stgcn_forward.13} parent=27 // pred_check
        %p237 = pneg %p78
      $region30: #{stgcn_forward.13} parent=27 // pred_check_branch
        %239 = sbr.rel (%p237) target = $region32
      $region31: #{stgcn_forward.13} parent=27 // pred_region
        %s240 = smul.u32 8, %s13
      $region32: #{stgcn_forward.13} parent=27 // pred_fallthru
        _
    $region28: #{stgcn_forward.13} parent=5 // pred_fallthru
      _
    %p241 = scmp.le.s32.totalorder 2, %s8
    // Predicated region
    $region33: #{stgcn_forward.13} parent=5 // pred_check
      %p242 = pneg %p241
    $region34: #{stgcn_forward.13} parent=5 // pred_check_branch
      %244 = sbr.rel (%p242) target = $region36
    $region35: #{stgcn_forward.13} parent=5 // pred_region
      %s245 = ssub.s32 %s8, 2
      // Predicated region
      $region37: #{stgcn_forward.13} parent=35 // pred_check
        %p246 = pneg %p84
      $region38: #{stgcn_forward.13} parent=35 // pred_check_branch
        %248 = sbr.rel (%p246) target = $region40
      $region39: #{stgcn_forward.13} parent=35 // pred_region
        %s249 = smul.u32 8, %s14
        %p250 = scmp.lt.s32.totalorder %s249, 15
        %s251 = scalar_select %p250, %s249, 15
        %s252 = smul.addr %s251, 8
        %s253 = scalar_lea.vmem %s2, %s252
      $region40: #{stgcn_forward.13} parent=35 // pred_fallthru
        _
    $region36: #{stgcn_forward.13} parent=5 // pred_fallthru
      _
  $region6: #{stgcn_forward.13} parent=0 // loop_footer
    %s12 = sadd.s32 1, %s8
  $region7: #{stgcn_forward.13} parent=0 // loop_footer_branch
    %7 = sbr.rel target = $region3
  $region8: #{stgcn_forward.13} parent=0 // loop_exit
    _

// kernel: stgcn_forward.12
$region0: #{stgcn_forward.12}
  #allocation0 [shape = 'u32[]', space=smem, size = 0x4, offset = 0x4, fixed_abs, tag = 'smem constant byte address 0x4 - core index']
  #allocation1 [shape = 'u32[72,128]{1,0:T(1,128)}', space=vmem, size = 0x9000, scoped, tag = 'internal scratch']
  %s0 = inlined_call_operand.vmem [shape: f32[2,4,160], index: 0, kind: input, shape index: {}]
  %s1 = inlined_call_operand.vmem [shape: f32[3,8,4], index: 1, kind: input, shape index: {}]
  %s2 = inlined_call_operand.vmem [shape: f32[3,8,4], index: 2, kind: input, shape index: {}]
  %s3 = inlined_call_operand.vmem [shape: f32[8,1], index: 3, kind: input, shape index: {}]
  %s4 = inlined_call_operand.vmem [shape: f32[8,1], index: 4, kind: input, shape index: {}]
  %s5 = inlined_call_operand.vmem [shape: f32[2,8,128], index: 5, kind: output, shape index: {}]
  %s6 = sld [smem:[#allocation0]]
  $region53: #{stgcn_forward.12} parent=0
    _
  %s8 = ssub.s32 1, %s6
  %s9 = scalar_select 0, %s8, %s6
  loop: start=0, step=1, limit=4
  $region2: #{stgcn_forward.12} parent=0 // loop_pre_header
    _
  $region3: #{stgcn_forward.12} parent=0 // loop_header
    %s11 = sphi 0, %s15
    %p12 = scmp.ge.s32.totalorder %s11, 4
    %s21 = sphi 0, %s23
    %s24 = sphi 0, %s21
    %s25 = sphi 0, %s24
    %s41 = sphi 0, %s25
    %s45 = sphi 0, %s45
    %s47 = sphi 0, %s45
    %s48 = sphi 0, %s47
    %s62 = sphi 0, %s48
    %s66 = sphi 0, %s66
    %s68 = sphi 0, %s66
    %s69 = sphi 0, %s68
    %s83 = sphi 0, %s69
    %s87 = sphi 0, %s87
    %s89 = sphi 0, %s87
    %s90 = sphi 0, %s89
    %s104 = sphi 0, %s90
    %s108 = sphi 0, %s108
    %s110 = sphi 0, %s108
    %s111 = sphi 0, %s110
    %s125 = sphi 0, %s111
    %s131 = sphi 0, %s133
    %s134 = sphi 0, %s131
    %s135 = sphi 0, %s134
    %s151 = sphi 0, %s135
  $region4: #{stgcn_forward.12} parent=0 // loop_header_branch
    %14 = sbr.rel (%p12) target = $region8
  $region5: #{stgcn_forward.12} parent=0 // loop_body
    %s16 = ssub.s32 %s11, 1
    %s17 = ssub.s32 %s11, 2
    %s18 = sadd.s32 %s11, 1
    %s19 = ssub.s32 %s11, %s18
    %p20 = scmp.eq.s32.totalorder %s19, 0
    %s22 = sadd.s32 %s21, 1
    %s23 = scalar_select %p20, %s21, %s22
    %p26 = pneg %p20
    %p27 = scmp.eq.s32.totalorder %s11, 1
    %p28 = por %p26, %p27
    %p29 = scmp.ne.s32.totalorder %s21, %s24
    %p30 = scmp.eq.s32.totalorder %s11, 0
    %p31 = por %p29, %p30
    %p32 = scmp.ne.s32.totalorder %s21, %s24
    %p33 = scmp.eq.s32.totalorder %s16, 1
    %p34 = por %p32, %p33
    %p35 = scmp.ne.s32.totalorder %s24, %s25
    %p36 = scmp.eq.s32.totalorder %s16, 0
    %p37 = por %p35, %p36
    %p38 = scmp.ne.s32.totalorder %s24, %s25
    %p39 = scmp.eq.s32.totalorder %s17, 1
    %p40 = por %p38, %p39
    %p42 = scmp.ne.s32.totalorder %s25, %s41
    %p43 = scmp.eq.s32.totalorder %s17, 0
    %p44 = por %p42, %p43
    %s46 = sadd.s32 %s45, 1
    %p49 = scmp.eq.s32.totalorder %s11, 1
    %p50 = scmp.ne.s32.totalorder %s45, %s47
    %p51 = scmp.eq.s32.totalorder %s11, 0
    %p52 = por %p50, %p51
    %p53 = scmp.ne.s32.totalorder %s45, %s47
    %p54 = scmp.eq.s32.totalorder %s16, 1
    %p55 = por %p53, %p54
    %p56 = scmp.ne.s32.totalorder %s47, %s48
    %p57 = scmp.eq.s32.totalorder %s16, 0
    %p58 = por %p56, %p57
    %p59 = scmp.ne.s32.totalorder %s47, %s48
    %p60 = scmp.eq.s32.totalorder %s17, 1
    %p61 = por %p59, %p60
    %p63 = scmp.ne.s32.totalorder %s48, %s62
    %p64 = scmp.eq.s32.totalorder %s17, 0
    %p65 = por %p63, %p64
    %s67 = sadd.s32 %s66, 1
    %p70 = scmp.eq.s32.totalorder %s11, 1
    %p71 = scmp.ne.s32.totalorder %s66, %s68
    %p72 = scmp.eq.s32.totalorder %s11, 0
    %p73 = por %p71, %p72
    %p74 = scmp.ne.s32.totalorder %s66, %s68
    %p75 = scmp.eq.s32.totalorder %s16, 1
    %p76 = por %p74, %p75
    %p77 = scmp.ne.s32.totalorder %s68, %s69
    %p78 = scmp.eq.s32.totalorder %s16, 0
    %p79 = por %p77, %p78
    %p80 = scmp.ne.s32.totalorder %s68, %s69
    %p81 = scmp.eq.s32.totalorder %s17, 1
    %p82 = por %p80, %p81
    %p84 = scmp.ne.s32.totalorder %s69, %s83
    %p85 = scmp.eq.s32.totalorder %s17, 0
    %p86 = por %p84, %p85
    %s88 = sadd.s32 %s87, 1
    %p91 = scmp.eq.s32.totalorder %s11, 1
    %p92 = scmp.ne.s32.totalorder %s87, %s89
    %p93 = scmp.eq.s32.totalorder %s11, 0
    %p94 = por %p92, %p93
    %p95 = scmp.ne.s32.totalorder %s87, %s89
    %p96 = scmp.eq.s32.totalorder %s16, 1
    %p97 = por %p95, %p96
    %p98 = scmp.ne.s32.totalorder %s89, %s90
    %p99 = scmp.eq.s32.totalorder %s16, 0
    %p100 = por %p98, %p99
    %p101 = scmp.ne.s32.totalorder %s89, %s90
    %p102 = scmp.eq.s32.totalorder %s17, 1
    %p103 = por %p101, %p102
    %p105 = scmp.ne.s32.totalorder %s90, %s104
    %p106 = scmp.eq.s32.totalorder %s17, 0
    %p107 = por %p105, %p106
    %s109 = sadd.s32 %s108, 1
    %p112 = scmp.eq.s32.totalorder %s11, 1
    %p113 = scmp.ne.s32.totalorder %s108, %s110
    %p114 = scmp.eq.s32.totalorder %s11, 0
    %p115 = por %p113, %p114
    %p116 = scmp.ne.s32.totalorder %s108, %s110
    %p117 = scmp.eq.s32.totalorder %s16, 1
    %p118 = por %p116, %p117
    %p119 = scmp.ne.s32.totalorder %s110, %s111
    %p120 = scmp.eq.s32.totalorder %s16, 0
    %p121 = por %p119, %p120
    %p122 = scmp.ne.s32.totalorder %s110, %s111
    %p123 = scmp.eq.s32.totalorder %s17, 1
    %p124 = por %p122, %p123
    %p126 = scmp.ne.s32.totalorder %s111, %s125
    %p127 = scmp.eq.s32.totalorder %s17, 0
    %p128 = por %p126, %p127
    %s129 = ssub.s32 %s11, %s18
    %p130 = scmp.eq.s32.totalorder %s129, 0
    %s132 = sadd.s32 %s131, 1
    %s133 = scalar_select %p130, %s131, %s132
    %p136 = pneg %p130
    %p137 = scmp.eq.s32.totalorder %s11, 1
    %p138 = por %p136, %p137
    %p139 = scmp.ne.s32.totalorder %s131, %s134
    %p140 = scmp.eq.s32.totalorder %s11, 0
    %p141 = por %p139, %p140
    %p142 = scmp.ne.s32.totalorder %s131, %s134
    %p143 = scmp.eq.s32.totalorder %s16, 1
    %p144 = por %p142, %p143
    %p145 = scmp.ne.s32.totalorder %s134, %s135
    %p146 = scmp.eq.s32.totalorder %s16, 0
    %p147 = por %p145, %p146
    %p148 = scmp.ne.s32.totalorder %s134, %s135
    %p149 = scmp.eq.s32.totalorder %s17, 1
    %p150 = por %p148, %p149
    %p152 = scmp.ne.s32.totalorder %s135, %s151
    %p153 = scmp.eq.s32.totalorder %s17, 0
    %p154 = por %p152, %p153
    %p155 = scmp.le.s32.totalorder 1, %s11
    %p156 = scmp.lt.s32.totalorder %s11, 3
    %p157 = pnand %p155, %p156
    %p158 = pneg %p157
    // Predicated region
    $region9: #{stgcn_forward.12} parent=5 // pred_check
      _
    $region10: #{stgcn_forward.12} parent=5 // pred_check_branch
      %160 = sbr.rel (%p157) target = $region12
    $region11: #{stgcn_forward.12} parent=5 // pred_region
      %s161 = ssub.s32 %s11, 1
      // Predicated region
      $region13: #{stgcn_forward.12} parent=11 // pred_check
        %p162 = pneg %p58
      $region14: #{stgcn_forward.12} parent=11 // pred_check_branch
        %164 = sbr.rel (%p162) target = $region16
      $region15: #{stgcn_forward.12} parent=11 // pred_region
        _
      $region16: #{stgcn_forward.12} parent=11 // pred_fallthru
        _
      // Predicated region
      $region17: #{stgcn_forward.12} parent=11 // pred_check
        %p165 = pneg %p79
      $region18: #{stgcn_forward.12} parent=11 // pred_check_branch
        %167 = sbr.rel (%p165) target = $region20
      $region19: #{stgcn_forward.12} parent=11 // pred_region
        _
      $region20: #{stgcn_forward.12} parent=11 // pred_fallthru
        _
      // Predicated region
      $region21: #{stgcn_forward.12} parent=11 // pred_check
        %p168 = pneg %p100
      $region22: #{stgcn_forward.12} parent=11 // pred_check_branch
        %170 = sbr.rel (%p168) target = $region24
      $region23: #{stgcn_forward.12} parent=11 // pred_region
        _
      $region24: #{stgcn_forward.12} parent=11 // pred_fallthru
        _
      // Predicated region
      $region25: #{stgcn_forward.12} parent=11 // pred_check
        %p171 = pneg %p121
      $region26: #{stgcn_forward.12} parent=11 // pred_check_branch
        %173 = sbr.rel (%p171) target = $region28
      $region27: #{stgcn_forward.12} parent=11 // pred_region
        _
      $region28: #{stgcn_forward.12} parent=11 // pred_fallthru
        _
    $region12: #{stgcn_forward.12} parent=5 // pred_fallthru
      _
    %p174 = scmp.lt.s32.totalorder %s11, 2
    // Predicated region
    $region29: #{stgcn_forward.12} parent=5 // pred_check
      %p175 = pneg %p174
    $region30: #{stgcn_forward.12} parent=5 // pred_check_branch
      %177 = sbr.rel (%p175) target = $region32
    $region31: #{stgcn_forward.12} parent=5 // pred_region
      // Predicated region
      $region33: #{stgcn_forward.12} parent=31 // pred_check
        %p178 = pneg %p31
      $region34: #{stgcn_forward.12} parent=31 // pred_check_branch
        %180 = sbr.rel (%p178) target = $region36
      $region35: #{stgcn_forward.12} parent=31 // pred_region
        %p181 = scmp.lt.s32.totalorder %s11, 1
        %s182 = scalar_select %p181, %s11, 1
        %s183 = smul.addr %s182, 2
        %s184 = smul.addr %s183, 4
        %s185 = scalar_lea.vmem %s0, %s184
      $region36: #{stgcn_forward.12} parent=31 // pred_fallthru
        _
    $region32: #{stgcn_forward.12} parent=5 // pred_fallthru
      _
    %p186 = scmp.le.s32.totalorder 1, %s11
    %p187 = scmp.lt.s32.totalorder %s11, 3
    %p188 = pnand %p186, %p187
    %p189 = pneg %p188
    // Predicated region
    $region37: #{stgcn_forward.12} parent=5 // pred_check
      _
    $region38: #{stgcn_forward.12} parent=5 // pred_check_branch
      %191 = sbr.rel (%p188) target = $region40
    $region39: #{stgcn_forward.12} parent=5 // pred_region
      %s192 = ssub.s32 %s11, 1
      %p193 = scmp.lt.s32.totalorder %s16, 1
      %s194 = scalar_select %p193, %s16, 1
      %s195 = smul.addr %s194, 2
      %s196 = smul.addr %s195, 4
      %s197 = scalar_lea.vmem %s0, %s196
      %p198 = pneg %p37
      %p199 = pneg %p34
      %p200 = pneg %p58
      %p201 = pneg %p55
      %p202 = pneg %p79
      %p203 = pneg %p76
      %p204 = pneg %p100
      %p205 = pneg %p97
      %p206 = pneg %p121
      %p207 = pneg %p118
      %p208 = pneg %p147
      %p209 = pneg %p144
      %p210 = scmp.lt.s32.totalorder %s16, 1
      %s211 = scalar_select %p210, %s16, 1
      %s212 = smul.addr %s211, 8
      %s213 = scalar_lea.vmem %s5, %s212
      %p214 = scmp.lt.s32.totalorder %s16, 1
      %s215 = scalar_select %p214, %s16, 1
      %s216 = smul.addr %s215, 2
      %s217 = smul.addr %s216, 4
      %s218 = scalar_lea.vmem %s0, %s217
      %p219 = scmp.lt.s32.totalorder %s16, 1
      %s220 = scalar_select %p219, %s16, 1
      %s221 = smul.addr %s220, 8
      %s222 = scalar_lea.vmem %s5, %s221
      %v223 = vld [vmem:[%s218] sm:$0xff]
      %v224 = vld [vmem:[%s1] sm:$0xff]
      %v225 = vld [vmem:[%s2] sm:$0xff]
      %s226 = scalar_lea.vmem %s1, 8
      %v227 = vld [vmem:[%s226] sm:$0xff]
      %229 = vst [vmem:[#allocation1] ss:$2 sm:$0xff] %v223
      %v230 = vld.sshfl [vmem:[#allocation1] sm:$0xff pattern:$0x75316420]
      %v231 = vld.sshfl [vmem:[#allocation1 + $0x8] sm:$0xff pattern:$0x75316420]
      %232 = vrot.lane.b32.xlu0 %v230, 112
      %v233 = vpop.permute.xlu0 %232
      %234 = vrot.lane.b32.xlu0 %v231, 112
      %v235 = vpop.permute.xlu0 %234
      %vm236 = vcmask 916480
      %v237 = vsel %vm236, %v233, %v235
      %vm238 = vcmask 31744
      %v240 = vsel %vm238, %v227, 0
      %vm242 = vcmask 1043456
      %v243 = vsel %vm242, %v237, 0
      %245 = vmatpush.msra.mxu0 0.0
      %246 = vmatpush.msra.mxu0 0.0
      %247 = vmatpush.msra.mxu0 0.0
      %248 = vmatpush.msra.mxu0 0.0
      %249 = vmatpush.msra.mxu0 0.0
      %250 = vmatpush.msra.mxu0 0.0
      %251 = vmatpush.msra.mxu0 0.0
      %252 = vmatpush.msra.mxu0 0.0
      %253 = vmatpush.msra.mxu0 0.0
      %254 = vmatpush.msra.mxu0 0.0
      %255 = vmatpush.msra.mxu0 0.0
      %256 = vmatpush.msra.mxu0 0.0
      %257 = vmatpush.msra.mxu0 0.0
      %258 = vmatpush.msra.mxu0 0.0
      %259 = vmatpush.msra.mxu0 0.0
      %260 = vmatpush.msra.mxu0 %v243
      %261 = vmatmul.f32.gmra.mxu0 %v240
      %v262 = vpop.f32.mrf.mxu0
      %v263 = vadd.f32 0.0, %v262
      %264 = vdwg.mxu0
      %v266 = vsel %vm238, %v224, 0
      %v268 = vsel %vm242, %v223, 0
      %270 = vmatpush.msra.mxu0 0.0
      %271 = vmatpush.msra.mxu0 0.0
      %272 = vmatpush.msra.mxu0 0.0
      %273 = vmatpush.msra.mxu0 0.0
      %274 = vmatpush.msra.mxu0 0.0
      %275 = vmatpush.msra.mxu0 0.0
      %276 = vmatpush.msra.mxu0 0.0
      %277 = vmatpush.msra.mxu0 0.0
      %278 = vmatpush.msra.mxu0 0.0
      %279 = vmatpush.msra.mxu0 0.0
      %280 = vmatpush.msra.mxu0 0.0
      %281 = vmatpush.msra.mxu0 0.0
      %282 = vmatpush.msra.mxu0 0.0
      %283 = vmatpush.msra.mxu0 0.0
      %284 = vmatpush.msra.mxu0 0.0
      %285 = vmatpush.msra.mxu0 %v268
      %286 = vmatmul.f32.gmra.mxu0 %v266
      %v287 = vpop.f32.mrf.mxu0
      %v288 = vadd.f32 %v263, %v287
      %289 = vdwg.mxu0
      %s290 = scalar_lea.vmem %s2, 8
      %v291 = vld [vmem:[%s290] sm:$0xff]
      %292 = vst [vmem:[#allocation1] ss:$2 sm:$0xff] %v223
      %v293 = vld.sshfl [vmem:[#allocation1] sm:$0xff pattern:$0x75316420]
      %v294 = vld.sshfl [vmem:[#allocation1 + $0x8] sm:$0xff pattern:$0x75316420]
      %295 = vrot.lane.b32.xlu0 %v293, 112
      %v296 = vpop.permute.xlu0 %295
      %297 = vrot.lane.b32.xlu0 %v294, 112
      %v298 = vpop.permute.xlu0 %297
      %v299 = vsel %vm236, %v296, %v298
      %v301 = vsel %vm238, %v291, 0
      %v303 = vsel %vm242, %v299, 0
      %305 = vmatpush.msra.mxu0 0.0
      %306 = vmatpush.msra.mxu0 0.0
      %307 = vmatpush.msra.mxu0 0.0
      %308 = vmatpush.msra.mxu0 0.0
      %309 = vmatpush.msra.mxu0 0.0
      %310 = vmatpush.msra.mxu0 0.0
      %311 = vmatpush.msra.mxu0 0.0
      %312 = vmatpush.msra.mxu0 0.0
      %313 = vmatpush.msra.mxu0 0.0
      %314 = vmatpush.msra.mxu0 0.0
      %315 = vmatpush.msra.mxu0 0.0
      %316 = vmatpush.msra.mxu0 0.0
      %317 = vmatpush.msra.mxu0 0.0
      %318 = vmatpush.msra.mxu0 0.0
      %319 = vmatpush.msra.mxu0 0.0
      %320 = vmatpush.msra.mxu0 %v303
      %321 = vmatmul.f32.gmra.mxu0 %v301
      %v322 = vpop.f32.mrf.mxu0
      %v323 = vadd.f32 0.0, %v322
      %324 = vdwg.mxu0
      %v326 = vsel %vm238, %v225, 0
      %328 = vmatpush.msra.mxu0 0.0
      %329 = vmatpush.msra.mxu0 0.0
      %330 = vmatpush.msra.mxu0 0.0
      %331 = vmatpush.msra.mxu0 0.0
      %332 = vmatpush.msra.mxu0 0.0
      %333 = vmatpush.msra.mxu0 0.0
      %334 = vmatpush.msra.mxu0 0.0
      %335 = vmatpush.msra.mxu0 0.0
      %336 = vmatpush.msra.mxu0 0.0
      %337 = vmatpush.msra.mxu0 0.0
      %338 = vmatpush.msra.mxu0 0.0
      %339 = vmatpush.msra.mxu0 0.0
      %340 = vmatpush.msra.mxu0 0.0
      %341 = vmatpush.msra.mxu0 0.0
      %342 = vmatpush.msra.mxu0 0.0
      %343 = vmatpush.msra.mxu0 %v268
      %344 = vmatmul.f32.gmra.mxu0 %v326
      %v345 = vpop.f32.mrf.mxu0
      %v346 = vadd.f32 %v323, %v345
      %347 = vdwg.mxu0
      %s348 = scalar_lea.vmem %s1, 16
      %v349 = vld [vmem:[%s348] sm:$0xff]
      %350 = vst [vmem:[#allocation1] ss:$2 sm:$0xff] %v223
      %v351 = vld.sshfl [vmem:[#allocation1] sm:$0xff pattern:$0x75316420]
      %v352 = vld.sshfl [vmem:[#allocation1 + $0x8] sm:$0xff pattern:$0x75316420]
      %353 = vrot.lane.b32.xlu0 %v351, 96
      %v354 = vpop.permute.xlu0 %353
      %355 = vrot.lane.b32.xlu0 %v352, 96
      %v356 = vpop.permute.xlu0 %355
      %vm357 = vcmask 785408
      %v358 = vsel %vm357, %v354, %v356
      %v360 = vsel %vm238, %v349, 0
      %v362 = vsel %vm242, %v358, 0
      %364 = vmatpush.msra.mxu0 0.0
      %365 = vmatpush.msra.mxu0 0.0
      %366 = vmatpush.msra.mxu0 0.0
      %367 = vmatpush.msra.mxu0 0.0
      %368 = vmatpush.msra.mxu0 0.0
      %369 = vmatpush.msra.mxu0 0.0
      %370 = vmatpush.msra.mxu0 0.0
      %371 = vmatpush.msra.mxu0 0.0
      %372 = vmatpush.msra.mxu0 0.0
      %373 = vmatpush.msra.mxu0 0.0
      %374 = vmatpush.msra.mxu0 0.0
      %375 = vmatpush.msra.mxu0 0.0
      %376 = vmatpush.msra.mxu0 0.0
      %377 = vmatpush.msra.mxu0 0.0
      %378 = vmatpush.msra.mxu0 0.0
      %379 = vmatpush.msra.mxu0 %v362
      %380 = vmatmul.f32.gmra.mxu0 %v360
      %v381 = vpop.f32.mrf.mxu0
      %v382 = vadd.f32 0.0, %v381
      %383 = vdwg.mxu0
      %v384 = vadd.f32 %v288, %v382
      %s385 = scalar_lea.vmem %s2, 16
      %v386 = vld [vmem:[%s385] sm:$0xff]
      %387 = vst [vmem:[#allocation1] ss:$2 sm:$0xff] %v223
      %v388 = vld.sshfl [vmem:[#allocation1] sm:$0xff pattern:$0x75316420]
      %v389 = vld.sshfl [vmem:[#allocation1 + $0x8] sm:$0xff pattern:$0x75316420]
      %390 = vrot.lane.b32.xlu0 %v388, 96
      %v391 = vpop.permute.xlu0 %390
      %392 = vrot.lane.b32.xlu0 %v389, 96
      %v393 = vpop.permute.xlu0 %392
      %v394 = vsel %vm357, %v391, %v393
      %v396 = vsel %vm238, %v386, 0
      %v398 = vsel %vm242, %v394, 0
      %400 = vmatpush.msra.mxu0 0.0
      %401 = vmatpush.msra.mxu0 0.0
      %402 = vmatpush.msra.mxu0 0.0
      %403 = vmatpush.msra.mxu0 0.0
      %404 = vmatpush.msra.mxu0 0.0
      %405 = vmatpush.msra.mxu0 0.0
      %406 = vmatpush.msra.mxu0 0.0
      %407 = vmatpush.msra.mxu0 0.0
      %408 = vmatpush.msra.mxu0 0.0
      %409 = vmatpush.msra.mxu0 0.0
      %410 = vmatpush.msra.mxu0 0.0
      %411 = vmatpush.msra.mxu0 0.0
      %412 = vmatpush.msra.mxu0 0.0
      %413 = vmatpush.msra.mxu0 0.0
      %414 = vmatpush.msra.mxu0 0.0
      %415 = vmatpush.msra.mxu0 %v398
      %416 = vmatmul.f32.gmra.mxu0 %v396
      %v417 = vpop.f32.mrf.mxu0
      %v418 = vadd.f32 0.0, %v417
      %419 = vdwg.mxu0
      %v420 = vadd.f32 %v346, %v418
      %v421 = vld [vmem:[%s3] sm:$0xff]
      %423 = vset.pattern.permute.xlu0 0
      %424 = vperm.xlu0 %423, %v421
      %v425 = vpop.permute.xlu0 %424
      %v427 = vadd.f32 %v384, %v425
      %v428 = vld [vmem:[%s4] sm:$0xff]
      %430 = vset.pattern.permute.xlu0 0
      %431 = vperm.xlu0 %430, %v428
      %v432 = vpop.permute.xlu0 %431
      %v434 = vadd.f32 %v420, %v432
      %v435 = vxor.u32 %v434, 2147483648
      %v436 = vmul.f32 %v435, 1.442695
      %v437 = vpow.pop %v436
      %v438 = vadd.f32 %v437, 1.0
      %v439 = vrcp.pop %v438
      %v440 = vmul.f32 %v438, %v439
      %v441 = vsub.f32 1.0, %v440
      %v442 = vmul.f32 %v439, %v441
      %v443 = vadd.f32 %v439, %v442
      %vm444 = vweird.f32 %v438
      %vm445 = vweird.f32 %v439
      %vm446 = vmor %vm444, %vm445
      %v447 = vsel %vm446, %v439, %v443
      %v448 = vand.u32 2147483647, %v438
      %vm449 = vcmp.eq.f32.partialorder %v448, 8.507059e+37
      %v450 = vand.u32 %v438, 2147483648
      %v451 = vor.u32 1.1754944e-38, %v450
      %v452 = vsel %vm449, %v451, %v447
      %v453 = vmul.f32 1.0, %v452
      %v454 = vmul.f32 %v427, %v453
      %455 = vst [vmem:[%s222] sm:$0xff] %v454
      %p456 = scmp.lt.s32.totalorder %s16, 1
      %s457 = scalar_select %p456, %s16, 1
      %s458 = smul.addr %s457, 8
      %s459 = scalar_lea.vmem %s5, %s458
      // Predicated region
      $region41: #{stgcn_forward.12} parent=39 // pred_check
        %p460 = pneg %p144
      $region42: #{stgcn_forward.12} parent=39 // pred_check_branch
        %462 = sbr.rel (%p460) target = $region44
      $region43: #{stgcn_forward.12} parent=39 // pred_region
        _
      $region44: #{stgcn_forward.12} parent=39 // pred_fallthru
        _
    $region40: #{stgcn_forward.12} parent=5 // pred_fallthru
      _
    %p463 = scmp.le.s32.totalorder 2, %s11
    // Predicated region
    $region45: #{stgcn_forward.12} parent=5 // pred_check
      %p464 = pneg %p463
    $region46: #{stgcn_forward.12} parent=5 // pred_check_branch
      %466 = sbr.rel (%p464) target = $region48
    $region47: #{stgcn_forward.12} parent=5 // pred_region
      %s467 = ssub.s32 %s11, 2
      // Predicated region
      $region49: #{stgcn_forward.12} parent=47 // pred_check
        %p468 = pneg %p150
      $region50: #{stgcn_forward.12} parent=47 // pred_check_branch
        %470 = sbr.rel (%p468) target = $region52
      $region51: #{stgcn_forward.12} parent=47 // pred_region
        %p471 = scmp.lt.s32.totalorder %s17, 1
        %s472 = scalar_select %p471, %s17, 1
        %s473 = smul.addr %s472, 8
        %s474 = scalar_lea.vmem %s5, %s473
      $region52: #{stgcn_forward.12} parent=47 // pred_fallthru
        _
    $region48: #{stgcn_forward.12} parent=5 // pred_fallthru
      _
  $region6: #{stgcn_forward.12} parent=0 // loop_footer
    %s15 = sadd.s32 1, %s11
  $region7: #{stgcn_forward.12} parent=0 // loop_footer_branch
    %10 = sbr.rel target = $region3
  $region8: #{stgcn_forward.12} parent=0 // loop_exit
    _

// kernel: stgcn_forward.14
$region0: #{stgcn_forward.14}
  #allocation0 [shape = 'u32[]', space=smem, size = 0x4, offset = 0x4, fixed_abs, tag = 'smem constant byte address 0x4 - core index']
  #allocation1 [shape = 'u32[72,128]{1,0:T(1,128)}', space=vmem, size = 0x9000, scoped, tag = 'internal scratch']
  %s0 = inlined_call_operand.vmem [shape: f32[256,40], index: 0, kind: input, shape index: {}]
  %s1 = inlined_call_operand.vmem [shape: f32[40,8], index: 1, kind: input, shape index: {}]
  %s2 = inlined_call_operand.vmem [shape: f32[256,8], index: 2, kind: input, shape index: {}]
  %s3 = inlined_call_operand.vmem [shape: f32[256,8], index: 3, kind: output, shape index: {}]
  %s4 = sld [smem:[#allocation0]]
  $region45: #{stgcn_forward.14} parent=0
    _
  %s6 = ssub.s32 1, %s4
  %s7 = scalar_select 0, %s6, %s4
  loop: start=0, step=1, limit=4
  $region2: #{stgcn_forward.14} parent=0 // loop_pre_header
    _
  $region3: #{stgcn_forward.14} parent=0 // loop_header
    %s9 = sphi 0, %s13
    %p10 = scmp.ge.s32.totalorder %s9, 4
    %s19 = sphi 0, %s21
    %s22 = sphi 0, %s19
    %s23 = sphi 0, %s22
    %s39 = sphi 0, %s23
    %s43 = sphi 0, %s43
    %s45 = sphi 0, %s43
    %s46 = sphi 0, %s45
    %s60 = sphi 0, %s46
    %s66 = sphi 0, %s68
    %s69 = sphi 0, %s66
    %s70 = sphi 0, %s69
    %s86 = sphi 0, %s70
    %s92 = sphi 0, %s94
    %s95 = sphi 0, %s92
    %s96 = sphi 0, %s95
    %s112 = sphi 0, %s96
  $region4: #{stgcn_forward.14} parent=0 // loop_header_branch
    %12 = sbr.rel (%p10) target = $region8
  $region5: #{stgcn_forward.14} parent=0 // loop_body
    %s14 = ssub.s32 %s9, 1
    %s15 = ssub.s32 %s9, 2
    %s16 = sadd.s32 %s9, 1
    %s17 = ssub.s32 %s9, %s16
    %p18 = scmp.eq.s32.totalorder %s17, 0
    %s20 = sadd.s32 %s19, 1
    %s21 = scalar_select %p18, %s19, %s20
    %p24 = pneg %p18
    %p25 = scmp.eq.s32.totalorder %s9, 1
    %p26 = por %p24, %p25
    %p27 = scmp.ne.s32.totalorder %s19, %s22
    %p28 = scmp.eq.s32.totalorder %s9, 0
    %p29 = por %p27, %p28
    %p30 = scmp.ne.s32.totalorder %s19, %s22
    %p31 = scmp.eq.s32.totalorder %s14, 1
    %p32 = por %p30, %p31
    %p33 = scmp.ne.s32.totalorder %s22, %s23
    %p34 = scmp.eq.s32.totalorder %s14, 0
    %p35 = por %p33, %p34
    %p36 = scmp.ne.s32.totalorder %s22, %s23
    %p37 = scmp.eq.s32.totalorder %s15, 1
    %p38 = por %p36, %p37
    %p40 = scmp.ne.s32.totalorder %s23, %s39
    %p41 = scmp.eq.s32.totalorder %s15, 0
    %p42 = por %p40, %p41
    %s44 = sadd.s32 %s43, 1
    %p47 = scmp.eq.s32.totalorder %s9, 1
    %p48 = scmp.ne.s32.totalorder %s43, %s45
    %p49 = scmp.eq.s32.totalorder %s9, 0
    %p50 = por %p48, %p49
    %p51 = scmp.ne.s32.totalorder %s43, %s45
    %p52 = scmp.eq.s32.totalorder %s14, 1
    %p53 = por %p51, %p52
    %p54 = scmp.ne.s32.totalorder %s45, %s46
    %p55 = scmp.eq.s32.totalorder %s14, 0
    %p56 = por %p54, %p55
    %p57 = scmp.ne.s32.totalorder %s45, %s46
    %p58 = scmp.eq.s32.totalorder %s15, 1
    %p59 = por %p57, %p58
    %p61 = scmp.ne.s32.totalorder %s46, %s60
    %p62 = scmp.eq.s32.totalorder %s15, 0
    %p63 = por %p61, %p62
    %s64 = ssub.s32 %s9, %s16
    %p65 = scmp.eq.s32.totalorder %s64, 0
    %s67 = sadd.s32 %s66, 1
    %s68 = scalar_select %p65, %s66, %s67
    %p71 = pneg %p65
    %p72 = scmp.eq.s32.totalorder %s9, 1
    %p73 = por %p71, %p72
    %p74 = scmp.ne.s32.totalorder %s66, %s69
    %p75 = scmp.eq.s32.totalorder %s9, 0
    %p76 = por %p74, %p75
    %p77 = scmp.ne.s32.totalorder %s66, %s69
    %p78 = scmp.eq.s32.totalorder %s14, 1
    %p79 = por %p77, %p78
    %p80 = scmp.ne.s32.totalorder %s69, %s70
    %p81 = scmp.eq.s32.totalorder %s14, 0
    %p82 = por %p80, %p81
    %p83 = scmp.ne.s32.totalorder %s69, %s70
    %p84 = scmp.eq.s32.totalorder %s15, 1
    %p85 = por %p83, %p84
    %p87 = scmp.ne.s32.totalorder %s70, %s86
    %p88 = scmp.eq.s32.totalorder %s15, 0
    %p89 = por %p87, %p88
    %s90 = ssub.s32 %s9, %s16
    %p91 = scmp.eq.s32.totalorder %s90, 0
    %s93 = sadd.s32 %s92, 1
    %s94 = scalar_select %p91, %s92, %s93
    %p97 = pneg %p91
    %p98 = scmp.eq.s32.totalorder %s9, 1
    %p99 = por %p97, %p98
    %p100 = scmp.ne.s32.totalorder %s92, %s95
    %p101 = scmp.eq.s32.totalorder %s9, 0
    %p102 = por %p100, %p101
    %p103 = scmp.ne.s32.totalorder %s92, %s95
    %p104 = scmp.eq.s32.totalorder %s14, 1
    %p105 = por %p103, %p104
    %p106 = scmp.ne.s32.totalorder %s95, %s96
    %p107 = scmp.eq.s32.totalorder %s14, 0
    %p108 = por %p106, %p107
    %p109 = scmp.ne.s32.totalorder %s95, %s96
    %p110 = scmp.eq.s32.totalorder %s15, 1
    %p111 = por %p109, %p110
    %p113 = scmp.ne.s32.totalorder %s96, %s112
    %p114 = scmp.eq.s32.totalorder %s15, 0
    %p115 = por %p113, %p114
    %p116 = scmp.le.s32.totalorder 1, %s9
    %p117 = scmp.lt.s32.totalorder %s9, 3
    %p118 = pnand %p116, %p117
    %p119 = pneg %p118
    // Predicated region
    $region9: #{stgcn_forward.14} parent=5 // pred_check
      _
    $region10: #{stgcn_forward.14} parent=5 // pred_check_branch
      %121 = sbr.rel (%p118) target = $region12
    $region11: #{stgcn_forward.14} parent=5 // pred_region
      %s122 = ssub.s32 %s9, 1
      // Predicated region
      $region13: #{stgcn_forward.14} parent=11 // pred_check
        %p123 = pneg %p56
      $region14: #{stgcn_forward.14} parent=11 // pred_check_branch
        %125 = sbr.rel (%p123) target = $region16
      $region15: #{stgcn_forward.14} parent=11 // pred_region
        _
      $region16: #{stgcn_forward.14} parent=11 // pred_fallthru
        _
    $region12: #{stgcn_forward.14} parent=5 // pred_fallthru
      _
    %p126 = scmp.lt.s32.totalorder %s9, 2
    // Predicated region
    $region17: #{stgcn_forward.14} parent=5 // pred_check
      %p127 = pneg %p126
    $region18: #{stgcn_forward.14} parent=5 // pred_check_branch
      %129 = sbr.rel (%p127) target = $region20
    $region19: #{stgcn_forward.14} parent=5 // pred_region
      // Predicated region
      $region21: #{stgcn_forward.14} parent=19 // pred_check
        %p130 = pneg %p29
      $region22: #{stgcn_forward.14} parent=19 // pred_check_branch
        %132 = sbr.rel (%p130) target = $region24
      $region23: #{stgcn_forward.14} parent=19 // pred_region
        %s133 = smul.u32 16, %s9
        %p134 = scmp.lt.s32.totalorder %s133, 31
        %s135 = scalar_select %p134, %s133, 31
        %s136 = smul.addr %s135, 8
        %s137 = scalar_lea.vmem %s0, %s136
        %s138 = smul.u32 16, %s9
      $region24: #{stgcn_forward.14} parent=19 // pred_fallthru
        _
      // Predicated region
      $region25: #{stgcn_forward.14} parent=19 // pred_check
        %p139 = pneg %p76
      $region26: #{stgcn_forward.14} parent=19 // pred_check_branch
        %141 = sbr.rel (%p139) target = $region28
      $region27: #{stgcn_forward.14} parent=19 // pred_region
        %s142 = smul.u32 16, %s9
        %p143 = scmp.lt.s32.totalorder %s142, 31
        %s144 = scalar_select %p143, %s142, 31
        %s145 = smul.addr %s144, 8
        %s146 = scalar_lea.vmem %s2, %s145
        %s147 = smul.u32 16, %s9
      $region28: #{stgcn_forward.14} parent=19 // pred_fallthru
        _
    $region20: #{stgcn_forward.14} parent=5 // pred_fallthru
      _
    %p148 = scmp.le.s32.totalorder 1, %s9
    %p149 = scmp.lt.s32.totalorder %s9, 3
    %p150 = pnand %p148, %p149
    %p151 = pneg %p150
    // Predicated region
    $region29: #{stgcn_forward.14} parent=5 // pred_check
      _
    $region30: #{stgcn_forward.14} parent=5 // pred_check_branch
      %153 = sbr.rel (%p150) target = $region32
    $region31: #{stgcn_forward.14} parent=5 // pred_region
      %s154 = ssub.s32 %s9, 1
      %s155 = smul.u32 16, %s14
      %p156 = scmp.lt.s32.totalorder %s155, 31
      %s157 = scalar_select %p156, %s155, 31
      %s158 = smul.addr %s157, 8
      %s159 = scalar_lea.vmem %s0, %s158
      %p160 = pneg %p35
      %p161 = pneg %p32
      %p162 = pneg %p56
      %p163 = pneg %p53
      %s164 = smul.u32 16, %s14
      %p165 = scmp.lt.s32.totalorder %s164, 31
      %s166 = scalar_select %p165, %s164, 31
      %s167 = smul.addr %s166, 8
      %s168 = scalar_lea.vmem %s2, %s167
      %p169 = pneg %p82
      %p170 = pneg %p79
      %p171 = pneg %p108
      %p172 = pneg %p105
      %s173 = smul.u32 16, %s14
      %p174 = scmp.lt.s32.totalorder %s173, 31
      %s175 = scalar_select %p174, %s173, 31
      %s176 = smul.addr %s175, 8
      %s177 = scalar_lea.vmem %s3, %s176
      %s178 = smul.u32 16, %s14
      %p179 = scmp.lt.s32.totalorder %s178, 31
      %s180 = scalar_select %p179, %s178, 31
      %s181 = smul.addr %s180, 8
      %s182 = scalar_lea.vmem %s0, %s181
      %s183 = smul.u32 16, %s14
      %s184 = smul.u32 16, %s14
      %p185 = scmp.lt.s32.totalorder %s184, 31
      %s186 = scalar_select %p185, %s184, 31
      %s187 = smul.addr %s186, 8
      %s188 = scalar_lea.vmem %s2, %s187
      %s189 = smul.u32 16, %s14
      %s190 = smul.u32 16, %s14
      %p191 = scmp.lt.s32.totalorder %s190, 31
      %s192 = scalar_select %p191, %s190, 31
      %s193 = smul.addr %s192, 8
      %s194 = scalar_lea.vmem %s3, %s193
      %s195 = smul.u32 16, %s14
      %v196 = vld [vmem:[%s182] sm:$0xff]
      %v197 = vld [vmem:[%s182 + $0x8] sm:$0xff]
      %v198 = vld [vmem:[%s182 + $0x10] sm:$0xff]
      %v199 = vld [vmem:[%s182 + $0x18] sm:$0xff]
      %v200 = vld [vmem:[%s182 + $0x20] sm:$0xff]
      %v201 = vld [vmem:[%s182 + $0x28] sm:$0xff]
      %v202 = vld [vmem:[%s182 + $0x30] sm:$0xff]
      %v203 = vld [vmem:[%s182 + $0x38] sm:$0xff]
      %v204 = vld [vmem:[%s182 + $0x40] sm:$0xff]
      %v205 = vld [vmem:[%s182 + $0x48] sm:$0xff]
      %v206 = vld [vmem:[%s182 + $0x50] sm:$0xff]
      %v207 = vld [vmem:[%s182 + $0x58] sm:$0xff]
      %v208 = vld [vmem:[%s182 + $0x60] sm:$0xff]
      %v209 = vld [vmem:[%s182 + $0x68] sm:$0xff]
      %v210 = vld [vmem:[%s182 + $0x70] sm:$0xff]
      %v211 = vld [vmem:[%s182 + $0x78] sm:$0xff]
      %v212 = vld [vmem:[%s1] sm:$0xff]
      %v213 = vld [vmem:[%s1 + $0x8] sm:$0xff]
      %v214 = vld [vmem:[%s1 + $0x10] sm:$0xff]
      %v215 = vld [vmem:[%s1 + $0x18] sm:$0xff]
      %v216 = vld [vmem:[%s1 + $0x20] sm:$0xff]
      %v217 = vld [vmem:[%s188] sm:$0xff]
      %v218 = vld [vmem:[%s188 + $0x8] sm:$0xff]
      %v219 = vld [vmem:[%s188 + $0x10] sm:$0xff]
      %v220 = vld [vmem:[%s188 + $0x18] sm:$0xff]
      %v221 = vld [vmem:[%s188 + $0x20] sm:$0xff]
      %v222 = vld [vmem:[%s188 + $0x28] sm:$0xff]
      %v223 = vld [vmem:[%s188 + $0x30] sm:$0xff]
      %v224 = vld [vmem:[%s188 + $0x38] sm:$0xff]
      %v225 = vld [vmem:[%s188 + $0x40] sm:$0xff]
      %v226 = vld [vmem:[%s188 + $0x48] sm:$0xff]
      %v227 = vld [vmem:[%s188 + $0x50] sm:$0xff]
      %v228 = vld [vmem:[%s188 + $0x58] sm:$0xff]
      %v229 = vld [vmem:[%s188 + $0x60] sm:$0xff]
      %v230 = vld [vmem:[%s188 + $0x68] sm:$0xff]
      %v231 = vld [vmem:[%s188 + $0x70] sm:$0xff]
      %v232 = vld [vmem:[%s188 + $0x78] sm:$0xff]
      %vm233 = vcmask 326656
      %v235 = vsel %vm233, %v196, 0
      %v238 = vsel %vm233, %v197, 0
      %v241 = vsel %vm233, %v198, 0
      %v244 = vsel %vm233, %v199, 0
      %v247 = vsel %vm233, %v200, 0
      %v250 = vsel %vm233, %v201, 0
      %v253 = vsel %vm233, %v202, 0
      %v256 = vsel %vm233, %v203, 0
      %v259 = vsel %vm233, %v204, 0
      %v262 = vsel %vm233, %v205, 0
      %v265 = vsel %vm233, %v206, 0
      %v268 = vsel %vm233, %v207, 0
      %v271 = vsel %vm233, %v208, 0
      %v274 = vsel %vm233, %v209, 0
      %v277 = vsel %vm233, %v210, 0
      %v280 = vsel %vm233, %v211, 0
      %282 = vmatpush.msra.mxu0 0.0
      %283 = vmatpush.msra.mxu0 0.0
      %284 = vmatpush.msra.mxu0 0.0
      %285 = vmatpush.msra.mxu0 0.0
      %286 = vmatpush.msra.mxu0 0.0
      %287 = vmatpush.msra.mxu0 0.0
      %288 = vmatpush.msra.mxu0 0.0
      %289 = vmatpush.msra.mxu0 0.0
      %290 = vmatpush.msra.mxu0 0.0
      %291 = vmatpush.msra.mxu0 0.0
      %292 = vmatpush.msra.mxu0 0.0
      %293 = vmatpush.msra.mxu0 %v216
      %294 = vmatpush.msra.mxu0 %v215
      %295 = vmatpush.msra.mxu0 %v214
      %296 = vmatpush.msra.mxu0 %v213
      %297 = vmatpush.msra.mxu0 %v212
      %298 = vmatmul.f32.gmra.mxu0 %v235
      %v299 = vpop.f32.mrf.mxu0
      %v300 = vadd.f32 %v217, %v299
      %301 = vmatmul.f32.gmra.mxu0 %v238
      %v302 = vpop.f32.mrf.mxu0
      %v303 = vadd.f32 %v218, %v302
      %304 = vmatmul.f32.gmra.mxu0 %v241
      %v305 = vpop.f32.mrf.mxu0
      %v306 = vadd.f32 %v219, %v305
      %307 = vmatmul.f32.gmra.mxu0 %v244
      %v308 = vpop.f32.mrf.mxu0
      %v309 = vadd.f32 %v220, %v308
      %310 = vmatmul.f32.gmra.mxu0 %v247
      %v311 = vpop.f32.mrf.mxu0
      %v312 = vadd.f32 %v221, %v311
      %313 = vmatmul.f32.gmra.mxu0 %v250
      %v314 = vpop.f32.mrf.mxu0
      %v315 = vadd.f32 %v222, %v314
      %316 = vmatmul.f32.gmra.mxu0 %v253
      %v317 = vpop.f32.mrf.mxu0
      %v318 = vadd.f32 %v223, %v317
      %319 = vmatmul.f32.gmra.mxu0 %v256
      %v320 = vpop.f32.mrf.mxu0
      %v321 = vadd.f32 %v224, %v320
      %322 = vmatmul.f32.gmra.mxu0 %v259
      %v323 = vpop.f32.mrf.mxu0
      %v324 = vadd.f32 %v225, %v323
      %325 = vmatmul.f32.gmra.mxu0 %v262
      %v326 = vpop.f32.mrf.mxu0
      %v327 = vadd.f32 %v226, %v326
      %328 = vmatmul.f32.gmra.mxu0 %v265
      %v329 = vpop.f32.mrf.mxu0
      %v330 = vadd.f32 %v227, %v329
      %331 = vmatmul.f32.gmra.mxu0 %v268
      %v332 = vpop.f32.mrf.mxu0
      %v333 = vadd.f32 %v228, %v332
      %334 = vmatmul.f32.gmra.mxu0 %v271
      %v335 = vpop.f32.mrf.mxu0
      %v336 = vadd.f32 %v229, %v335
      %337 = vmatmul.f32.gmra.mxu0 %v274
      %v338 = vpop.f32.mrf.mxu0
      %v339 = vadd.f32 %v230, %v338
      %340 = vmatmul.f32.gmra.mxu0 %v277
      %v341 = vpop.f32.mrf.mxu0
      %v342 = vadd.f32 %v231, %v341
      %343 = vmatmul.f32.gmra.mxu0 %v280
      %v344 = vpop.f32.mrf.mxu0
      %v345 = vadd.f32 %v232, %v344
      %346 = vdwg.mxu0
      %v347 = vmax.f32 %v300, 0.0
      %v348 = vmax.f32 %v303, 0.0
      %v349 = vmax.f32 %v306, 0.0
      %v350 = vmax.f32 %v309, 0.0
      %v351 = vmax.f32 %v312, 0.0
      %v352 = vmax.f32 %v315, 0.0
      %v353 = vmax.f32 %v318, 0.0
      %v354 = vmax.f32 %v321, 0.0
      %v355 = vmax.f32 %v324, 0.0
      %v356 = vmax.f32 %v327, 0.0
      %v357 = vmax.f32 %v330, 0.0
      %v358 = vmax.f32 %v333, 0.0
      %v359 = vmax.f32 %v336, 0.0
      %v360 = vmax.f32 %v339, 0.0
      %v361 = vmax.f32 %v342, 0.0
      %v362 = vmax.f32 %v345, 0.0
      %vm363 = vcmask 64512
      %364 = vst.msk [vmem:[%s194] sm:$0xff] %vm363, %v347
      %365 = vst.msk [vmem:[%s194 + $0x8] sm:$0xff] %vm363, %v348
      %366 = vst.msk [vmem:[%s194 + $0x10] sm:$0xff] %vm363, %v349
      %367 = vst.msk [vmem:[%s194 + $0x18] sm:$0xff] %vm363, %v350
      %368 = vst.msk [vmem:[%s194 + $0x20] sm:$0xff] %vm363, %v351
      %369 = vst.msk [vmem:[%s194 + $0x28] sm:$0xff] %vm363, %v352
      %370 = vst.msk [vmem:[%s194 + $0x30] sm:$0xff] %vm363, %v353
      %371 = vst.msk [vmem:[%s194 + $0x38] sm:$0xff] %vm363, %v354
      %372 = vst.msk [vmem:[%s194 + $0x40] sm:$0xff] %vm363, %v355
      %373 = vst.msk [vmem:[%s194 + $0x48] sm:$0xff] %vm363, %v356
      %374 = vst.msk [vmem:[%s194 + $0x50] sm:$0xff] %vm363, %v357
      %375 = vst.msk [vmem:[%s194 + $0x58] sm:$0xff] %vm363, %v358
      %376 = vst.msk [vmem:[%s194 + $0x60] sm:$0xff] %vm363, %v359
      %377 = vst.msk [vmem:[%s194 + $0x68] sm:$0xff] %vm363, %v360
      %378 = vst.msk [vmem:[%s194 + $0x70] sm:$0xff] %vm363, %v361
      %379 = vst.msk [vmem:[%s194 + $0x78] sm:$0xff] %vm363, %v362
      %s380 = smul.u32 16, %s14
      %p381 = scmp.lt.s32.totalorder %s380, 31
      %s382 = scalar_select %p381, %s380, 31
      %s383 = smul.addr %s382, 8
      %s384 = scalar_lea.vmem %s3, %s383
      // Predicated region
      $region33: #{stgcn_forward.14} parent=31 // pred_check
        %p385 = pneg %p105
      $region34: #{stgcn_forward.14} parent=31 // pred_check_branch
        %387 = sbr.rel (%p385) target = $region36
      $region35: #{stgcn_forward.14} parent=31 // pred_region
        %s388 = smul.u32 16, %s14
      $region36: #{stgcn_forward.14} parent=31 // pred_fallthru
        _
    $region32: #{stgcn_forward.14} parent=5 // pred_fallthru
      _
    %p389 = scmp.le.s32.totalorder 2, %s9
    // Predicated region
    $region37: #{stgcn_forward.14} parent=5 // pred_check
      %p390 = pneg %p389
    $region38: #{stgcn_forward.14} parent=5 // pred_check_branch
      %392 = sbr.rel (%p390) target = $region40
    $region39: #{stgcn_forward.14} parent=5 // pred_region
      %s393 = ssub.s32 %s9, 2
      // Predicated region
      $region41: #{stgcn_forward.14} parent=39 // pred_check
        %p394 = pneg %p111
      $region42: #{stgcn_forward.14} parent=39 // pred_check_branch
        %396 = sbr.rel (%p394) target = $region44
      $region43: #{stgcn_forward.14} parent=39 // pred_region
        %s397 = smul.u32 16, %s15
        %p398 = scmp.lt.s32.totalorder %s397, 31
        %s399 = scalar_select %p398, %s397, 31
        %s400 = smul.addr %s399, 8
        %s401 = scalar_lea.vmem %s3, %s400
      $region44: #{stgcn_forward.14} parent=39 // pred_fallthru
        _
    $region40: #{stgcn_forward.14} parent=5 // pred_fallthru
      _
  $region6: #{stgcn_forward.14} parent=0 // loop_footer
    %s13 = sadd.s32 1, %s9
  $region7: #{stgcn_forward.14} parent=0 // loop_footer_branch
    %8 = sbr.rel target = $region3
  $region8: #{stgcn_forward.14} parent=0 // loop_exit
    _

// kernel: stgcn_forward.16
$region0: #{stgcn_forward.16}
  #allocation0 [shape = 'u32[]', space=smem, size = 0x4, offset = 0x4, fixed_abs, tag = 'smem constant byte address 0x4 - core index']
  #allocation1 [shape = 'u32[72,128]{1,0:T(1,128)}', space=vmem, size = 0x9000, scoped, tag = 'internal scratch']
  %s0 = inlined_call_operand.vmem [shape: f32[256,16], index: 0, kind: input, shape index: {}]
  %s1 = inlined_call_operand.vmem [shape: f32[1,16], index: 1, kind: input, shape index: {}]
  %s2 = inlined_call_operand.vmem [shape: f32[1,16], index: 2, kind: input, shape index: {}]
  %s3 = inlined_call_operand.vmem [shape: f32[256,16], index: 3, kind: output, shape index: {}]
  %s4 = sld [smem:[#allocation0]]
  $region22: #{stgcn_forward.16} parent=0
    _
  %s6 = ssub.s32 1, %s4
  %s7 = scalar_select 0, %s6, %s4
  // Predicated region
  $region2: #{stgcn_forward.16} parent=0 // pred_check
    _
  $region3: #{stgcn_forward.16} parent=0 // pred_check_branch
    %9 = sbr.rel (0) target = $region5
  $region4: #{stgcn_forward.16} parent=0 // pred_region
    _
  $region5: #{stgcn_forward.16} parent=0 // pred_fallthru
    _
  // Predicated region
  $region6: #{stgcn_forward.16} parent=0 // pred_check
    _
  $region7: #{stgcn_forward.16} parent=0 // pred_check_branch
    %11 = sbr.rel (0) target = $region9
  $region8: #{stgcn_forward.16} parent=0 // pred_region
    _
  $region9: #{stgcn_forward.16} parent=0 // pred_fallthru
    _
  // Predicated region
  $region10: #{stgcn_forward.16} parent=0 // pred_check
    _
  $region11: #{stgcn_forward.16} parent=0 // pred_check_branch
    %13 = sbr.rel (0) target = $region13
  $region12: #{stgcn_forward.16} parent=0 // pred_region
    _
  $region13: #{stgcn_forward.16} parent=0 // pred_fallthru
    _
  %v14 = vld [vmem:[%s0] sm:$0xff]
  %v15 = vld [vmem:[%s0 + $0x8] sm:$0xff]
  %v16 = vld [vmem:[%s0 + $0x10] sm:$0xff]
  %v17 = vld [vmem:[%s0 + $0x18] sm:$0xff]
  %v18 = vld [vmem:[%s0 + $0x20] sm:$0xff]
  %v19 = vld [vmem:[%s0 + $0x28] sm:$0xff]
  %v20 = vld [vmem:[%s0 + $0x30] sm:$0xff]
  %v21 = vld [vmem:[%s0 + $0x38] sm:$0xff]
  %v22 = vld [vmem:[%s0 + $0x40] sm:$0xff]
  %v23 = vld [vmem:[%s0 + $0x48] sm:$0xff]
  %v24 = vld [vmem:[%s0 + $0x50] sm:$0xff]
  %v25 = vld [vmem:[%s0 + $0x58] sm:$0xff]
  %v26 = vld [vmem:[%s0 + $0x60] sm:$0xff]
  %v27 = vld [vmem:[%s0 + $0x68] sm:$0xff]
  %v28 = vld [vmem:[%s0 + $0x70] sm:$0xff]
  %v29 = vld [vmem:[%s0 + $0x78] sm:$0xff]
  %v30 = vld [vmem:[%s0 + $0x80] sm:$0xff]
  %v31 = vld [vmem:[%s0 + $0x88] sm:$0xff]
  %v32 = vld [vmem:[%s0 + $0x90] sm:$0xff]
  %v33 = vld [vmem:[%s0 + $0x98] sm:$0xff]
  %v34 = vld [vmem:[%s0 + $0xa0] sm:$0xff]
  %v35 = vld [vmem:[%s0 + $0xa8] sm:$0xff]
  %v36 = vld [vmem:[%s0 + $0xb0] sm:$0xff]
  %v37 = vld [vmem:[%s0 + $0xb8] sm:$0xff]
  %v38 = vld [vmem:[%s0 + $0xc0] sm:$0xff]
  %v39 = vld [vmem:[%s0 + $0xc8] sm:$0xff]
  %v40 = vld [vmem:[%s0 + $0xd0] sm:$0xff]
  %v41 = vld [vmem:[%s0 + $0xd8] sm:$0xff]
  %v42 = vld [vmem:[%s0 + $0xe0] sm:$0xff]
  %v43 = vld [vmem:[%s0 + $0xe8] sm:$0xff]
  %v44 = vld [vmem:[%s0 + $0xf0] sm:$0xff]
  %v45 = vld [vmem:[%s0 + $0xf8] sm:$0xff]
  %vm46 = vcmask 130048
  %v47 = vsel %vm46, %v14, 0.0
  %v48 = vsel %vm46, %v15, 0.0
  %v49 = vadd.f32 %v47, %v48
  %v50 = vsel %vm46, %v16, 0.0
  %v51 = vadd.f32 %v49, %v50
  %v52 = vsel %vm46, %v17, 0.0
  %v53 = vadd.f32 %v51, %v52
  %v54 = vsel %vm46, %v18, 0.0
  %v55 = vadd.f32 %v53, %v54
  %v56 = vsel %vm46, %v19, 0.0
  %v57 = vadd.f32 %v55, %v56
  %v58 = vsel %vm46, %v20, 0.0
  %v59 = vadd.f32 %v57, %v58
  %v60 = vsel %vm46, %v21, 0.0
  %v61 = vadd.f32 %v59, %v60
  %v62 = vsel %vm46, %v22, 0.0
  %v63 = vadd.f32 %v61, %v62
  %v64 = vsel %vm46, %v23, 0.0
  %v65 = vadd.f32 %v63, %v64
  %v66 = vsel %vm46, %v24, 0.0
  %v67 = vadd.f32 %v65, %v66
  %v68 = vsel %vm46, %v25, 0.0
  %v69 = vadd.f32 %v67, %v68
  %v70 = vsel %vm46, %v26, 0.0
  %v71 = vadd.f32 %v69, %v70
  %v72 = vsel %vm46, %v27, 0.0
  %v73 = vadd.f32 %v71, %v72
  %v74 = vsel %vm46, %v28, 0.0
  %v75 = vadd.f32 %v73, %v74
  %v76 = vsel %vm46, %v29, 0.0
  %v77 = vadd.f32 %v75, %v76
  %v78 = vsel %vm46, %v30, 0.0
  %v79 = vadd.f32 %v77, %v78
  %v80 = vsel %vm46, %v31, 0.0
  %v81 = vadd.f32 %v79, %v80
  %v82 = vsel %vm46, %v32, 0.0
  %v83 = vadd.f32 %v81, %v82
  %v84 = vsel %vm46, %v33, 0.0
  %v85 = vadd.f32 %v83, %v84
  %v86 = vsel %vm46, %v34, 0.0
  %v87 = vadd.f32 %v85, %v86
  %v88 = vsel %vm46, %v35, 0.0
  %v89 = vadd.f32 %v87, %v88
  %v90 = vsel %vm46, %v36, 0.0
  %v91 = vadd.f32 %v89, %v90
  %v92 = vsel %vm46, %v37, 0.0
  %v93 = vadd.f32 %v91, %v92
  %v94 = vsel %vm46, %v38, 0.0
  %v95 = vadd.f32 %v93, %v94
  %v96 = vsel %vm46, %v39, 0.0
  %v97 = vadd.f32 %v95, %v96
  %v98 = vsel %vm46, %v40, 0.0
  %v99 = vadd.f32 %v97, %v98
  %v100 = vsel %vm46, %v41, 0.0
  %v101 = vadd.f32 %v99, %v100
  %v102 = vsel %vm46, %v42, 0.0
  %v103 = vadd.f32 %v101, %v102
  %v104 = vsel %vm46, %v43, 0.0
  %v105 = vadd.f32 %v103, %v104
  %v106 = vsel %vm46, %v44, 0.0
  %v107 = vadd.f32 %v105, %v106
  %v108 = vsel %vm46, %v45, 0.0
  %v109 = vadd.f32 %v107, %v108
  %v110 = vrot.slane %v109, 4
  %v111 = vadd.f32 %v109, %v110
  %v112 = vrot.slane %v111, 2
  %v113 = vadd.f32 %v111, %v112
  %v114 = vrot.slane %v113, 1
  %v115 = vadd.f32 %v113, %v114
  %v116 = vrcp.pop 256.0
  %v117 = vmul.f32 256.0, %v116
  %v118 = vsub.f32 1.0, %v117
  %v119 = vmul.f32 %v116, %v118
  %v120 = vadd.f32 %v116, %v119
  %vm121 = vweird.f32 %v116
  %v122 = vsel %vm121, %v116, %v120
  %v123 = vmul.f32 %v115, %v122
  %v124 = vsub.f32 %v14, %v123
  %v125 = vsub.f32 %v15, %v123
  %v126 = vsub.f32 %v16, %v123
  %v127 = vsub.f32 %v17, %v123
  %v128 = vsub.f32 %v18, %v123
  %v129 = vsub.f32 %v19, %v123
  %v130 = vsub.f32 %v20, %v123
  %v131 = vsub.f32 %v21, %v123
  %v132 = vsub.f32 %v22, %v123
  %v133 = vsub.f32 %v23, %v123
  %v134 = vsub.f32 %v24, %v123
  %v135 = vsub.f32 %v25, %v123
  %v136 = vsub.f32 %v26, %v123
  %v137 = vsub.f32 %v27, %v123
  %v138 = vsub.f32 %v28, %v123
  %v139 = vsub.f32 %v29, %v123
  %v140 = vsub.f32 %v30, %v123
  %v141 = vsub.f32 %v31, %v123
  %v142 = vsub.f32 %v32, %v123
  %v143 = vsub.f32 %v33, %v123
  %v144 = vsub.f32 %v34, %v123
  %v145 = vsub.f32 %v35, %v123
  %v146 = vsub.f32 %v36, %v123
  %v147 = vsub.f32 %v37, %v123
  %v148 = vsub.f32 %v38, %v123
  %v149 = vsub.f32 %v39, %v123
  %v150 = vsub.f32 %v40, %v123
  %v151 = vsub.f32 %v41, %v123
  %v152 = vsub.f32 %v42, %v123
  %v153 = vsub.f32 %v43, %v123
  %v154 = vsub.f32 %v44, %v123
  %v155 = vsub.f32 %v45, %v123
  %v156 = vmul.f32 %v124, %v124
  %v157 = vmul.f32 %v125, %v125
  %v158 = vmul.f32 %v126, %v126
  %v159 = vmul.f32 %v127, %v127
  %v160 = vmul.f32 %v128, %v128
  %v161 = vmul.f32 %v129, %v129
  %v162 = vmul.f32 %v130, %v130
  %v163 = vmul.f32 %v131, %v131
  %v164 = vmul.f32 %v132, %v132
  %v165 = vmul.f32 %v133, %v133
  %v166 = vmul.f32 %v134, %v134
  %v167 = vmul.f32 %v135, %v135
  %v168 = vmul.f32 %v136, %v136
  %v169 = vmul.f32 %v137, %v137
  %v170 = vmul.f32 %v138, %v138
  %v171 = vmul.f32 %v139, %v139
  %v172 = vmul.f32 %v140, %v140
  %v173 = vmul.f32 %v141, %v141
  %v174 = vmul.f32 %v142, %v142
  %v175 = vmul.f32 %v143, %v143
  %v176 = vmul.f32 %v144, %v144
  %v177 = vmul.f32 %v145, %v145
  %v178 = vmul.f32 %v146, %v146
  %v179 = vmul.f32 %v147, %v147
  %v180 = vmul.f32 %v148, %v148
  %v181 = vmul.f32 %v149, %v149
  %v182 = vmul.f32 %v150, %v150
  %v183 = vmul.f32 %v151, %v151
  %v184 = vmul.f32 %v152, %v152
  %v185 = vmul.f32 %v153, %v153
  %v186 = vmul.f32 %v154, %v154
  %v187 = vmul.f32 %v155, %v155
  %v188 = vsel %vm46, %v156, 0.0
  %v189 = vsel %vm46, %v157, 0.0
  %v190 = vadd.f32 %v188, %v189
  %v191 = vsel %vm46, %v158, 0.0
  %v192 = vadd.f32 %v190, %v191
  %v193 = vsel %vm46, %v159, 0.0
  %v194 = vadd.f32 %v192, %v193
  %v195 = vsel %vm46, %v160, 0.0
  %v196 = vadd.f32 %v194, %v195
  %v197 = vsel %vm46, %v161, 0.0
  %v198 = vadd.f32 %v196, %v197
  %v199 = vsel %vm46, %v162, 0.0
  %v200 = vadd.f32 %v198, %v199
  %v201 = vsel %vm46, %v163, 0.0
  %v202 = vadd.f32 %v200, %v201
  %v203 = vsel %vm46, %v164, 0.0
  %v204 = vadd.f32 %v202, %v203
  %v205 = vsel %vm46, %v165, 0.0
  %v206 = vadd.f32 %v204, %v205
  %v207 = vsel %vm46, %v166, 0.0
  %v208 = vadd.f32 %v206, %v207
  %v209 = vsel %vm46, %v167, 0.0
  %v210 = vadd.f32 %v208, %v209
  %v211 = vsel %vm46, %v168, 0.0
  %v212 = vadd.f32 %v210, %v211
  %v213 = vsel %vm46, %v169, 0.0
  %v214 = vadd.f32 %v212, %v213
  %v215 = vsel %vm46, %v170, 0.0
  %v216 = vadd.f32 %v214, %v215
  %v217 = vsel %vm46, %v171, 0.0
  %v218 = vadd.f32 %v216, %v217
  %v219 = vsel %vm46, %v172, 0.0
  %v220 = vadd.f32 %v218, %v219
  %v221 = vsel %vm46, %v173, 0.0
  %v222 = vadd.f32 %v220, %v221
  %v223 = vsel %vm46, %v174, 0.0
  %v224 = vadd.f32 %v222, %v223
  %v225 = vsel %vm46, %v175, 0.0
  %v226 = vadd.f32 %v224, %v225
  %v227 = vsel %vm46, %v176, 0.0
  %v228 = vadd.f32 %v226, %v227
  %v229 = vsel %vm46, %v177, 0.0
  %v230 = vadd.f32 %v228, %v229
  %v231 = vsel %vm46, %v178, 0.0
  %v232 = vadd.f32 %v230, %v231
  %v233 = vsel %vm46, %v179, 0.0
  %v234 = vadd.f32 %v232, %v233
  %v235 = vsel %vm46, %v180, 0.0
  %v236 = vadd.f32 %v234, %v235
  %v237 = vsel %vm46, %v181, 0.0
  %v238 = vadd.f32 %v236, %v237
  %v239 = vsel %vm46, %v182, 0.0
  %v240 = vadd.f32 %v238, %v239
  %v241 = vsel %vm46, %v183, 0.0
  %v242 = vadd.f32 %v240, %v241
  %v243 = vsel %vm46, %v184, 0.0
  %v244 = vadd.f32 %v242, %v243
  %v245 = vsel %vm46, %v185, 0.0
  %v246 = vadd.f32 %v244, %v245
  %v247 = vsel %vm46, %v186, 0.0
  %v248 = vadd.f32 %v246, %v247
  %v249 = vsel %vm46, %v187, 0.0
  %v250 = vadd.f32 %v248, %v249
  %v251 = vrot.slane %v250, 4
  %v252 = vadd.f32 %v250, %v251
  %v253 = vrot.slane %v252, 2
  %v254 = vadd.f32 %v252, %v253
  %v255 = vrot.slane %v254, 1
  %v256 = vadd.f32 %v254, %v255
  %v257 = vmul.f32 %v256, %v122
  %v258 = vadd.f32 %v257, 1e-05
  %v259 = vrsqrt.pop %v258
  %v260 = vmul.f32 %v259, %v258
  %v261 = vmul.f32 %v260, %v259
  %v262 = vmul.f32 0.5, %v261
  %v263 = vsub.f32 1.5, %v262
  %v264 = vmul.f32 %v259, %v263
  %vm265 = vweird.f32 %v258
  %vm266 = vweird.f32 %v259
  %vm267 = vmor %vm265, %vm266
  %v268 = vsel %vm267, %v259, %v264
  %v269 = vmul.f32 %v124, %v268
  %v270 = vmul.f32 %v125, %v268
  %v271 = vmul.f32 %v126, %v268
  %v272 = vmul.f32 %v127, %v268
  %v273 = vmul.f32 %v128, %v268
  %v274 = vmul.f32 %v129, %v268
  %v275 = vmul.f32 %v130, %v268
  %v276 = vmul.f32 %v131, %v268
  %v277 = vmul.f32 %v132, %v268
  %v278 = vmul.f32 %v133, %v268
  %v279 = vmul.f32 %v134, %v268
  %v280 = vmul.f32 %v135, %v268
  %v281 = vmul.f32 %v136, %v268
  %v282 = vmul.f32 %v137, %v268
  %v283 = vmul.f32 %v138, %v268
  %v284 = vmul.f32 %v139, %v268
  %v285 = vmul.f32 %v140, %v268
  %v286 = vmul.f32 %v141, %v268
  %v287 = vmul.f32 %v142, %v268
  %v288 = vmul.f32 %v143, %v268
  %v289 = vmul.f32 %v144, %v268
  %v290 = vmul.f32 %v145, %v268
  %v291 = vmul.f32 %v146, %v268
  %v292 = vmul.f32 %v147, %v268
  %v293 = vmul.f32 %v148, %v268
  %v294 = vmul.f32 %v149, %v268
  %v295 = vmul.f32 %v150, %v268
  %v296 = vmul.f32 %v151, %v268
  %v297 = vmul.f32 %v152, %v268
  %v298 = vmul.f32 %v153, %v268
  %v299 = vmul.f32 %v154, %v268
  %v300 = vmul.f32 %v155, %v268
  %v301 = vld [vmem:[%s1] sm:$0x1]
  %v303 = vperm.slane %v301, 0
  %v305 = vmul.f32 %v269, %v303
  %v306 = vmul.f32 %v270, %v303
  %v307 = vmul.f32 %v271, %v303
  %v308 = vmul.f32 %v272, %v303
  %v309 = vmul.f32 %v273, %v303
  %v310 = vmul.f32 %v274, %v303
  %v311 = vmul.f32 %v275, %v303
  %v312 = vmul.f32 %v276, %v303
  %v313 = vmul.f32 %v277, %v303
  %v314 = vmul.f32 %v278, %v303
  %v315 = vmul.f32 %v279, %v303
  %v316 = vmul.f32 %v280, %v303
  %v317 = vmul.f32 %v281, %v303
  %v318 = vmul.f32 %v282, %v303
  %v319 = vmul.f32 %v283, %v303
  %v320 = vmul.f32 %v284, %v303
  %v321 = vmul.f32 %v285, %v303
  %v322 = vmul.f32 %v286, %v303
  %v323 = vmul.f32 %v287, %v303
  %v324 = vmul.f32 %v288, %v303
  %v325 = vmul.f32 %v289, %v303
  %v326 = vmul.f32 %v290, %v303
  %v327 = vmul.f32 %v291, %v303
  %v328 = vmul.f32 %v292, %v303
  %v329 = vmul.f32 %v293, %v303
  %v330 = vmul.f32 %v294, %v303
  %v331 = vmul.f32 %v295, %v303
  %v332 = vmul.f32 %v296, %v303
  %v333 = vmul.f32 %v297, %v303
  %v334 = vmul.f32 %v298, %v303
  %v335 = vmul.f32 %v299, %v303
  %v336 = vmul.f32 %v300, %v303
  %v337 = vld [vmem:[%s2] sm:$0x1]
  %v339 = vperm.slane %v337, 0
  %v341 = vadd.f32 %v305, %v339
  %v342 = vadd.f32 %v306, %v339
  %v343 = vadd.f32 %v307, %v339
  %v344 = vadd.f32 %v308, %v339
  %v345 = vadd.f32 %v309, %v339
  %v346 = vadd.f32 %v310, %v339
  %v347 = vadd.f32 %v311, %v339
  %v348 = vadd.f32 %v312, %v339
  %v349 = vadd.f32 %v313, %v339
  %v350 = vadd.f32 %v314, %v339
  %v351 = vadd.f32 %v315, %v339
  %v352 = vadd.f32 %v316, %v339
  %v353 = vadd.f32 %v317, %v339
  %v354 = vadd.f32 %v318, %v339
  %v355 = vadd.f32 %v319, %v339
  %v356 = vadd.f32 %v320, %v339
  %v357 = vadd.f32 %v321, %v339
  %v358 = vadd.f32 %v322, %v339
  %v359 = vadd.f32 %v323, %v339
  %v360 = vadd.f32 %v324, %v339
  %v361 = vadd.f32 %v325, %v339
  %v362 = vadd.f32 %v326, %v339
  %v363 = vadd.f32 %v327, %v339
  %v364 = vadd.f32 %v328, %v339
  %v365 = vadd.f32 %v329, %v339
  %v366 = vadd.f32 %v330, %v339
  %v367 = vadd.f32 %v331, %v339
  %v368 = vadd.f32 %v332, %v339
  %v369 = vadd.f32 %v333, %v339
  %v370 = vadd.f32 %v334, %v339
  %v371 = vadd.f32 %v335, %v339
  %v372 = vadd.f32 %v336, %v339
  %373 = vst.msk [vmem:[%s3] sm:$0xff] %vm46, %v341
  %374 = vst.msk [vmem:[%s3 + $0x8] sm:$0xff] %vm46, %v342
  %375 = vst.msk [vmem:[%s3 + $0x10] sm:$0xff] %vm46, %v343
  %376 = vst.msk [vmem:[%s3 + $0x18] sm:$0xff] %vm46, %v344
  %377 = vst.msk [vmem:[%s3 + $0x20] sm:$0xff] %vm46, %v345
  %378 = vst.msk [vmem:[%s3 + $0x28] sm:$0xff] %vm46, %v346
  %379 = vst.msk [vmem:[%s3 + $0x30] sm:$0xff] %vm46, %v347
  %380 = vst.msk [vmem:[%s3 + $0x38] sm:$0xff] %vm46, %v348
  %381 = vst.msk [vmem:[%s3 + $0x40] sm:$0xff] %vm46, %v349
  %382 = vst.msk [vmem:[%s3 + $0x48] sm:$0xff] %vm46, %v350
  %383 = vst.msk [vmem:[%s3 + $0x50] sm:$0xff] %vm46, %v351
  %384 = vst.msk [vmem:[%s3 + $0x58] sm:$0xff] %vm46, %v352
  %385 = vst.msk [vmem:[%s3 + $0x60] sm:$0xff] %vm46, %v353
  %386 = vst.msk [vmem:[%s3 + $0x68] sm:$0xff] %vm46, %v354
  %387 = vst.msk [vmem:[%s3 + $0x70] sm:$0xff] %vm46, %v355
  %388 = vst.msk [vmem:[%s3 + $0x78] sm:$0xff] %vm46, %v356
  %389 = vst.msk [vmem:[%s3 + $0x80] sm:$0xff] %vm46, %v357
  %390 = vst.msk [vmem:[%s3 + $0x88] sm:$0xff] %vm46, %v358
  %391 = vst.msk [vmem:[%s3 + $0x90] sm:$0xff] %vm46, %v359
  %392 = vst.msk [vmem:[%s3 + $0x98] sm:$0xff] %vm46, %v360
  %393 = vst.msk [vmem:[%s3 + $0xa0] sm:$0xff] %vm46, %v361
  %394 = vst.msk [vmem:[%s3 + $0xa8] sm:$0xff] %vm46, %v362
  %395 = vst.msk [vmem:[%s3 + $0xb0] sm:$0xff] %vm46, %v363
  %396 = vst.msk [vmem:[%s3 + $0xb8] sm:$0xff] %vm46, %v364
  %397 = vst.msk [vmem:[%s3 + $0xc0] sm:$0xff] %vm46, %v365
  %398 = vst.msk [vmem:[%s3 + $0xc8] sm:$0xff] %vm46, %v366
  %399 = vst.msk [vmem:[%s3 + $0xd0] sm:$0xff] %vm46, %v367
  %400 = vst.msk [vmem:[%s3 + $0xd8] sm:$0xff] %vm46, %v368
  %401 = vst.msk [vmem:[%s3 + $0xe0] sm:$0xff] %vm46, %v369
  %402 = vst.msk [vmem:[%s3 + $0xe8] sm:$0xff] %vm46, %v370
  %403 = vst.msk [vmem:[%s3 + $0xf0] sm:$0xff] %vm46, %v371
  %404 = vst.msk [vmem:[%s3 + $0xf8] sm:$0xff] %vm46, %v372
  // Predicated region
  $region14: #{stgcn_forward.16} parent=0 // pred_check
    _
  $region15: #{stgcn_forward.16} parent=0 // pred_check_branch
    %406 = sbr.rel (0) target = $region17
  $region16: #{stgcn_forward.16} parent=0 // pred_region
    _
  $region17: #{stgcn_forward.16} parent=0 // pred_fallthru
    _
  // Predicated region
  $region18: #{stgcn_forward.16} parent=0 // pred_check
    _
  $region19: #{stgcn_forward.16} parent=0 // pred_check_branch
    %408 = sbr.rel (0) target = $region21
  $region20: #{stgcn_forward.16} parent=0 // pred_region
    _
  $region21: #{stgcn_forward.16} parent=0 // pred_fallthru
    _

// kernel: stgcn_forward.15
$region0: #{stgcn_forward.15}
  #allocation0 [shape = 'u32[]', space=smem, size = 0x4, offset = 0x4, fixed_abs, tag = 'smem constant byte address 0x4 - core index']
  #allocation1 [shape = 'u32[72,128]{1,0:T(1,128)}', space=vmem, size = 0x9000, scoped, tag = 'internal scratch']
  %s0 = inlined_call_operand.vmem [shape: f32[2,8,160], index: 0, kind: input, shape index: {}]
  %s1 = inlined_call_operand.vmem [shape: f32[3,16,8], index: 1, kind: input, shape index: {}]
  %s2 = inlined_call_operand.vmem [shape: f32[3,16,8], index: 2, kind: input, shape index: {}]
  %s3 = inlined_call_operand.vmem [shape: f32[16,1], index: 3, kind: input, shape index: {}]
  %s4 = inlined_call_operand.vmem [shape: f32[16,1], index: 4, kind: input, shape index: {}]
  %s5 = inlined_call_operand.vmem [shape: f32[2,16,128], index: 5, kind: output, shape index: {}]
  %s6 = sld [smem:[#allocation0]]
  $region53: #{stgcn_forward.15} parent=0
    _
  %s8 = ssub.s32 1, %s6
  %s9 = scalar_select 0, %s8, %s6
  loop: start=0, step=1, limit=4
  $region2: #{stgcn_forward.15} parent=0 // loop_pre_header
    _
  $region3: #{stgcn_forward.15} parent=0 // loop_header
    %s11 = sphi 0, %s15
    %p12 = scmp.ge.s32.totalorder %s11, 4
    %s21 = sphi 0, %s23
    %s24 = sphi 0, %s21
    %s25 = sphi 0, %s24
    %s41 = sphi 0, %s25
    %s45 = sphi 0, %s45
    %s47 = sphi 0, %s45
    %s48 = sphi 0, %s47
    %s62 = sphi 0, %s48
    %s66 = sphi 0, %s66
    %s68 = sphi 0, %s66
    %s69 = sphi 0, %s68
    %s83 = sphi 0, %s69
    %s87 = sphi 0, %s87
    %s89 = sphi 0, %s87
    %s90 = sphi 0, %s89
    %s104 = sphi 0, %s90
    %s108 = sphi 0, %s108
    %s110 = sphi 0, %s108
    %s111 = sphi 0, %s110
    %s125 = sphi 0, %s111
    %s131 = sphi 0, %s133
    %s134 = sphi 0, %s131
    %s135 = sphi 0, %s134
    %s151 = sphi 0, %s135
  $region4: #{stgcn_forward.15} parent=0 // loop_header_branch
    %14 = sbr.rel (%p12) target = $region8
  $region5: #{stgcn_forward.15} parent=0 // loop_body
    %s16 = ssub.s32 %s11, 1
    %s17 = ssub.s32 %s11, 2
    %s18 = sadd.s32 %s11, 1
    %s19 = ssub.s32 %s11, %s18
    %p20 = scmp.eq.s32.totalorder %s19, 0
    %s22 = sadd.s32 %s21, 1
    %s23 = scalar_select %p20, %s21, %s22
    %p26 = pneg %p20
    %p27 = scmp.eq.s32.totalorder %s11, 1
    %p28 = por %p26, %p27
    %p29 = scmp.ne.s32.totalorder %s21, %s24
    %p30 = scmp.eq.s32.totalorder %s11, 0
    %p31 = por %p29, %p30
    %p32 = scmp.ne.s32.totalorder %s21, %s24
    %p33 = scmp.eq.s32.totalorder %s16, 1
    %p34 = por %p32, %p33
    %p35 = scmp.ne.s32.totalorder %s24, %s25
    %p36 = scmp.eq.s32.totalorder %s16, 0
    %p37 = por %p35, %p36
    %p38 = scmp.ne.s32.totalorder %s24, %s25
    %p39 = scmp.eq.s32.totalorder %s17, 1
    %p40 = por %p38, %p39
    %p42 = scmp.ne.s32.totalorder %s25, %s41
    %p43 = scmp.eq.s32.totalorder %s17, 0
    %p44 = por %p42, %p43
    %s46 = sadd.s32 %s45, 1
    %p49 = scmp.eq.s32.totalorder %s11, 1
    %p50 = scmp.ne.s32.totalorder %s45, %s47
    %p51 = scmp.eq.s32.totalorder %s11, 0
    %p52 = por %p50, %p51
    %p53 = scmp.ne.s32.totalorder %s45, %s47
    %p54 = scmp.eq.s32.totalorder %s16, 1
    %p55 = por %p53, %p54
    %p56 = scmp.ne.s32.totalorder %s47, %s48
    %p57 = scmp.eq.s32.totalorder %s16, 0
    %p58 = por %p56, %p57
    %p59 = scmp.ne.s32.totalorder %s47, %s48
    %p60 = scmp.eq.s32.totalorder %s17, 1
    %p61 = por %p59, %p60
    %p63 = scmp.ne.s32.totalorder %s48, %s62
    %p64 = scmp.eq.s32.totalorder %s17, 0
    %p65 = por %p63, %p64
    %s67 = sadd.s32 %s66, 1
    %p70 = scmp.eq.s32.totalorder %s11, 1
    %p71 = scmp.ne.s32.totalorder %s66, %s68
    %p72 = scmp.eq.s32.totalorder %s11, 0
    %p73 = por %p71, %p72
    %p74 = scmp.ne.s32.totalorder %s66, %s68
    %p75 = scmp.eq.s32.totalorder %s16, 1
    %p76 = por %p74, %p75
    %p77 = scmp.ne.s32.totalorder %s68, %s69
    %p78 = scmp.eq.s32.totalorder %s16, 0
    %p79 = por %p77, %p78
    %p80 = scmp.ne.s32.totalorder %s68, %s69
    %p81 = scmp.eq.s32.totalorder %s17, 1
    %p82 = por %p80, %p81
    %p84 = scmp.ne.s32.totalorder %s69, %s83
    %p85 = scmp.eq.s32.totalorder %s17, 0
    %p86 = por %p84, %p85
    %s88 = sadd.s32 %s87, 1
    %p91 = scmp.eq.s32.totalorder %s11, 1
    %p92 = scmp.ne.s32.totalorder %s87, %s89
    %p93 = scmp.eq.s32.totalorder %s11, 0
    %p94 = por %p92, %p93
    %p95 = scmp.ne.s32.totalorder %s87, %s89
    %p96 = scmp.eq.s32.totalorder %s16, 1
    %p97 = por %p95, %p96
    %p98 = scmp.ne.s32.totalorder %s89, %s90
    %p99 = scmp.eq.s32.totalorder %s16, 0
    %p100 = por %p98, %p99
    %p101 = scmp.ne.s32.totalorder %s89, %s90
    %p102 = scmp.eq.s32.totalorder %s17, 1
    %p103 = por %p101, %p102
    %p105 = scmp.ne.s32.totalorder %s90, %s104
    %p106 = scmp.eq.s32.totalorder %s17, 0
    %p107 = por %p105, %p106
    %s109 = sadd.s32 %s108, 1
    %p112 = scmp.eq.s32.totalorder %s11, 1
    %p113 = scmp.ne.s32.totalorder %s108, %s110
    %p114 = scmp.eq.s32.totalorder %s11, 0
    %p115 = por %p113, %p114
    %p116 = scmp.ne.s32.totalorder %s108, %s110
    %p117 = scmp.eq.s32.totalorder %s16, 1
    %p118 = por %p116, %p117
    %p119 = scmp.ne.s32.totalorder %s110, %s111
    %p120 = scmp.eq.s32.totalorder %s16, 0
    %p121 = por %p119, %p120
    %p122 = scmp.ne.s32.totalorder %s110, %s111
    %p123 = scmp.eq.s32.totalorder %s17, 1
    %p124 = por %p122, %p123
    %p126 = scmp.ne.s32.totalorder %s111, %s125
    %p127 = scmp.eq.s32.totalorder %s17, 0
    %p128 = por %p126, %p127
    %s129 = ssub.s32 %s11, %s18
    %p130 = scmp.eq.s32.totalorder %s129, 0
    %s132 = sadd.s32 %s131, 1
    %s133 = scalar_select %p130, %s131, %s132
    %p136 = pneg %p130
    %p137 = scmp.eq.s32.totalorder %s11, 1
    %p138 = por %p136, %p137
    %p139 = scmp.ne.s32.totalorder %s131, %s134
    %p140 = scmp.eq.s32.totalorder %s11, 0
    %p141 = por %p139, %p140
    %p142 = scmp.ne.s32.totalorder %s131, %s134
    %p143 = scmp.eq.s32.totalorder %s16, 1
    %p144 = por %p142, %p143
    %p145 = scmp.ne.s32.totalorder %s134, %s135
    %p146 = scmp.eq.s32.totalorder %s16, 0
    %p147 = por %p145, %p146
    %p148 = scmp.ne.s32.totalorder %s134, %s135
    %p149 = scmp.eq.s32.totalorder %s17, 1
    %p150 = por %p148, %p149
    %p152 = scmp.ne.s32.totalorder %s135, %s151
    %p153 = scmp.eq.s32.totalorder %s17, 0
    %p154 = por %p152, %p153
    %p155 = scmp.le.s32.totalorder 1, %s11
    %p156 = scmp.lt.s32.totalorder %s11, 3
    %p157 = pnand %p155, %p156
    %p158 = pneg %p157
    // Predicated region
    $region9: #{stgcn_forward.15} parent=5 // pred_check
      _
    $region10: #{stgcn_forward.15} parent=5 // pred_check_branch
      %160 = sbr.rel (%p157) target = $region12
    $region11: #{stgcn_forward.15} parent=5 // pred_region
      %s161 = ssub.s32 %s11, 1
      // Predicated region
      $region13: #{stgcn_forward.15} parent=11 // pred_check
        %p162 = pneg %p58
      $region14: #{stgcn_forward.15} parent=11 // pred_check_branch
        %164 = sbr.rel (%p162) target = $region16
      $region15: #{stgcn_forward.15} parent=11 // pred_region
        _
      $region16: #{stgcn_forward.15} parent=11 // pred_fallthru
        _
      // Predicated region
      $region17: #{stgcn_forward.15} parent=11 // pred_check
        %p165 = pneg %p79
      $region18: #{stgcn_forward.15} parent=11 // pred_check_branch
        %167 = sbr.rel (%p165) target = $region20
      $region19: #{stgcn_forward.15} parent=11 // pred_region
        _
      $region20: #{stgcn_forward.15} parent=11 // pred_fallthru
        _
      // Predicated region
      $region21: #{stgcn_forward.15} parent=11 // pred_check
        %p168 = pneg %p100
      $region22: #{stgcn_forward.15} parent=11 // pred_check_branch
        %170 = sbr.rel (%p168) target = $region24
      $region23: #{stgcn_forward.15} parent=11 // pred_region
        _
      $region24: #{stgcn_forward.15} parent=11 // pred_fallthru
        _
      // Predicated region
      $region25: #{stgcn_forward.15} parent=11 // pred_check
        %p171 = pneg %p121
      $region26: #{stgcn_forward.15} parent=11 // pred_check_branch
        %173 = sbr.rel (%p171) target = $region28
      $region27: #{stgcn_forward.15} parent=11 // pred_region
        _
      $region28: #{stgcn_forward.15} parent=11 // pred_fallthru
        _
    $region12: #{stgcn_forward.15} parent=5 // pred_fallthru
      _
    %p174 = scmp.lt.s32.totalorder %s11, 2
    // Predicated region
    $region29: #{stgcn_forward.15} parent=5 // pred_check
      %p175 = pneg %p174
    $region30: #{stgcn_forward.15} parent=5 // pred_check_branch
      %177 = sbr.rel (%p175) target = $region32
    $region31: #{stgcn_forward.15} parent=5 // pred_region
      // Predicated region
      $region33: #{stgcn_forward.15} parent=31 // pred_check
        %p178 = pneg %p31
      $region34: #{stgcn_forward.15} parent=31 // pred_check_branch
        %180 = sbr.rel (%p178) target = $region36
      $region35: #{stgcn_forward.15} parent=31 // pred_region
        %p181 = scmp.lt.s32.totalorder %s11, 1
        %s182 = scalar_select %p181, %s11, 1
        %s183 = smul.addr %s182, 2
        %s184 = smul.addr %s183, 8
        %s185 = scalar_lea.vmem %s0, %s184
      $region36: #{stgcn_forward.15} parent=31 // pred_fallthru
        _
    $region32: #{stgcn_forward.15} parent=5 // pred_fallthru
      _
    %p186 = scmp.le.s32.totalorder 1, %s11
    %p187 = scmp.lt.s32.totalorder %s11, 3
    %p188 = pnand %p186, %p187
    %p189 = pneg %p188
    // Predicated region
    $region37: #{stgcn_forward.15} parent=5 // pred_check
      _
    $region38: #{stgcn_forward.15} parent=5 // pred_check_branch
      %191 = sbr.rel (%p188) target = $region40
    $region39: #{stgcn_forward.15} parent=5 // pred_region
      %s192 = ssub.s32 %s11, 1
      %p193 = scmp.lt.s32.totalorder %s16, 1
      %s194 = scalar_select %p193, %s16, 1
      %s195 = smul.addr %s194, 2
      %s196 = smul.addr %s195, 8
      %s197 = scalar_lea.vmem %s0, %s196
      %p198 = pneg %p37
      %p199 = pneg %p34
      %p200 = pneg %p58
      %p201 = pneg %p55
      %p202 = pneg %p79
      %p203 = pneg %p76
      %p204 = pneg %p100
      %p205 = pneg %p97
      %p206 = pneg %p121
      %p207 = pneg %p118
      %p208 = pneg %p147
      %p209 = pneg %p144
      %p210 = scmp.lt.s32.totalorder %s16, 1
      %s211 = scalar_select %p210, %s16, 1
      %s212 = smul.addr %s211, 2
      %s213 = smul.addr %s212, 8
      %s214 = scalar_lea.vmem %s5, %s213
      %p215 = scmp.lt.s32.totalorder %s16, 1
      %s216 = scalar_select %p215, %s16, 1
      %s217 = smul.addr %s216, 2
      %s218 = smul.addr %s217, 8
      %s219 = scalar_lea.vmem %s0, %s218
      %p220 = scmp.lt.s32.totalorder %s16, 1
      %s221 = scalar_select %p220, %s16, 1
      %s222 = smul.addr %s221, 2
      %s223 = smul.addr %s222, 8
      %s224 = scalar_lea.vmem %s5, %s223
      %v225 = vld [vmem:[%s219] sm:$0xff]
      %v226 = vld [vmem:[%s219 + $0x8] sm:$0xff]
      %v227 = vld [vmem:[%s1] sm:$0xff]
      %v228 = vld [vmem:[%s1 + $0x8] sm:$0xff]
      %v229 = vld [vmem:[%s2] sm:$0xff]
      %v230 = vld [vmem:[%s2 + $0x8] sm:$0xff]
      %s231 = scalar_lea.vmem %s1, 16
      %v232 = vld [vmem:[%s231] sm:$0xff]
      %v233 = vld [vmem:[%s231 + $0x8] sm:$0xff]
      %236 = vrot.lane.b32.xlu0 %v225, 112
      %v237 = vpop.permute.xlu0 %236
      %238 = vrot.lane.b32.xlu0 %v226, 112
      %v239 = vpop.permute.xlu0 %238
      %vm240 = vcmask 916480
      %v241 = vsel %vm240, %v237, %v239
      %vm243 = vcmask 64512
      %v245 = vsel %vm243, %v232, 0
      %v248 = vsel %vm243, %v233, 0
      %250 = vmatpush.msra.mxu0 0.0
      %251 = vmatpush.msra.mxu0 0.0
      %252 = vmatpush.msra.mxu0 0.0
      %253 = vmatpush.msra.mxu0 0.0
      %254 = vmatpush.msra.mxu0 0.0
      %255 = vmatpush.msra.mxu0 0.0
      %256 = vmatpush.msra.mxu0 0.0
      %257 = vmatpush.msra.mxu0 0.0
      %258 = vmatpush.msra.mxu0 0.0
      %259 = vmatpush.msra.mxu0 0.0
      %260 = vmatpush.msra.mxu0 0.0
      %261 = vmatpush.msra.mxu0 0.0
      %262 = vmatpush.msra.mxu0 0.0
      %263 = vmatpush.msra.mxu0 0.0
      %264 = vmatpush.msra.mxu0 0.0
      %265 = vmatpush.msra.mxu0 %v241
      %266 = vmatmul.f32.gmra.mxu0 %v245
      %v267 = vpop.f32.mrf.mxu0
      %v268 = vadd.f32 0.0, %v267
      %269 = vmatmul.f32.gmra.mxu0 %v248
      %v270 = vpop.f32.mrf.mxu0
      %v271 = vadd.f32 0.0, %v270
      %272 = vdwg.mxu0
      %v274 = vsel %vm243, %v227, 0
      %v277 = vsel %vm243, %v228, 0
      %279 = vmatpush.msra.mxu0 0.0
      %280 = vmatpush.msra.mxu0 0.0
      %281 = vmatpush.msra.mxu0 0.0
      %282 = vmatpush.msra.mxu0 0.0
      %283 = vmatpush.msra.mxu0 0.0
      %284 = vmatpush.msra.mxu0 0.0
      %285 = vmatpush.msra.mxu0 0.0
      %286 = vmatpush.msra.mxu0 0.0
      %287 = vmatpush.msra.mxu0 0.0
      %288 = vmatpush.msra.mxu0 0.0
      %289 = vmatpush.msra.mxu0 0.0
      %290 = vmatpush.msra.mxu0 0.0
      %291 = vmatpush.msra.mxu0 0.0
      %292 = vmatpush.msra.mxu0 0.0
      %293 = vmatpush.msra.mxu0 0.0
      %294 = vmatpush.msra.mxu0 %v225
      %295 = vmatmul.f32.gmra.mxu0 %v274
      %v296 = vpop.f32.mrf.mxu0
      %v297 = vadd.f32 %v268, %v296
      %298 = vmatmul.f32.gmra.mxu0 %v277
      %v299 = vpop.f32.mrf.mxu0
      %v300 = vadd.f32 %v271, %v299
      %301 = vdwg.mxu0
      %s302 = scalar_lea.vmem %s2, 16
      %v303 = vld [vmem:[%s302] sm:$0xff]
      %v304 = vld [vmem:[%s302 + $0x8] sm:$0xff]
      %v306 = vsel %vm243, %v303, 0
      %v309 = vsel %vm243, %v304, 0
      %311 = vmatpush.msra.mxu0 0.0
      %312 = vmatpush.msra.mxu0 0.0
      %313 = vmatpush.msra.mxu0 0.0
      %314 = vmatpush.msra.mxu0 0.0
      %315 = vmatpush.msra.mxu0 0.0
      %316 = vmatpush.msra.mxu0 0.0
      %317 = vmatpush.msra.mxu0 0.0
      %318 = vmatpush.msra.mxu0 0.0
      %319 = vmatpush.msra.mxu0 0.0
      %320 = vmatpush.msra.mxu0 0.0
      %321 = vmatpush.msra.mxu0 0.0
      %322 = vmatpush.msra.mxu0 0.0
      %323 = vmatpush.msra.mxu0 0.0
      %324 = vmatpush.msra.mxu0 0.0
      %325 = vmatpush.msra.mxu0 0.0
      %326 = vmatpush.msra.mxu0 %v241
      %327 = vmatmul.f32.gmra.mxu0 %v306
      %v328 = vpop.f32.mrf.mxu0
      %v329 = vadd.f32 0.0, %v328
      %330 = vmatmul.f32.gmra.mxu0 %v309
      %v331 = vpop.f32.mrf.mxu0
      %v332 = vadd.f32 0.0, %v331
      %333 = vdwg.mxu0
      %v335 = vsel %vm243, %v229, 0
      %v338 = vsel %vm243, %v230, 0
      %340 = vmatpush.msra.mxu0 0.0
      %341 = vmatpush.msra.mxu0 0.0
      %342 = vmatpush.msra.mxu0 0.0
      %343 = vmatpush.msra.mxu0 0.0
      %344 = vmatpush.msra.mxu0 0.0
      %345 = vmatpush.msra.mxu0 0.0
      %346 = vmatpush.msra.mxu0 0.0
      %347 = vmatpush.msra.mxu0 0.0
      %348 = vmatpush.msra.mxu0 0.0
      %349 = vmatpush.msra.mxu0 0.0
      %350 = vmatpush.msra.mxu0 0.0
      %351 = vmatpush.msra.mxu0 0.0
      %352 = vmatpush.msra.mxu0 0.0
      %353 = vmatpush.msra.mxu0 0.0
      %354 = vmatpush.msra.mxu0 0.0
      %355 = vmatpush.msra.mxu0 %v225
      %356 = vmatmul.f32.gmra.mxu0 %v335
      %v357 = vpop.f32.mrf.mxu0
      %v358 = vadd.f32 %v329, %v357
      %359 = vmatmul.f32.gmra.mxu0 %v338
      %v360 = vpop.f32.mrf.mxu0
      %v361 = vadd.f32 %v332, %v360
      %362 = vdwg.mxu0
      %s363 = scalar_lea.vmem %s1, 32
      %v364 = vld [vmem:[%s363] sm:$0xff]
      %v365 = vld [vmem:[%s363 + $0x8] sm:$0xff]
      %366 = vrot.lane.b32.xlu0 %v225, 96
      %v367 = vpop.permute.xlu0 %366
      %368 = vrot.lane.b32.xlu0 %v226, 96
      %v369 = vpop.permute.xlu0 %368
      %vm370 = vcmask 785408
      %v371 = vsel %vm370, %v367, %v369
      %v374 = vsel %vm243, %v364, 0
      %v377 = vsel %vm243, %v365, 0
      %379 = vmatpush.msra.mxu0 0.0
      %380 = vmatpush.msra.mxu0 0.0
      %381 = vmatpush.msra.mxu0 0.0
      %382 = vmatpush.msra.mxu0 0.0
      %383 = vmatpush.msra.mxu0 0.0
      %384 = vmatpush.msra.mxu0 0.0
      %385 = vmatpush.msra.mxu0 0.0
      %386 = vmatpush.msra.mxu0 0.0
      %387 = vmatpush.msra.mxu0 0.0
      %388 = vmatpush.msra.mxu0 0.0
      %389 = vmatpush.msra.mxu0 0.0
      %390 = vmatpush.msra.mxu0 0.0
      %391 = vmatpush.msra.mxu0 0.0
      %392 = vmatpush.msra.mxu0 0.0
      %393 = vmatpush.msra.mxu0 0.0
      %394 = vmatpush.msra.mxu0 %v371
      %395 = vmatmul.f32.gmra.mxu0 %v374
      %v396 = vpop.f32.mrf.mxu0
      %v397 = vadd.f32 0.0, %v396
      %398 = vmatmul.f32.gmra.mxu0 %v377
      %v399 = vpop.f32.mrf.mxu0
      %v400 = vadd.f32 0.0, %v399
      %401 = vdwg.mxu0
      %v402 = vadd.f32 %v297, %v397
      %v403 = vadd.f32 %v300, %v400
      %s404 = scalar_lea.vmem %s2, 32
      %v405 = vld [vmem:[%s404] sm:$0xff]
      %v406 = vld [vmem:[%s404 + $0x8] sm:$0xff]
      %v408 = vsel %vm243, %v405, 0
      %v411 = vsel %vm243, %v406, 0
      %413 = vmatpush.msra.mxu0 0.0
      %414 = vmatpush.msra.mxu0 0.0
      %415 = vmatpush.msra.mxu0 0.0
      %416 = vmatpush.msra.mxu0 0.0
      %417 = vmatpush.msra.mxu0 0.0
      %418 = vmatpush.msra.mxu0 0.0
      %419 = vmatpush.msra.mxu0 0.0
      %420 = vmatpush.msra.mxu0 0.0
      %421 = vmatpush.msra.mxu0 0.0
      %422 = vmatpush.msra.mxu0 0.0
      %423 = vmatpush.msra.mxu0 0.0
      %424 = vmatpush.msra.mxu0 0.0
      %425 = vmatpush.msra.mxu0 0.0
      %426 = vmatpush.msra.mxu0 0.0
      %427 = vmatpush.msra.mxu0 0.0
      %428 = vmatpush.msra.mxu0 %v371
      %429 = vmatmul.f32.gmra.mxu0 %v408
      %v430 = vpop.f32.mrf.mxu0
      %v431 = vadd.f32 0.0, %v430
      %432 = vmatmul.f32.gmra.mxu0 %v411
      %v433 = vpop.f32.mrf.mxu0
      %v434 = vadd.f32 0.0, %v433
      %435 = vdwg.mxu0
      %v436 = vadd.f32 %v358, %v431
      %v437 = vadd.f32 %v361, %v434
      %v438 = vld [vmem:[%s3] sm:$0xff]
      %v439 = vld [vmem:[%s3 + $0x8] sm:$0xff]
      %441 = vset.pattern.permute.xlu0 0
      %442 = vperm.xlu0 %441, %v438
      %v443 = vpop.permute.xlu0 %442
      %446 = vset.pattern.permute.xlu0 0
      %447 = vperm.xlu0 %446, %v439
      %v448 = vpop.permute.xlu0 %447
      %v450 = vadd.f32 %v402, %v443
      %v451 = vadd.f32 %v403, %v448
      %v452 = vld [vmem:[%s4] sm:$0xff]
      %v453 = vld [vmem:[%s4 + $0x8] sm:$0xff]
      %455 = vset.pattern.permute.xlu0 0
      %456 = vperm.xlu0 %455, %v452
      %v457 = vpop.permute.xlu0 %456
      %460 = vset.pattern.permute.xlu0 0
      %461 = vperm.xlu0 %460, %v453
      %v462 = vpop.permute.xlu0 %461
      %v464 = vadd.f32 %v436, %v457
      %v465 = vadd.f32 %v437, %v462
      %v466 = vxor.u32 %v464, 2147483648
      %v467 = vxor.u32 %v465, 2147483648
      %v468 = vmul.f32 %v466, 1.442695
      %v469 = vpow.pop %v468
      %v470 = vmul.f32 %v467, 1.442695
      %v471 = vpow.pop %v470
      %v472 = vadd.f32 %v469, 1.0
      %v473 = vadd.f32 %v471, 1.0
      %v474 = vrcp.pop %v472
      %v475 = vmul.f32 %v472, %v474
      %v476 = vsub.f32 1.0, %v475
      %v477 = vmul.f32 %v474, %v476
      %v478 = vadd.f32 %v474, %v477
      %vm479 = vweird.f32 %v472
      %vm480 = vweird.f32 %v474
      %vm481 = vmor %vm479, %vm480
      %v482 = vsel %vm481, %v474, %v478
      %v483 = vand.u32 2147483647, %v472
      %vm484 = vcmp.eq.f32.partialorder %v483, 8.507059e+37
      %v485 = vand.u32 %v472, 2147483648
      %v486 = vor.u32 1.1754944e-38, %v485
      %v487 = vsel %vm484, %v486, %v482
      %v488 = vmul.f32 1.0, %v487
      %v489 = vrcp.pop %v473
      %v490 = vmul.f32 %v473, %v489
      %v491 = vsub.f32 1.0, %v490
      %v492 = vmul.f32 %v489, %v491
      %v493 = vadd.f32 %v489, %v492
      %vm494 = vweird.f32 %v473
      %vm495 = vweird.f32 %v489
      %vm496 = vmor %vm494, %vm495
      %v497 = vsel %vm496, %v489, %v493
      %v498 = vand.u32 2147483647, %v473
      %vm499 = vcmp.eq.f32.partialorder %v498, 8.507059e+37
      %v500 = vand.u32 %v473, 2147483648
      %v501 = vor.u32 1.1754944e-38, %v500
      %v502 = vsel %vm499, %v501, %v497
      %v503 = vmul.f32 1.0, %v502
      %v504 = vmul.f32 %v450, %v488
      %v505 = vmul.f32 %v451, %v503
      %506 = vst [vmem:[%s224] sm:$0xff] %v504
      %507 = vst [vmem:[%s224 + $0x8] sm:$0xff] %v505
      %p508 = scmp.lt.s32.totalorder %s16, 1
      %s509 = scalar_select %p508, %s16, 1
      %s510 = smul.addr %s509, 2
      %s511 = smul.addr %s510, 8
      %s512 = scalar_lea.vmem %s5, %s511
      // Predicated region
      $region41: #{stgcn_forward.15} parent=39 // pred_check
        %p513 = pneg %p144
      $region42: #{stgcn_forward.15} parent=39 // pred_check_branch
        %515 = sbr.rel (%p513) target = $region44
      $region43: #{stgcn_forward.15} parent=39 // pred_region
        _
      $region44: #{stgcn_forward.15} parent=39 // pred_fallthru
        _
    $region40: #{stgcn_forward.15} parent=5 // pred_fallthru
      _
    %p516 = scmp.le.s32.totalorder 2, %s11
    // Predicated region
    $region45: #{stgcn_forward.15} parent=5 // pred_check
      %p517 = pneg %p516
    $region46: #{stgcn_forward.15} parent=5 // pred_check_branch
      %519 = sbr.rel (%p517) target = $region48
    $region47: #{stgcn_forward.15} parent=5 // pred_region
      %s520 = ssub.s32 %s11, 2
      // Predicated region
      $region49: #{stgcn_forward.15} parent=47 // pred_check
        %p521 = pneg %p150
      $region50: #{stgcn_forward.15} parent=47 // pred_check_branch
        %523 = sbr.rel (%p521) target = $region52
      $region51: #{stgcn_forward.15} parent=47 // pred_region
        %p524 = scmp.lt.s32.totalorder %s17, 1
        %s525 = scalar_select %p524, %s17, 1
        %s526 = smul.addr %s525, 2
        %s527 = smul.addr %s526, 8
        %s528 = scalar_lea.vmem %s5, %s527
      $region52: #{stgcn_forward.15} parent=47 // pred_fallthru
        _
    $region48: #{stgcn_forward.15} parent=5 // pred_fallthru
      _
  $region6: #{stgcn_forward.15} parent=0 // loop_footer
    %s15 = sadd.s32 1, %s11
  $region7: #{stgcn_forward.15} parent=0 // loop_footer_branch
    %10 = sbr.rel target = $region3
  $region8: #{stgcn_forward.15} parent=0 // loop_exit
    _

// kernel: stgcn_forward.17
$region0: #{stgcn_forward.17}
  #allocation0 [shape = 'u32[]', space=smem, size = 0x4, offset = 0x4, fixed_abs, tag = 'smem constant byte address 0x4 - core index']
  #allocation1 [shape = 'u32[72,128]{1,0:T(1,128)}', space=vmem, size = 0x9000, scoped, tag = 'internal scratch']
  %s0 = inlined_call_operand.vmem [shape: f32[2,16,160], index: 0, kind: input, shape index: {}]
  %s1 = inlined_call_operand.vmem [shape: f32[3,8,16], index: 1, kind: input, shape index: {}]
  %s2 = inlined_call_operand.vmem [shape: f32[3,8,16], index: 2, kind: input, shape index: {}]
  %s3 = inlined_call_operand.vmem [shape: f32[8,1], index: 3, kind: input, shape index: {}]
  %s4 = inlined_call_operand.vmem [shape: f32[8,1], index: 4, kind: input, shape index: {}]
  %s5 = inlined_call_operand.vmem [shape: f32[2,8,128], index: 5, kind: output, shape index: {}]
  %s6 = sld [smem:[#allocation0]]
  $region53: #{stgcn_forward.17} parent=0
    _
  %s8 = ssub.s32 1, %s6
  %s9 = scalar_select 0, %s8, %s6
  loop: start=0, step=1, limit=4
  $region2: #{stgcn_forward.17} parent=0 // loop_pre_header
    _
  $region3: #{stgcn_forward.17} parent=0 // loop_header
    %s11 = sphi 0, %s15
    %p12 = scmp.ge.s32.totalorder %s11, 4
    %s21 = sphi 0, %s23
    %s24 = sphi 0, %s21
    %s25 = sphi 0, %s24
    %s41 = sphi 0, %s25
    %s45 = sphi 0, %s45
    %s47 = sphi 0, %s45
    %s48 = sphi 0, %s47
    %s62 = sphi 0, %s48
    %s66 = sphi 0, %s66
    %s68 = sphi 0, %s66
    %s69 = sphi 0, %s68
    %s83 = sphi 0, %s69
    %s87 = sphi 0, %s87
    %s89 = sphi 0, %s87
    %s90 = sphi 0, %s89
    %s104 = sphi 0, %s90
    %s108 = sphi 0, %s108
    %s110 = sphi 0, %s108
    %s111 = sphi 0, %s110
    %s125 = sphi 0, %s111
    %s131 = sphi 0, %s133
    %s134 = sphi 0, %s131
    %s135 = sphi 0, %s134
    %s151 = sphi 0, %s135
  $region4: #{stgcn_forward.17} parent=0 // loop_header_branch
    %14 = sbr.rel (%p12) target = $region8
  $region5: #{stgcn_forward.17} parent=0 // loop_body
    %s16 = ssub.s32 %s11, 1
    %s17 = ssub.s32 %s11, 2
    %s18 = sadd.s32 %s11, 1
    %s19 = ssub.s32 %s11, %s18
    %p20 = scmp.eq.s32.totalorder %s19, 0
    %s22 = sadd.s32 %s21, 1
    %s23 = scalar_select %p20, %s21, %s22
    %p26 = pneg %p20
    %p27 = scmp.eq.s32.totalorder %s11, 1
    %p28 = por %p26, %p27
    %p29 = scmp.ne.s32.totalorder %s21, %s24
    %p30 = scmp.eq.s32.totalorder %s11, 0
    %p31 = por %p29, %p30
    %p32 = scmp.ne.s32.totalorder %s21, %s24
    %p33 = scmp.eq.s32.totalorder %s16, 1
    %p34 = por %p32, %p33
    %p35 = scmp.ne.s32.totalorder %s24, %s25
    %p36 = scmp.eq.s32.totalorder %s16, 0
    %p37 = por %p35, %p36
    %p38 = scmp.ne.s32.totalorder %s24, %s25
    %p39 = scmp.eq.s32.totalorder %s17, 1
    %p40 = por %p38, %p39
    %p42 = scmp.ne.s32.totalorder %s25, %s41
    %p43 = scmp.eq.s32.totalorder %s17, 0
    %p44 = por %p42, %p43
    %s46 = sadd.s32 %s45, 1
    %p49 = scmp.eq.s32.totalorder %s11, 1
    %p50 = scmp.ne.s32.totalorder %s45, %s47
    %p51 = scmp.eq.s32.totalorder %s11, 0
    %p52 = por %p50, %p51
    %p53 = scmp.ne.s32.totalorder %s45, %s47
    %p54 = scmp.eq.s32.totalorder %s16, 1
    %p55 = por %p53, %p54
    %p56 = scmp.ne.s32.totalorder %s47, %s48
    %p57 = scmp.eq.s32.totalorder %s16, 0
    %p58 = por %p56, %p57
    %p59 = scmp.ne.s32.totalorder %s47, %s48
    %p60 = scmp.eq.s32.totalorder %s17, 1
    %p61 = por %p59, %p60
    %p63 = scmp.ne.s32.totalorder %s48, %s62
    %p64 = scmp.eq.s32.totalorder %s17, 0
    %p65 = por %p63, %p64
    %s67 = sadd.s32 %s66, 1
    %p70 = scmp.eq.s32.totalorder %s11, 1
    %p71 = scmp.ne.s32.totalorder %s66, %s68
    %p72 = scmp.eq.s32.totalorder %s11, 0
    %p73 = por %p71, %p72
    %p74 = scmp.ne.s32.totalorder %s66, %s68
    %p75 = scmp.eq.s32.totalorder %s16, 1
    %p76 = por %p74, %p75
    %p77 = scmp.ne.s32.totalorder %s68, %s69
    %p78 = scmp.eq.s32.totalorder %s16, 0
    %p79 = por %p77, %p78
    %p80 = scmp.ne.s32.totalorder %s68, %s69
    %p81 = scmp.eq.s32.totalorder %s17, 1
    %p82 = por %p80, %p81
    %p84 = scmp.ne.s32.totalorder %s69, %s83
    %p85 = scmp.eq.s32.totalorder %s17, 0
    %p86 = por %p84, %p85
    %s88 = sadd.s32 %s87, 1
    %p91 = scmp.eq.s32.totalorder %s11, 1
    %p92 = scmp.ne.s32.totalorder %s87, %s89
    %p93 = scmp.eq.s32.totalorder %s11, 0
    %p94 = por %p92, %p93
    %p95 = scmp.ne.s32.totalorder %s87, %s89
    %p96 = scmp.eq.s32.totalorder %s16, 1
    %p97 = por %p95, %p96
    %p98 = scmp.ne.s32.totalorder %s89, %s90
    %p99 = scmp.eq.s32.totalorder %s16, 0
    %p100 = por %p98, %p99
    %p101 = scmp.ne.s32.totalorder %s89, %s90
    %p102 = scmp.eq.s32.totalorder %s17, 1
    %p103 = por %p101, %p102
    %p105 = scmp.ne.s32.totalorder %s90, %s104
    %p106 = scmp.eq.s32.totalorder %s17, 0
    %p107 = por %p105, %p106
    %s109 = sadd.s32 %s108, 1
    %p112 = scmp.eq.s32.totalorder %s11, 1
    %p113 = scmp.ne.s32.totalorder %s108, %s110
    %p114 = scmp.eq.s32.totalorder %s11, 0
    %p115 = por %p113, %p114
    %p116 = scmp.ne.s32.totalorder %s108, %s110
    %p117 = scmp.eq.s32.totalorder %s16, 1
    %p118 = por %p116, %p117
    %p119 = scmp.ne.s32.totalorder %s110, %s111
    %p120 = scmp.eq.s32.totalorder %s16, 0
    %p121 = por %p119, %p120
    %p122 = scmp.ne.s32.totalorder %s110, %s111
    %p123 = scmp.eq.s32.totalorder %s17, 1
    %p124 = por %p122, %p123
    %p126 = scmp.ne.s32.totalorder %s111, %s125
    %p127 = scmp.eq.s32.totalorder %s17, 0
    %p128 = por %p126, %p127
    %s129 = ssub.s32 %s11, %s18
    %p130 = scmp.eq.s32.totalorder %s129, 0
    %s132 = sadd.s32 %s131, 1
    %s133 = scalar_select %p130, %s131, %s132
    %p136 = pneg %p130
    %p137 = scmp.eq.s32.totalorder %s11, 1
    %p138 = por %p136, %p137
    %p139 = scmp.ne.s32.totalorder %s131, %s134
    %p140 = scmp.eq.s32.totalorder %s11, 0
    %p141 = por %p139, %p140
    %p142 = scmp.ne.s32.totalorder %s131, %s134
    %p143 = scmp.eq.s32.totalorder %s16, 1
    %p144 = por %p142, %p143
    %p145 = scmp.ne.s32.totalorder %s134, %s135
    %p146 = scmp.eq.s32.totalorder %s16, 0
    %p147 = por %p145, %p146
    %p148 = scmp.ne.s32.totalorder %s134, %s135
    %p149 = scmp.eq.s32.totalorder %s17, 1
    %p150 = por %p148, %p149
    %p152 = scmp.ne.s32.totalorder %s135, %s151
    %p153 = scmp.eq.s32.totalorder %s17, 0
    %p154 = por %p152, %p153
    %p155 = scmp.le.s32.totalorder 1, %s11
    %p156 = scmp.lt.s32.totalorder %s11, 3
    %p157 = pnand %p155, %p156
    %p158 = pneg %p157
    // Predicated region
    $region9: #{stgcn_forward.17} parent=5 // pred_check
      _
    $region10: #{stgcn_forward.17} parent=5 // pred_check_branch
      %160 = sbr.rel (%p157) target = $region12
    $region11: #{stgcn_forward.17} parent=5 // pred_region
      %s161 = ssub.s32 %s11, 1
      // Predicated region
      $region13: #{stgcn_forward.17} parent=11 // pred_check
        %p162 = pneg %p58
      $region14: #{stgcn_forward.17} parent=11 // pred_check_branch
        %164 = sbr.rel (%p162) target = $region16
      $region15: #{stgcn_forward.17} parent=11 // pred_region
        _
      $region16: #{stgcn_forward.17} parent=11 // pred_fallthru
        _
      // Predicated region
      $region17: #{stgcn_forward.17} parent=11 // pred_check
        %p165 = pneg %p79
      $region18: #{stgcn_forward.17} parent=11 // pred_check_branch
        %167 = sbr.rel (%p165) target = $region20
      $region19: #{stgcn_forward.17} parent=11 // pred_region
        _
      $region20: #{stgcn_forward.17} parent=11 // pred_fallthru
        _
      // Predicated region
      $region21: #{stgcn_forward.17} parent=11 // pred_check
        %p168 = pneg %p100
      $region22: #{stgcn_forward.17} parent=11 // pred_check_branch
        %170 = sbr.rel (%p168) target = $region24
      $region23: #{stgcn_forward.17} parent=11 // pred_region
        _
      $region24: #{stgcn_forward.17} parent=11 // pred_fallthru
        _
      // Predicated region
      $region25: #{stgcn_forward.17} parent=11 // pred_check
        %p171 = pneg %p121
      $region26: #{stgcn_forward.17} parent=11 // pred_check_branch
        %173 = sbr.rel (%p171) target = $region28
      $region27: #{stgcn_forward.17} parent=11 // pred_region
        _
      $region28: #{stgcn_forward.17} parent=11 // pred_fallthru
        _
    $region12: #{stgcn_forward.17} parent=5 // pred_fallthru
      _
    %p174 = scmp.lt.s32.totalorder %s11, 2
    // Predicated region
    $region29: #{stgcn_forward.17} parent=5 // pred_check
      %p175 = pneg %p174
    $region30: #{stgcn_forward.17} parent=5 // pred_check_branch
      %177 = sbr.rel (%p175) target = $region32
    $region31: #{stgcn_forward.17} parent=5 // pred_region
      // Predicated region
      $region33: #{stgcn_forward.17} parent=31 // pred_check
        %p178 = pneg %p31
      $region34: #{stgcn_forward.17} parent=31 // pred_check_branch
        %180 = sbr.rel (%p178) target = $region36
      $region35: #{stgcn_forward.17} parent=31 // pred_region
        %p181 = scmp.lt.s32.totalorder %s11, 1
        %s182 = scalar_select %p181, %s11, 1
        %s183 = smul.addr %s182, 4
        %s184 = smul.addr %s183, 8
        %s185 = scalar_lea.vmem %s0, %s184
      $region36: #{stgcn_forward.17} parent=31 // pred_fallthru
        _
    $region32: #{stgcn_forward.17} parent=5 // pred_fallthru
      _
    %p186 = scmp.le.s32.totalorder 1, %s11
    %p187 = scmp.lt.s32.totalorder %s11, 3
    %p188 = pnand %p186, %p187
    %p189 = pneg %p188
    // Predicated region
    $region37: #{stgcn_forward.17} parent=5 // pred_check
      _
    $region38: #{stgcn_forward.17} parent=5 // pred_check_branch
      %191 = sbr.rel (%p188) target = $region40
    $region39: #{stgcn_forward.17} parent=5 // pred_region
      %s192 = ssub.s32 %s11, 1
      %p193 = scmp.lt.s32.totalorder %s16, 1
      %s194 = scalar_select %p193, %s16, 1
      %s195 = smul.addr %s194, 4
      %s196 = smul.addr %s195, 8
      %s197 = scalar_lea.vmem %s0, %s196
      %p198 = pneg %p37
      %p199 = pneg %p34
      %p200 = pneg %p58
      %p201 = pneg %p55
      %p202 = pneg %p79
      %p203 = pneg %p76
      %p204 = pneg %p100
      %p205 = pneg %p97
      %p206 = pneg %p121
      %p207 = pneg %p118
      %p208 = pneg %p147
      %p209 = pneg %p144
      %p210 = scmp.lt.s32.totalorder %s16, 1
      %s211 = scalar_select %p210, %s16, 1
      %s212 = smul.addr %s211, 8
      %s213 = scalar_lea.vmem %s5, %s212
      %p214 = scmp.lt.s32.totalorder %s16, 1
      %s215 = scalar_select %p214, %s16, 1
      %s216 = smul.addr %s215, 4
      %s217 = smul.addr %s216, 8
      %s218 = scalar_lea.vmem %s0, %s217
      %p219 = scmp.lt.s32.totalorder %s16, 1
      %s220 = scalar_select %p219, %s16, 1
      %s221 = smul.addr %s220, 8
      %s222 = scalar_lea.vmem %s5, %s221
      %v223 = vld [vmem:[%s218] sm:$0xff]
      %v224 = vld [vmem:[%s218 + $0x8] sm:$0xff]
      %v225 = vld [vmem:[%s218 + $0x10] sm:$0xff]
      %v226 = vld [vmem:[%s218 + $0x18] sm:$0xff]
      %v227 = vld [vmem:[%s1] sm:$0xff]
      %v228 = vld [vmem:[%s2] sm:$0xff]
      %s229 = scalar_lea.vmem %s1, 8
      %v230 = vld [vmem:[%s229] sm:$0xff]
      %235 = vrot.lane.b32.xlu0 %v223, 112
      %v236 = vpop.permute.xlu0 %235
      %237 = vrot.lane.b32.xlu0 %v224, 112
      %v238 = vpop.permute.xlu0 %237
      %239 = vrot.lane.b32.xlu0 %v225, 112
      %v240 = vpop.permute.xlu0 %239
      %241 = vrot.lane.b32.xlu0 %v226, 112
      %v242 = vpop.permute.xlu0 %241
      %vm243 = vcmask 916480
      %v244 = vsel %vm243, %v236, %v238
      %v245 = vsel %vm243, %v240, %v242
      %vm248 = vcmask 130048
      %v250 = vsel %vm248, %v230, 0
      %252 = vmatpush.msra.mxu0 0.0
      %253 = vmatpush.msra.mxu0 0.0
      %254 = vmatpush.msra.mxu0 0.0
      %255 = vmatpush.msra.mxu0 0.0
      %256 = vmatpush.msra.mxu0 0.0
      %257 = vmatpush.msra.mxu0 0.0
      %258 = vmatpush.msra.mxu0 0.0
      %259 = vmatpush.msra.mxu0 0.0
      %260 = vmatpush.msra.mxu0 0.0
      %261 = vmatpush.msra.mxu0 0.0
      %262 = vmatpush.msra.mxu0 0.0
      %263 = vmatpush.msra.mxu0 0.0
      %264 = vmatpush.msra.mxu0 0.0
      %265 = vmatpush.msra.mxu0 0.0
      %266 = vmatpush.msra.mxu0 %v245
      %267 = vmatpush.msra.mxu0 %v244
      %268 = vmatmul.f32.gmra.mxu0 %v250
      %v269 = vpop.f32.mrf.mxu0
      %v270 = vadd.f32 0.0, %v269
      %271 = vdwg.mxu0
      %v273 = vsel %vm248, %v227, 0
      %275 = vmatpush.msra.mxu0 0.0
      %276 = vmatpush.msra.mxu0 0.0
      %277 = vmatpush.msra.mxu0 0.0
      %278 = vmatpush.msra.mxu0 0.0
      %279 = vmatpush.msra.mxu0 0.0
      %280 = vmatpush.msra.mxu0 0.0
      %281 = vmatpush.msra.mxu0 0.0
      %282 = vmatpush.msra.mxu0 0.0
      %283 = vmatpush.msra.mxu0 0.0
      %284 = vmatpush.msra.mxu0 0.0
      %285 = vmatpush.msra.mxu0 0.0
      %286 = vmatpush.msra.mxu0 0.0
      %287 = vmatpush.msra.mxu0 0.0
      %288 = vmatpush.msra.mxu0 0.0
      %289 = vmatpush.msra.mxu0 %v225
      %290 = vmatpush.msra.mxu0 %v223
      %291 = vmatmul.f32.gmra.mxu0 %v273
      %v292 = vpop.f32.mrf.mxu0
      %v293 = vadd.f32 %v270, %v292
      %294 = vdwg.mxu0
      %s295 = scalar_lea.vmem %s2, 8
      %v296 = vld [vmem:[%s295] sm:$0xff]
      %v298 = vsel %vm248, %v296, 0
      %300 = vmatpush.msra.mxu0 0.0
      %301 = vmatpush.msra.mxu0 0.0
      %302 = vmatpush.msra.mxu0 0.0
      %303 = vmatpush.msra.mxu0 0.0
      %304 = vmatpush.msra.mxu0 0.0
      %305 = vmatpush.msra.mxu0 0.0
      %306 = vmatpush.msra.mxu0 0.0
      %307 = vmatpush.msra.mxu0 0.0
      %308 = vmatpush.msra.mxu0 0.0
      %309 = vmatpush.msra.mxu0 0.0
      %310 = vmatpush.msra.mxu0 0.0
      %311 = vmatpush.msra.mxu0 0.0
      %312 = vmatpush.msra.mxu0 0.0
      %313 = vmatpush.msra.mxu0 0.0
      %314 = vmatpush.msra.mxu0 %v245
      %315 = vmatpush.msra.mxu0 %v244
      %316 = vmatmul.f32.gmra.mxu0 %v298
      %v317 = vpop.f32.mrf.mxu0
      %v318 = vadd.f32 0.0, %v317
      %319 = vdwg.mxu0
      %v321 = vsel %vm248, %v228, 0
      %323 = vmatpush.msra.mxu0 0.0
      %324 = vmatpush.msra.mxu0 0.0
      %325 = vmatpush.msra.mxu0 0.0
      %326 = vmatpush.msra.mxu0 0.0
      %327 = vmatpush.msra.mxu0 0.0
      %328 = vmatpush.msra.mxu0 0.0
      %329 = vmatpush.msra.mxu0 0.0
      %330 = vmatpush.msra.mxu0 0.0
      %331 = vmatpush.msra.mxu0 0.0
      %332 = vmatpush.msra.mxu0 0.0
      %333 = vmatpush.msra.mxu0 0.0
      %334 = vmatpush.msra.mxu0 0.0
      %335 = vmatpush.msra.mxu0 0.0
      %336 = vmatpush.msra.mxu0 0.0
      %337 = vmatpush.msra.mxu0 %v225
      %338 = vmatpush.msra.mxu0 %v223
      %339 = vmatmul.f32.gmra.mxu0 %v321
      %v340 = vpop.f32.mrf.mxu0
      %v341 = vadd.f32 %v318, %v340
      %342 = vdwg.mxu0
      %s343 = scalar_lea.vmem %s1, 16
      %v344 = vld [vmem:[%s343] sm:$0xff]
      %345 = vrot.lane.b32.xlu0 %v223, 96
      %v346 = vpop.permute.xlu0 %345
      %347 = vrot.lane.b32.xlu0 %v224, 96
      %v348 = vpop.permute.xlu0 %347
      %349 = vrot.lane.b32.xlu0 %v225, 96
      %v350 = vpop.permute.xlu0 %349
      %351 = vrot.lane.b32.xlu0 %v226, 96
      %v352 = vpop.permute.xlu0 %351
      %vm353 = vcmask 785408
      %v354 = vsel %vm353, %v346, %v348
      %v355 = vsel %vm353, %v350, %v352
      %v359 = vsel %vm248, %v344, 0
      %361 = vmatpush.msra.mxu0 0.0
      %362 = vmatpush.msra.mxu0 0.0
      %363 = vmatpush.msra.mxu0 0.0
      %364 = vmatpush.msra.mxu0 0.0
      %365 = vmatpush.msra.mxu0 0.0
      %366 = vmatpush.msra.mxu0 0.0
      %367 = vmatpush.msra.mxu0 0.0
      %368 = vmatpush.msra.mxu0 0.0
      %369 = vmatpush.msra.mxu0 0.0
      %370 = vmatpush.msra.mxu0 0.0
      %371 = vmatpush.msra.mxu0 0.0
      %372 = vmatpush.msra.mxu0 0.0
      %373 = vmatpush.msra.mxu0 0.0
      %374 = vmatpush.msra.mxu0 0.0
      %375 = vmatpush.msra.mxu0 %v355
      %376 = vmatpush.msra.mxu0 %v354
      %377 = vmatmul.f32.gmra.mxu0 %v359
      %v378 = vpop.f32.mrf.mxu0
      %v379 = vadd.f32 0.0, %v378
      %380 = vdwg.mxu0
      %v381 = vadd.f32 %v293, %v379
      %s382 = scalar_lea.vmem %s2, 16
      %v383 = vld [vmem:[%s382] sm:$0xff]
      %v385 = vsel %vm248, %v383, 0
      %387 = vmatpush.msra.mxu0 0.0
      %388 = vmatpush.msra.mxu0 0.0
      %389 = vmatpush.msra.mxu0 0.0
      %390 = vmatpush.msra.mxu0 0.0
      %391 = vmatpush.msra.mxu0 0.0
      %392 = vmatpush.msra.mxu0 0.0
      %393 = vmatpush.msra.mxu0 0.0
      %394 = vmatpush.msra.mxu0 0.0
      %395 = vmatpush.msra.mxu0 0.0
      %396 = vmatpush.msra.mxu0 0.0
      %397 = vmatpush.msra.mxu0 0.0
      %398 = vmatpush.msra.mxu0 0.0
      %399 = vmatpush.msra.mxu0 0.0
      %400 = vmatpush.msra.mxu0 0.0
      %401 = vmatpush.msra.mxu0 %v355
      %402 = vmatpush.msra.mxu0 %v354
      %403 = vmatmul.f32.gmra.mxu0 %v385
      %v404 = vpop.f32.mrf.mxu0
      %v405 = vadd.f32 0.0, %v404
      %406 = vdwg.mxu0
      %v407 = vadd.f32 %v341, %v405
      %v408 = vld [vmem:[%s3] sm:$0xff]
      %410 = vset.pattern.permute.xlu0 0
      %411 = vperm.xlu0 %410, %v408
      %v412 = vpop.permute.xlu0 %411
      %v414 = vadd.f32 %v381, %v412
      %v415 = vld [vmem:[%s4] sm:$0xff]
      %417 = vset.pattern.permute.xlu0 0
      %418 = vperm.xlu0 %417, %v415
      %v419 = vpop.permute.xlu0 %418
      %v421 = vadd.f32 %v407, %v419
      %v422 = vxor.u32 %v421, 2147483648
      %v423 = vmul.f32 %v422, 1.442695
      %v424 = vpow.pop %v423
      %v425 = vadd.f32 %v424, 1.0
      %v426 = vrcp.pop %v425
      %v427 = vmul.f32 %v425, %v426
      %v428 = vsub.f32 1.0, %v427
      %v429 = vmul.f32 %v426, %v428
      %v430 = vadd.f32 %v426, %v429
      %vm431 = vweird.f32 %v425
      %vm432 = vweird.f32 %v426
      %vm433 = vmor %vm431, %vm432
      %v434 = vsel %vm433, %v426, %v430
      %v435 = vand.u32 2147483647, %v425
      %vm436 = vcmp.eq.f32.partialorder %v435, 8.507059e+37
      %v437 = vand.u32 %v425, 2147483648
      %v438 = vor.u32 1.1754944e-38, %v437
      %v439 = vsel %vm436, %v438, %v434
      %v440 = vmul.f32 1.0, %v439
      %v441 = vmul.f32 %v414, %v440
      %442 = vst [vmem:[%s222] sm:$0xff] %v441
      %p443 = scmp.lt.s32.totalorder %s16, 1
      %s444 = scalar_select %p443, %s16, 1
      %s445 = smul.addr %s444, 8
      %s446 = scalar_lea.vmem %s5, %s445
      // Predicated region
      $region41: #{stgcn_forward.17} parent=39 // pred_check
        %p447 = pneg %p144
      $region42: #{stgcn_forward.17} parent=39 // pred_check_branch
        %449 = sbr.rel (%p447) target = $region44
      $region43: #{stgcn_forward.17} parent=39 // pred_region
        _
      $region44: #{stgcn_forward.17} parent=39 // pred_fallthru
        _
    $region40: #{stgcn_forward.17} parent=5 // pred_fallthru
      _
    %p450 = scmp.le.s32.totalorder 2, %s11
    // Predicated region
    $region45: #{stgcn_forward.17} parent=5 // pred_check
      %p451 = pneg %p450
    $region46: #{stgcn_forward.17} parent=5 // pred_check_branch
      %453 = sbr.rel (%p451) target = $region48
    $region47: #{stgcn_forward.17} parent=5 // pred_region
      %s454 = ssub.s32 %s11, 2
      // Predicated region
      $region49: #{stgcn_forward.17} parent=47 // pred_check
        %p455 = pneg %p150
      $region50: #{stgcn_forward.17} parent=47 // pred_check_branch
        %457 = sbr.rel (%p455) target = $region52
      $region51: #{stgcn_forward.17} parent=47 // pred_region
        %p458 = scmp.lt.s32.totalorder %s17, 1
        %s459 = scalar_select %p458, %s17, 1
        %s460 = smul.addr %s459, 8
        %s461 = scalar_lea.vmem %s5, %s460
      $region52: #{stgcn_forward.17} parent=47 // pred_fallthru
        _
    $region48: #{stgcn_forward.17} parent=5 // pred_fallthru
      _
  $region6: #{stgcn_forward.17} parent=0 // loop_footer
    %s15 = sadd.s32 1, %s11
  $region7: #{stgcn_forward.17} parent=0 // loop_footer_branch
    %10 = sbr.rel target = $region3
  $region8: #{stgcn_forward.17} parent=0 // loop_exit
    _

// kernel: stgcn_forward.20
$region0: #{stgcn_forward.20}
  #allocation0 [shape = 'u32[]', space=smem, size = 0x4, offset = 0x4, fixed_abs, tag = 'smem constant byte address 0x4 - core index']
  #allocation1 [shape = 'u32[72,128]{1,0:T(1,128)}', space=vmem, size = 0x9000, scoped, tag = 'internal scratch']
  %s0 = inlined_call_operand.vmem [shape: f32[2,8,160], index: 0, kind: input, shape index: {}]
  %s1 = inlined_call_operand.vmem [shape: f32[3,32,8], index: 1, kind: input, shape index: {}]
  %s2 = inlined_call_operand.vmem [shape: f32[3,32,8], index: 2, kind: input, shape index: {}]
  %s3 = inlined_call_operand.vmem [shape: f32[32,1], index: 3, kind: input, shape index: {}]
  %s4 = inlined_call_operand.vmem [shape: f32[32,1], index: 4, kind: input, shape index: {}]
  %s5 = inlined_call_operand.vmem [shape: f32[2,32,128], index: 5, kind: output, shape index: {}]
  %s6 = sld [smem:[#allocation0]]
  $region53: #{stgcn_forward.20} parent=0
    _
  %s8 = ssub.s32 1, %s6
  %s9 = scalar_select 0, %s8, %s6
  loop: start=0, step=1, limit=4
  $region2: #{stgcn_forward.20} parent=0 // loop_pre_header
    _
  $region3: #{stgcn_forward.20} parent=0 // loop_header
    %s11 = sphi 0, %s15
    %p12 = scmp.ge.s32.totalorder %s11, 4
    %s21 = sphi 0, %s23
    %s24 = sphi 0, %s21
    %s25 = sphi 0, %s24
    %s41 = sphi 0, %s25
    %s45 = sphi 0, %s45
    %s47 = sphi 0, %s45
    %s48 = sphi 0, %s47
    %s62 = sphi 0, %s48
    %s66 = sphi 0, %s66
    %s68 = sphi 0, %s66
    %s69 = sphi 0, %s68
    %s83 = sphi 0, %s69
    %s87 = sphi 0, %s87
    %s89 = sphi 0, %s87
    %s90 = sphi 0, %s89
    %s104 = sphi 0, %s90
    %s108 = sphi 0, %s108
    %s110 = sphi 0, %s108
    %s111 = sphi 0, %s110
    %s125 = sphi 0, %s111
    %s131 = sphi 0, %s133
    %s134 = sphi 0, %s131
    %s135 = sphi 0, %s134
    %s151 = sphi 0, %s135
  $region4: #{stgcn_forward.20} parent=0 // loop_header_branch
    %14 = sbr.rel (%p12) target = $region8
  $region5: #{stgcn_forward.20} parent=0 // loop_body
    %s16 = ssub.s32 %s11, 1
    %s17 = ssub.s32 %s11, 2
    %s18 = sadd.s32 %s11, 1
    %s19 = ssub.s32 %s11, %s18
    %p20 = scmp.eq.s32.totalorder %s19, 0
    %s22 = sadd.s32 %s21, 1
    %s23 = scalar_select %p20, %s21, %s22
    %p26 = pneg %p20
    %p27 = scmp.eq.s32.totalorder %s11, 1
    %p28 = por %p26, %p27
    %p29 = scmp.ne.s32.totalorder %s21, %s24
    %p30 = scmp.eq.s32.totalorder %s11, 0
    %p31 = por %p29, %p30
    %p32 = scmp.ne.s32.totalorder %s21, %s24
    %p33 = scmp.eq.s32.totalorder %s16, 1
    %p34 = por %p32, %p33
    %p35 = scmp.ne.s32.totalorder %s24, %s25
    %p36 = scmp.eq.s32.totalorder %s16, 0
    %p37 = por %p35, %p36
    %p38 = scmp.ne.s32.totalorder %s24, %s25
    %p39 = scmp.eq.s32.totalorder %s17, 1
    %p40 = por %p38, %p39
    %p42 = scmp.ne.s32.totalorder %s25, %s41
    %p43 = scmp.eq.s32.totalorder %s17, 0
    %p44 = por %p42, %p43
    %s46 = sadd.s32 %s45, 1
    %p49 = scmp.eq.s32.totalorder %s11, 1
    %p50 = scmp.ne.s32.totalorder %s45, %s47
    %p51 = scmp.eq.s32.totalorder %s11, 0
    %p52 = por %p50, %p51
    %p53 = scmp.ne.s32.totalorder %s45, %s47
    %p54 = scmp.eq.s32.totalorder %s16, 1
    %p55 = por %p53, %p54
    %p56 = scmp.ne.s32.totalorder %s47, %s48
    %p57 = scmp.eq.s32.totalorder %s16, 0
    %p58 = por %p56, %p57
    %p59 = scmp.ne.s32.totalorder %s47, %s48
    %p60 = scmp.eq.s32.totalorder %s17, 1
    %p61 = por %p59, %p60
    %p63 = scmp.ne.s32.totalorder %s48, %s62
    %p64 = scmp.eq.s32.totalorder %s17, 0
    %p65 = por %p63, %p64
    %s67 = sadd.s32 %s66, 1
    %p70 = scmp.eq.s32.totalorder %s11, 1
    %p71 = scmp.ne.s32.totalorder %s66, %s68
    %p72 = scmp.eq.s32.totalorder %s11, 0
    %p73 = por %p71, %p72
    %p74 = scmp.ne.s32.totalorder %s66, %s68
    %p75 = scmp.eq.s32.totalorder %s16, 1
    %p76 = por %p74, %p75
    %p77 = scmp.ne.s32.totalorder %s68, %s69
    %p78 = scmp.eq.s32.totalorder %s16, 0
    %p79 = por %p77, %p78
    %p80 = scmp.ne.s32.totalorder %s68, %s69
    %p81 = scmp.eq.s32.totalorder %s17, 1
    %p82 = por %p80, %p81
    %p84 = scmp.ne.s32.totalorder %s69, %s83
    %p85 = scmp.eq.s32.totalorder %s17, 0
    %p86 = por %p84, %p85
    %s88 = sadd.s32 %s87, 1
    %p91 = scmp.eq.s32.totalorder %s11, 1
    %p92 = scmp.ne.s32.totalorder %s87, %s89
    %p93 = scmp.eq.s32.totalorder %s11, 0
    %p94 = por %p92, %p93
    %p95 = scmp.ne.s32.totalorder %s87, %s89
    %p96 = scmp.eq.s32.totalorder %s16, 1
    %p97 = por %p95, %p96
    %p98 = scmp.ne.s32.totalorder %s89, %s90
    %p99 = scmp.eq.s32.totalorder %s16, 0
    %p100 = por %p98, %p99
    %p101 = scmp.ne.s32.totalorder %s89, %s90
    %p102 = scmp.eq.s32.totalorder %s17, 1
    %p103 = por %p101, %p102
    %p105 = scmp.ne.s32.totalorder %s90, %s104
    %p106 = scmp.eq.s32.totalorder %s17, 0
    %p107 = por %p105, %p106
    %s109 = sadd.s32 %s108, 1
    %p112 = scmp.eq.s32.totalorder %s11, 1
    %p113 = scmp.ne.s32.totalorder %s108, %s110
    %p114 = scmp.eq.s32.totalorder %s11, 0
    %p115 = por %p113, %p114
    %p116 = scmp.ne.s32.totalorder %s108, %s110
    %p117 = scmp.eq.s32.totalorder %s16, 1
    %p118 = por %p116, %p117
    %p119 = scmp.ne.s32.totalorder %s110, %s111
    %p120 = scmp.eq.s32.totalorder %s16, 0
    %p121 = por %p119, %p120
    %p122 = scmp.ne.s32.totalorder %s110, %s111
    %p123 = scmp.eq.s32.totalorder %s17, 1
    %p124 = por %p122, %p123
    %p126 = scmp.ne.s32.totalorder %s111, %s125
    %p127 = scmp.eq.s32.totalorder %s17, 0
    %p128 = por %p126, %p127
    %s129 = ssub.s32 %s11, %s18
    %p130 = scmp.eq.s32.totalorder %s129, 0
    %s132 = sadd.s32 %s131, 1
    %s133 = scalar_select %p130, %s131, %s132
    %p136 = pneg %p130
    %p137 = scmp.eq.s32.totalorder %s11, 1
    %p138 = por %p136, %p137
    %p139 = scmp.ne.s32.totalorder %s131, %s134
    %p140 = scmp.eq.s32.totalorder %s11, 0
    %p141 = por %p139, %p140
    %p142 = scmp.ne.s32.totalorder %s131, %s134
    %p143 = scmp.eq.s32.totalorder %s16, 1
    %p144 = por %p142, %p143
    %p145 = scmp.ne.s32.totalorder %s134, %s135
    %p146 = scmp.eq.s32.totalorder %s16, 0
    %p147 = por %p145, %p146
    %p148 = scmp.ne.s32.totalorder %s134, %s135
    %p149 = scmp.eq.s32.totalorder %s17, 1
    %p150 = por %p148, %p149
    %p152 = scmp.ne.s32.totalorder %s135, %s151
    %p153 = scmp.eq.s32.totalorder %s17, 0
    %p154 = por %p152, %p153
    %p155 = scmp.le.s32.totalorder 1, %s11
    %p156 = scmp.lt.s32.totalorder %s11, 3
    %p157 = pnand %p155, %p156
    %p158 = pneg %p157
    // Predicated region
    $region9: #{stgcn_forward.20} parent=5 // pred_check
      _
    $region10: #{stgcn_forward.20} parent=5 // pred_check_branch
      %160 = sbr.rel (%p157) target = $region12
    $region11: #{stgcn_forward.20} parent=5 // pred_region
      %s161 = ssub.s32 %s11, 1
      // Predicated region
      $region13: #{stgcn_forward.20} parent=11 // pred_check
        %p162 = pneg %p58
      $region14: #{stgcn_forward.20} parent=11 // pred_check_branch
        %164 = sbr.rel (%p162) target = $region16
      $region15: #{stgcn_forward.20} parent=11 // pred_region
        _
      $region16: #{stgcn_forward.20} parent=11 // pred_fallthru
        _
      // Predicated region
      $region17: #{stgcn_forward.20} parent=11 // pred_check
        %p165 = pneg %p79
      $region18: #{stgcn_forward.20} parent=11 // pred_check_branch
        %167 = sbr.rel (%p165) target = $region20
      $region19: #{stgcn_forward.20} parent=11 // pred_region
        _
      $region20: #{stgcn_forward.20} parent=11 // pred_fallthru
        _
      // Predicated region
      $region21: #{stgcn_forward.20} parent=11 // pred_check
        %p168 = pneg %p100
      $region22: #{stgcn_forward.20} parent=11 // pred_check_branch
        %170 = sbr.rel (%p168) target = $region24
      $region23: #{stgcn_forward.20} parent=11 // pred_region
        _
      $region24: #{stgcn_forward.20} parent=11 // pred_fallthru
        _
      // Predicated region
      $region25: #{stgcn_forward.20} parent=11 // pred_check
        %p171 = pneg %p121
      $region26: #{stgcn_forward.20} parent=11 // pred_check_branch
        %173 = sbr.rel (%p171) target = $region28
      $region27: #{stgcn_forward.20} parent=11 // pred_region
        _
      $region28: #{stgcn_forward.20} parent=11 // pred_fallthru
        _
    $region12: #{stgcn_forward.20} parent=5 // pred_fallthru
      _
    %p174 = scmp.lt.s32.totalorder %s11, 2
    // Predicated region
    $region29: #{stgcn_forward.20} parent=5 // pred_check
      %p175 = pneg %p174
    $region30: #{stgcn_forward.20} parent=5 // pred_check_branch
      %177 = sbr.rel (%p175) target = $region32
    $region31: #{stgcn_forward.20} parent=5 // pred_region
      // Predicated region
      $region33: #{stgcn_forward.20} parent=31 // pred_check
        %p178 = pneg %p31
      $region34: #{stgcn_forward.20} parent=31 // pred_check_branch
        %180 = sbr.rel (%p178) target = $region36
      $region35: #{stgcn_forward.20} parent=31 // pred_region
        %p181 = scmp.lt.s32.totalorder %s11, 1
        %s182 = scalar_select %p181, %s11, 1
        %s183 = smul.addr %s182, 2
        %s184 = smul.addr %s183, 8
        %s185 = scalar_lea.vmem %s0, %s184
      $region36: #{stgcn_forward.20} parent=31 // pred_fallthru
        _
    $region32: #{stgcn_forward.20} parent=5 // pred_fallthru
      _
    %p186 = scmp.le.s32.totalorder 1, %s11
    %p187 = scmp.lt.s32.totalorder %s11, 3
    %p188 = pnand %p186, %p187
    %p189 = pneg %p188
    // Predicated region
    $region37: #{stgcn_forward.20} parent=5 // pred_check
      _
    $region38: #{stgcn_forward.20} parent=5 // pred_check_branch
      %191 = sbr.rel (%p188) target = $region40
    $region39: #{stgcn_forward.20} parent=5 // pred_region
      %s192 = ssub.s32 %s11, 1
      %p193 = scmp.lt.s32.totalorder %s16, 1
      %s194 = scalar_select %p193, %s16, 1
      %s195 = smul.addr %s194, 2
      %s196 = smul.addr %s195, 8
      %s197 = scalar_lea.vmem %s0, %s196
      %p198 = pneg %p37
      %p199 = pneg %p34
      %p200 = pneg %p58
      %p201 = pneg %p55
      %p202 = pneg %p79
      %p203 = pneg %p76
      %p204 = pneg %p100
      %p205 = pneg %p97
      %p206 = pneg %p121
      %p207 = pneg %p118
      %p208 = pneg %p147
      %p209 = pneg %p144
      %p210 = scmp.lt.s32.totalorder %s16, 1
      %s211 = scalar_select %p210, %s16, 1
      %s212 = smul.addr %s211, 4
      %s213 = smul.addr %s212, 8
      %s214 = scalar_lea.vmem %s5, %s213
      %p215 = scmp.lt.s32.totalorder %s16, 1
      %s216 = scalar_select %p215, %s16, 1
      %s217 = smul.addr %s216, 2
      %s218 = smul.addr %s217, 8
      %s219 = scalar_lea.vmem %s0, %s218
      %p220 = scmp.lt.s32.totalorder %s16, 1
      %s221 = scalar_select %p220, %s16, 1
      %s222 = smul.addr %s221, 4
      %s223 = smul.addr %s222, 8
      %s224 = scalar_lea.vmem %s5, %s223
      %v225 = vld [vmem:[%s219] sm:$0xff]
      %v226 = vld [vmem:[%s219 + $0x8] sm:$0xff]
      %v227 = vld [vmem:[%s1] sm:$0xff]
      %v228 = vld [vmem:[%s1 + $0x8] sm:$0xff]
      %v229 = vld [vmem:[%s1 + $0x10] sm:$0xff]
      %v230 = vld [vmem:[%s1 + $0x18] sm:$0xff]
      %v231 = vld [vmem:[%s2] sm:$0xff]
      %v232 = vld [vmem:[%s2 + $0x8] sm:$0xff]
      %v233 = vld [vmem:[%s2 + $0x10] sm:$0xff]
      %v234 = vld [vmem:[%s2 + $0x18] sm:$0xff]
      %s235 = scalar_lea.vmem %s1, 32
      %v236 = vld [vmem:[%s235] sm:$0xff]
      %v237 = vld [vmem:[%s235 + $0x8] sm:$0xff]
      %v238 = vld [vmem:[%s235 + $0x10] sm:$0xff]
      %v239 = vld [vmem:[%s235 + $0x18] sm:$0xff]
      %242 = vrot.lane.b32.xlu0 %v225, 112
      %v243 = vpop.permute.xlu0 %242
      %244 = vrot.lane.b32.xlu0 %v226, 112
      %v245 = vpop.permute.xlu0 %244
      %vm246 = vcmask 916480
      %v247 = vsel %vm246, %v243, %v245
      %vm249 = vcmask 64512
      %v251 = vsel %vm249, %v236, 0
      %v254 = vsel %vm249, %v237, 0
      %v257 = vsel %vm249, %v238, 0
      %v260 = vsel %vm249, %v239, 0
      %262 = vmatpush.msra.mxu0 0.0
      %263 = vmatpush.msra.mxu0 0.0
      %264 = vmatpush.msra.mxu0 0.0
      %265 = vmatpush.msra.mxu0 0.0
      %266 = vmatpush.msra.mxu0 0.0
      %267 = vmatpush.msra.mxu0 0.0
      %268 = vmatpush.msra.mxu0 0.0
      %269 = vmatpush.msra.mxu0 0.0
      %270 = vmatpush.msra.mxu0 0.0
      %271 = vmatpush.msra.mxu0 0.0
      %272 = vmatpush.msra.mxu0 0.0
      %273 = vmatpush.msra.mxu0 0.0
      %274 = vmatpush.msra.mxu0 0.0
      %275 = vmatpush.msra.mxu0 0.0
      %276 = vmatpush.msra.mxu0 0.0
      %277 = vmatpush.msra.mxu0 %v247
      %278 = vmatmul.f32.gmra.mxu0 %v251
      %v279 = vpop.f32.mrf.mxu0
      %v280 = vadd.f32 0.0, %v279
      %281 = vmatmul.f32.gmra.mxu0 %v254
      %v282 = vpop.f32.mrf.mxu0
      %v283 = vadd.f32 0.0, %v282
      %284 = vmatmul.f32.gmra.mxu0 %v257
      %v285 = vpop.f32.mrf.mxu0
      %v286 = vadd.f32 0.0, %v285
      %287 = vmatmul.f32.gmra.mxu0 %v260
      %v288 = vpop.f32.mrf.mxu0
      %v289 = vadd.f32 0.0, %v288
      %290 = vdwg.mxu0
      %v292 = vsel %vm249, %v227, 0
      %v295 = vsel %vm249, %v228, 0
      %v298 = vsel %vm249, %v229, 0
      %v301 = vsel %vm249, %v230, 0
      %303 = vmatpush.msra.mxu0 0.0
      %304 = vmatpush.msra.mxu0 0.0
      %305 = vmatpush.msra.mxu0 0.0
      %306 = vmatpush.msra.mxu0 0.0
      %307 = vmatpush.msra.mxu0 0.0
      %308 = vmatpush.msra.mxu0 0.0
      %309 = vmatpush.msra.mxu0 0.0
      %310 = vmatpush.msra.mxu0 0.0
      %311 = vmatpush.msra.mxu0 0.0
      %312 = vmatpush.msra.mxu0 0.0
      %313 = vmatpush.msra.mxu0 0.0
      %314 = vmatpush.msra.mxu0 0.0
      %315 = vmatpush.msra.mxu0 0.0
      %316 = vmatpush.msra.mxu0 0.0
      %317 = vmatpush.msra.mxu0 0.0
      %318 = vmatpush.msra.mxu0 %v225
      %319 = vmatmul.f32.gmra.mxu0 %v292
      %v320 = vpop.f32.mrf.mxu0
      %v321 = vadd.f32 %v280, %v320
      %322 = vmatmul.f32.gmra.mxu0 %v295
      %v323 = vpop.f32.mrf.mxu0
      %v324 = vadd.f32 %v283, %v323
      %325 = vmatmul.f32.gmra.mxu0 %v298
      %v326 = vpop.f32.mrf.mxu0
      %v327 = vadd.f32 %v286, %v326
      %328 = vmatmul.f32.gmra.mxu0 %v301
      %v329 = vpop.f32.mrf.mxu0
      %v330 = vadd.f32 %v289, %v329
      %331 = vdwg.mxu0
      %s332 = scalar_lea.vmem %s2, 32
      %v333 = vld [vmem:[%s332] sm:$0xff]
      %v334 = vld [vmem:[%s332 + $0x8] sm:$0xff]
      %v335 = vld [vmem:[%s332 + $0x10] sm:$0xff]
      %v336 = vld [vmem:[%s332 + $0x18] sm:$0xff]
      %v338 = vsel %vm249, %v333, 0
      %v341 = vsel %vm249, %v334, 0
      %v344 = vsel %vm249, %v335, 0
      %v347 = vsel %vm249, %v336, 0
      %349 = vmatpush.msra.mxu0 0.0
      %350 = vmatpush.msra.mxu0 0.0
      %351 = vmatpush.msra.mxu0 0.0
      %352 = vmatpush.msra.mxu0 0.0
      %353 = vmatpush.msra.mxu0 0.0
      %354 = vmatpush.msra.mxu0 0.0
      %355 = vmatpush.msra.mxu0 0.0
      %356 = vmatpush.msra.mxu0 0.0
      %357 = vmatpush.msra.mxu0 0.0
      %358 = vmatpush.msra.mxu0 0.0
      %359 = vmatpush.msra.mxu0 0.0
      %360 = vmatpush.msra.mxu0 0.0
      %361 = vmatpush.msra.mxu0 0.0
      %362 = vmatpush.msra.mxu0 0.0
      %363 = vmatpush.msra.mxu0 0.0
      %364 = vmatpush.msra.mxu0 %v247
      %365 = vmatmul.f32.gmra.mxu0 %v338
      %v366 = vpop.f32.mrf.mxu0
      %v367 = vadd.f32 0.0, %v366
      %368 = vmatmul.f32.gmra.mxu0 %v341
      %v369 = vpop.f32.mrf.mxu0
      %v370 = vadd.f32 0.0, %v369
      %371 = vmatmul.f32.gmra.mxu0 %v344
      %v372 = vpop.f32.mrf.mxu0
      %v373 = vadd.f32 0.0, %v372
      %374 = vmatmul.f32.gmra.mxu0 %v347
      %v375 = vpop.f32.mrf.mxu0
      %v376 = vadd.f32 0.0, %v375
      %377 = vdwg.mxu0
      %v379 = vsel %vm249, %v231, 0
      %v382 = vsel %vm249, %v232, 0
      %v385 = vsel %vm249, %v233, 0
      %v388 = vsel %vm249, %v234, 0
      %390 = vmatpush.msra.mxu0 0.0
      %391 = vmatpush.msra.mxu0 0.0
      %392 = vmatpush.msra.mxu0 0.0
      %393 = vmatpush.msra.mxu0 0.0
      %394 = vmatpush.msra.mxu0 0.0
      %395 = vmatpush.msra.mxu0 0.0
      %396 = vmatpush.msra.mxu0 0.0
      %397 = vmatpush.msra.mxu0 0.0
      %398 = vmatpush.msra.mxu0 0.0
      %399 = vmatpush.msra.mxu0 0.0
      %400 = vmatpush.msra.mxu0 0.0
      %401 = vmatpush.msra.mxu0 0.0
      %402 = vmatpush.msra.mxu0 0.0
      %403 = vmatpush.msra.mxu0 0.0
      %404 = vmatpush.msra.mxu0 0.0
      %405 = vmatpush.msra.mxu0 %v225
      %406 = vmatmul.f32.gmra.mxu0 %v379
      %v407 = vpop.f32.mrf.mxu0
      %v408 = vadd.f32 %v367, %v407
      %409 = vmatmul.f32.gmra.mxu0 %v382
      %v410 = vpop.f32.mrf.mxu0
      %v411 = vadd.f32 %v370, %v410
      %412 = vmatmul.f32.gmra.mxu0 %v385
      %v413 = vpop.f32.mrf.mxu0
      %v414 = vadd.f32 %v373, %v413
      %415 = vmatmul.f32.gmra.mxu0 %v388
      %v416 = vpop.f32.mrf.mxu0
      %v417 = vadd.f32 %v376, %v416
      %418 = vdwg.mxu0
      %s419 = scalar_lea.vmem %s1, 64
      %v420 = vld [vmem:[%s419] sm:$0xff]
      %v421 = vld [vmem:[%s419 + $0x8] sm:$0xff]
      %v422 = vld [vmem:[%s419 + $0x10] sm:$0xff]
      %v423 = vld [vmem:[%s419 + $0x18] sm:$0xff]
      %424 = vrot.lane.b32.xlu0 %v225, 96
      %v425 = vpop.permute.xlu0 %424
      %426 = vrot.lane.b32.xlu0 %v226, 96
      %v427 = vpop.permute.xlu0 %426
      %vm428 = vcmask 785408
      %v429 = vsel %vm428, %v425, %v427
      %v432 = vsel %vm249, %v420, 0
      %v435 = vsel %vm249, %v421, 0
      %v438 = vsel %vm249, %v422, 0
      %v441 = vsel %vm249, %v423, 0
      %443 = vmatpush.msra.mxu0 0.0
      %444 = vmatpush.msra.mxu0 0.0
      %445 = vmatpush.msra.mxu0 0.0
      %446 = vmatpush.msra.mxu0 0.0
      %447 = vmatpush.msra.mxu0 0.0
      %448 = vmatpush.msra.mxu0 0.0
      %449 = vmatpush.msra.mxu0 0.0
      %450 = vmatpush.msra.mxu0 0.0
      %451 = vmatpush.msra.mxu0 0.0
      %452 = vmatpush.msra.mxu0 0.0
      %453 = vmatpush.msra.mxu0 0.0
      %454 = vmatpush.msra.mxu0 0.0
      %455 = vmatpush.msra.mxu0 0.0
      %456 = vmatpush.msra.mxu0 0.0
      %457 = vmatpush.msra.mxu0 0.0
      %458 = vmatpush.msra.mxu0 %v429
      %459 = vmatmul.f32.gmra.mxu0 %v432
      %v460 = vpop.f32.mrf.mxu0
      %v461 = vadd.f32 0.0, %v460
      %462 = vmatmul.f32.gmra.mxu0 %v435
      %v463 = vpop.f32.mrf.mxu0
      %v464 = vadd.f32 0.0, %v463
      %465 = vmatmul.f32.gmra.mxu0 %v438
      %v466 = vpop.f32.mrf.mxu0
      %v467 = vadd.f32 0.0, %v466
      %468 = vmatmul.f32.gmra.mxu0 %v441
      %v469 = vpop.f32.mrf.mxu0
      %v470 = vadd.f32 0.0, %v469
      %471 = vdwg.mxu0
      %v472 = vadd.f32 %v321, %v461
      %v473 = vadd.f32 %v324, %v464
      %v474 = vadd.f32 %v327, %v467
      %v475 = vadd.f32 %v330, %v470
      %s476 = scalar_lea.vmem %s2, 64
      %v477 = vld [vmem:[%s476] sm:$0xff]
      %v478 = vld [vmem:[%s476 + $0x8] sm:$0xff]
      %v479 = vld [vmem:[%s476 + $0x10] sm:$0xff]
      %v480 = vld [vmem:[%s476 + $0x18] sm:$0xff]
      %v482 = vsel %vm249, %v477, 0
      %v485 = vsel %vm249, %v478, 0
      %v488 = vsel %vm249, %v479, 0
      %v491 = vsel %vm249, %v480, 0
      %493 = vmatpush.msra.mxu0 0.0
      %494 = vmatpush.msra.mxu0 0.0
      %495 = vmatpush.msra.mxu0 0.0
      %496 = vmatpush.msra.mxu0 0.0
      %497 = vmatpush.msra.mxu0 0.0
      %498 = vmatpush.msra.mxu0 0.0
      %499 = vmatpush.msra.mxu0 0.0
      %500 = vmatpush.msra.mxu0 0.0
      %501 = vmatpush.msra.mxu0 0.0
      %502 = vmatpush.msra.mxu0 0.0
      %503 = vmatpush.msra.mxu0 0.0
      %504 = vmatpush.msra.mxu0 0.0
      %505 = vmatpush.msra.mxu0 0.0
      %506 = vmatpush.msra.mxu0 0.0
      %507 = vmatpush.msra.mxu0 0.0
      %508 = vmatpush.msra.mxu0 %v429
      %509 = vmatmul.f32.gmra.mxu0 %v482
      %v510 = vpop.f32.mrf.mxu0
      %v511 = vadd.f32 0.0, %v510
      %512 = vmatmul.f32.gmra.mxu0 %v485
      %v513 = vpop.f32.mrf.mxu0
      %v514 = vadd.f32 0.0, %v513
      %515 = vmatmul.f32.gmra.mxu0 %v488
      %v516 = vpop.f32.mrf.mxu0
      %v517 = vadd.f32 0.0, %v516
      %518 = vmatmul.f32.gmra.mxu0 %v491
      %v519 = vpop.f32.mrf.mxu0
      %v520 = vadd.f32 0.0, %v519
      %521 = vdwg.mxu0
      %v522 = vadd.f32 %v408, %v511
      %v523 = vadd.f32 %v411, %v514
      %v524 = vadd.f32 %v414, %v517
      %v525 = vadd.f32 %v417, %v520
      %v526 = vld [vmem:[%s3] sm:$0xff]
      %v527 = vld [vmem:[%s3 + $0x8] sm:$0xff]
      %v528 = vld [vmem:[%s3 + $0x10] sm:$0xff]
      %v529 = vld [vmem:[%s3 + $0x18] sm:$0xff]
      %531 = vset.pattern.permute.xlu0 0
      %532 = vperm.xlu0 %531, %v526
      %v533 = vpop.permute.xlu0 %532
      %536 = vset.pattern.permute.xlu0 0
      %537 = vperm.xlu0 %536, %v527
      %v538 = vpop.permute.xlu0 %537
      %541 = vset.pattern.permute.xlu0 0
      %542 = vperm.xlu0 %541, %v528
      %v543 = vpop.permute.xlu0 %542
      %546 = vset.pattern.permute.xlu0 0
      %547 = vperm.xlu0 %546, %v529
      %v548 = vpop.permute.xlu0 %547
      %v550 = vadd.f32 %v472, %v533
      %v551 = vadd.f32 %v473, %v538
      %v552 = vadd.f32 %v474, %v543
      %v553 = vadd.f32 %v475, %v548
      %v554 = vld [vmem:[%s4] sm:$0xff]
      %v555 = vld [vmem:[%s4 + $0x8] sm:$0xff]
      %v556 = vld [vmem:[%s4 + $0x10] sm:$0xff]
      %v557 = vld [vmem:[%s4 + $0x18] sm:$0xff]
      %559 = vset.pattern.permute.xlu0 0
      %560 = vperm.xlu0 %559, %v554
      %v561 = vpop.permute.xlu0 %560
      %564 = vset.pattern.permute.xlu0 0
      %565 = vperm.xlu0 %564, %v555
      %v566 = vpop.permute.xlu0 %565
      %569 = vset.pattern.permute.xlu0 0
      %570 = vperm.xlu0 %569, %v556
      %v571 = vpop.permute.xlu0 %570
      %574 = vset.pattern.permute.xlu0 0
      %575 = vperm.xlu0 %574, %v557
      %v576 = vpop.permute.xlu0 %575
      %v578 = vadd.f32 %v522, %v561
      %v579 = vadd.f32 %v523, %v566
      %v580 = vadd.f32 %v524, %v571
      %v581 = vadd.f32 %v525, %v576
      %v582 = vxor.u32 %v578, 2147483648
      %v583 = vxor.u32 %v579, 2147483648
      %v584 = vxor.u32 %v580, 2147483648
      %v585 = vxor.u32 %v581, 2147483648
      %v586 = vmul.f32 %v582, 1.442695
      %v587 = vpow.pop %v586
      %v588 = vmul.f32 %v583, 1.442695
      %v589 = vpow.pop %v588
      %v590 = vmul.f32 %v584, 1.442695
      %v591 = vpow.pop %v590
      %v592 = vmul.f32 %v585, 1.442695
      %v593 = vpow.pop %v592
      %v594 = vadd.f32 %v587, 1.0
      %v595 = vadd.f32 %v589, 1.0
      %v596 = vadd.f32 %v591, 1.0
      %v597 = vadd.f32 %v593, 1.0
      %v598 = vrcp.pop %v594
      %v599 = vmul.f32 %v594, %v598
      %v600 = vsub.f32 1.0, %v599
      %v601 = vmul.f32 %v598, %v600
      %v602 = vadd.f32 %v598, %v601
      %vm603 = vweird.f32 %v594
      %vm604 = vweird.f32 %v598
      %vm605 = vmor %vm603, %vm604
      %v606 = vsel %vm605, %v598, %v602
      %v607 = vand.u32 2147483647, %v594
      %vm608 = vcmp.eq.f32.partialorder %v607, 8.507059e+37
      %v609 = vand.u32 %v594, 2147483648
      %v610 = vor.u32 1.1754944e-38, %v609
      %v611 = vsel %vm608, %v610, %v606
      %v612 = vmul.f32 1.0, %v611
      %v613 = vrcp.pop %v595
      %v614 = vmul.f32 %v595, %v613
      %v615 = vsub.f32 1.0, %v614
      %v616 = vmul.f32 %v613, %v615
      %v617 = vadd.f32 %v613, %v616
      %vm618 = vweird.f32 %v595
      %vm619 = vweird.f32 %v613
      %vm620 = vmor %vm618, %vm619
      %v621 = vsel %vm620, %v613, %v617
      %v622 = vand.u32 2147483647, %v595
      %vm623 = vcmp.eq.f32.partialorder %v622, 8.507059e+37
      %v624 = vand.u32 %v595, 2147483648
      %v625 = vor.u32 1.1754944e-38, %v624
      %v626 = vsel %vm623, %v625, %v621
      %v627 = vmul.f32 1.0, %v626
      %v628 = vrcp.pop %v596
      %v629 = vmul.f32 %v596, %v628
      %v630 = vsub.f32 1.0, %v629
      %v631 = vmul.f32 %v628, %v630
      %v632 = vadd.f32 %v628, %v631
      %vm633 = vweird.f32 %v596
      %vm634 = vweird.f32 %v628
      %vm635 = vmor %vm633, %vm634
      %v636 = vsel %vm635, %v628, %v632
      %v637 = vand.u32 2147483647, %v596
      %vm638 = vcmp.eq.f32.partialorder %v637, 8.507059e+37
      %v639 = vand.u32 %v596, 2147483648
      %v640 = vor.u32 1.1754944e-38, %v639
      %v641 = vsel %vm638, %v640, %v636
      %v642 = vmul.f32 1.0, %v641
      %v643 = vrcp.pop %v597
      %v644 = vmul.f32 %v597, %v643
      %v645 = vsub.f32 1.0, %v644
      %v646 = vmul.f32 %v643, %v645
      %v647 = vadd.f32 %v643, %v646
      %vm648 = vweird.f32 %v597
      %vm649 = vweird.f32 %v643
      %vm650 = vmor %vm648, %vm649
      %v651 = vsel %vm650, %v643, %v647
      %v652 = vand.u32 2147483647, %v597
      %vm653 = vcmp.eq.f32.partialorder %v652, 8.507059e+37
      %v654 = vand.u32 %v597, 2147483648
      %v655 = vor.u32 1.1754944e-38, %v654
      %v656 = vsel %vm653, %v655, %v651
      %v657 = vmul.f32 1.0, %v656
      %v658 = vmul.f32 %v550, %v612
      %v659 = vmul.f32 %v551, %v627
      %v660 = vmul.f32 %v552, %v642
      %v661 = vmul.f32 %v553, %v657
      %662 = vst [vmem:[%s224] sm:$0xff] %v658
      %663 = vst [vmem:[%s224 + $0x8] sm:$0xff] %v659
      %664 = vst [vmem:[%s224 + $0x10] sm:$0xff] %v660
      %665 = vst [vmem:[%s224 + $0x18] sm:$0xff] %v661
      %p666 = scmp.lt.s32.totalorder %s16, 1
      %s667 = scalar_select %p666, %s16, 1
      %s668 = smul.addr %s667, 4
      %s669 = smul.addr %s668, 8
      %s670 = scalar_lea.vmem %s5, %s669
      // Predicated region
      $region41: #{stgcn_forward.20} parent=39 // pred_check
        %p671 = pneg %p144
      $region42: #{stgcn_forward.20} parent=39 // pred_check_branch
        %673 = sbr.rel (%p671) target = $region44
      $region43: #{stgcn_forward.20} parent=39 // pred_region
        _
      $region44: #{stgcn_forward.20} parent=39 // pred_fallthru
        _
    $region40: #{stgcn_forward.20} parent=5 // pred_fallthru
      _
    %p674 = scmp.le.s32.totalorder 2, %s11
    // Predicated region
    $region45: #{stgcn_forward.20} parent=5 // pred_check
      %p675 = pneg %p674
    $region46: #{stgcn_forward.20} parent=5 // pred_check_branch
      %677 = sbr.rel (%p675) target = $region48
    $region47: #{stgcn_forward.20} parent=5 // pred_region
      %s678 = ssub.s32 %s11, 2
      // Predicated region
      $region49: #{stgcn_forward.20} parent=47 // pred_check
        %p679 = pneg %p150
      $region50: #{stgcn_forward.20} parent=47 // pred_check_branch
        %681 = sbr.rel (%p679) target = $region52
      $region51: #{stgcn_forward.20} parent=47 // pred_region
        %p682 = scmp.lt.s32.totalorder %s17, 1
        %s683 = scalar_select %p682, %s17, 1
        %s684 = smul.addr %s683, 4
        %s685 = smul.addr %s684, 8
        %s686 = scalar_lea.vmem %s5, %s685
      $region52: #{stgcn_forward.20} parent=47 // pred_fallthru
        _
    $region48: #{stgcn_forward.20} parent=5 // pred_fallthru
      _
  $region6: #{stgcn_forward.20} parent=0 // loop_footer
    %s15 = sadd.s32 1, %s11
  $region7: #{stgcn_forward.20} parent=0 // loop_footer_branch
    %10 = sbr.rel target = $region3
  $region8: #{stgcn_forward.20} parent=0 // loop_exit
    _

// kernel: stgcn_forward.22
$region0: #{stgcn_forward.22}
  #allocation0 [shape = 'u32[]', space=smem, size = 0x4, offset = 0x4, fixed_abs, tag = 'smem constant byte address 0x4 - core index']
  #allocation1 [shape = 'u32[72,128]{1,0:T(1,128)}', space=vmem, size = 0x9000, scoped, tag = 'internal scratch']
  #allocation2 [shape = 'f32[1,1]{1,0:T(1,128)S(1)}', space=vmem, size = 0x200, scoped, tag = 'scoped memory for stgcn_forward.22']
  #allocation3 [shape = 'f32[1,1]{1,0:T(1,128)S(1)}', space=vmem, size = 0x200, scoped, tag = 'scoped memory for stgcn_forward.22']
  %s0 = inlined_call_operand.vmem [shape: f32[2,8,544], index: 0, kind: input, shape index: {}]
  %s1 = inlined_call_operand.vmem [shape: f32[3,1,8], index: 1, kind: input, shape index: {}]
  %s2 = inlined_call_operand.vmem [shape: f32[3,1,8], index: 2, kind: input, shape index: {}]
  %s3 = inlined_call_operand.<no memory space> [shape: f32[1,1], index: 3, kind: input, shape index: {}]
  %s4 = inlined_call_operand.<no memory space> [shape: f32[1,1], index: 4, kind: input, shape index: {}]
  %s5 = inlined_call_operand.vmem [shape: f32[2,1,512], index: 5, kind: output, shape index: {}]
  %s6 = sld [smem:[#allocation0]]
  $region53: #{stgcn_forward.22} parent=0
    _
  %s8 = ssub.s32 1, %s6
  %s9 = scalar_select 0, %s8, %s6
  %v10 = vstv %s3
  %11 = vst [vmem:[#allocation2] sm:$0x1] %v10
  %v12 = vstv %s4
  %13 = vst [vmem:[#allocation3] sm:$0x1] %v12
  loop: start=0, step=1, limit=4
  $region2: #{stgcn_forward.22} parent=0 // loop_pre_header
    _
  $region3: #{stgcn_forward.22} parent=0 // loop_header
    %s15 = sphi 0, %s19
    %p16 = scmp.ge.s32.totalorder %s15, 4
    %s25 = sphi 0, %s27
    %s28 = sphi 0, %s25
    %s29 = sphi 0, %s28
    %s45 = sphi 0, %s29
    %s49 = sphi 0, %s49
    %s51 = sphi 0, %s49
    %s52 = sphi 0, %s51
    %s66 = sphi 0, %s52
    %s70 = sphi 0, %s70
    %s72 = sphi 0, %s70
    %s73 = sphi 0, %s72
    %s87 = sphi 0, %s73
    %s91 = sphi 0, %s91
    %s93 = sphi 0, %s91
    %s94 = sphi 0, %s93
    %s108 = sphi 0, %s94
    %s112 = sphi 0, %s112
    %s114 = sphi 0, %s112
    %s115 = sphi 0, %s114
    %s129 = sphi 0, %s115
    %s135 = sphi 0, %s137
    %s138 = sphi 0, %s135
    %s139 = sphi 0, %s138
    %s155 = sphi 0, %s139
  $region4: #{stgcn_forward.22} parent=0 // loop_header_branch
    %18 = sbr.rel (%p16) target = $region8
  $region5: #{stgcn_forward.22} parent=0 // loop_body
    %s20 = ssub.s32 %s15, 1
    %s21 = ssub.s32 %s15, 2
    %s22 = sadd.s32 %s15, 1
    %s23 = ssub.s32 %s15, %s22
    %p24 = scmp.eq.s32.totalorder %s23, 0
    %s26 = sadd.s32 %s25, 1
    %s27 = scalar_select %p24, %s25, %s26
    %p30 = pneg %p24
    %p31 = scmp.eq.s32.totalorder %s15, 1
    %p32 = por %p30, %p31
    %p33 = scmp.ne.s32.totalorder %s25, %s28
    %p34 = scmp.eq.s32.totalorder %s15, 0
    %p35 = por %p33, %p34
    %p36 = scmp.ne.s32.totalorder %s25, %s28
    %p37 = scmp.eq.s32.totalorder %s20, 1
    %p38 = por %p36, %p37
    %p39 = scmp.ne.s32.totalorder %s28, %s29
    %p40 = scmp.eq.s32.totalorder %s20, 0
    %p41 = por %p39, %p40
    %p42 = scmp.ne.s32.totalorder %s28, %s29
    %p43 = scmp.eq.s32.totalorder %s21, 1
    %p44 = por %p42, %p43
    %p46 = scmp.ne.s32.totalorder %s29, %s45
    %p47 = scmp.eq.s32.totalorder %s21, 0
    %p48 = por %p46, %p47
    %s50 = sadd.s32 %s49, 1
    %p53 = scmp.eq.s32.totalorder %s15, 1
    %p54 = scmp.ne.s32.totalorder %s49, %s51
    %p55 = scmp.eq.s32.totalorder %s15, 0
    %p56 = por %p54, %p55
    %p57 = scmp.ne.s32.totalorder %s49, %s51
    %p58 = scmp.eq.s32.totalorder %s20, 1
    %p59 = por %p57, %p58
    %p60 = scmp.ne.s32.totalorder %s51, %s52
    %p61 = scmp.eq.s32.totalorder %s20, 0
    %p62 = por %p60, %p61
    %p63 = scmp.ne.s32.totalorder %s51, %s52
    %p64 = scmp.eq.s32.totalorder %s21, 1
    %p65 = por %p63, %p64
    %p67 = scmp.ne.s32.totalorder %s52, %s66
    %p68 = scmp.eq.s32.totalorder %s21, 0
    %p69 = por %p67, %p68
    %s71 = sadd.s32 %s70, 1
    %p74 = scmp.eq.s32.totalorder %s15, 1
    %p75 = scmp.ne.s32.totalorder %s70, %s72
    %p76 = scmp.eq.s32.totalorder %s15, 0
    %p77 = por %p75, %p76
    %p78 = scmp.ne.s32.totalorder %s70, %s72
    %p79 = scmp.eq.s32.totalorder %s20, 1
    %p80 = por %p78, %p79
    %p81 = scmp.ne.s32.totalorder %s72, %s73
    %p82 = scmp.eq.s32.totalorder %s20, 0
    %p83 = por %p81, %p82
    %p84 = scmp.ne.s32.totalorder %s72, %s73
    %p85 = scmp.eq.s32.totalorder %s21, 1
    %p86 = por %p84, %p85
    %p88 = scmp.ne.s32.totalorder %s73, %s87
    %p89 = scmp.eq.s32.totalorder %s21, 0
    %p90 = por %p88, %p89
    %s92 = sadd.s32 %s91, 1
    %p95 = scmp.eq.s32.totalorder %s15, 1
    %p96 = scmp.ne.s32.totalorder %s91, %s93
    %p97 = scmp.eq.s32.totalorder %s15, 0
    %p98 = por %p96, %p97
    %p99 = scmp.ne.s32.totalorder %s91, %s93
    %p100 = scmp.eq.s32.totalorder %s20, 1
    %p101 = por %p99, %p100
    %p102 = scmp.ne.s32.totalorder %s93, %s94
    %p103 = scmp.eq.s32.totalorder %s20, 0
    %p104 = por %p102, %p103
    %p105 = scmp.ne.s32.totalorder %s93, %s94
    %p106 = scmp.eq.s32.totalorder %s21, 1
    %p107 = por %p105, %p106
    %p109 = scmp.ne.s32.totalorder %s94, %s108
    %p110 = scmp.eq.s32.totalorder %s21, 0
    %p111 = por %p109, %p110
    %s113 = sadd.s32 %s112, 1
    %p116 = scmp.eq.s32.totalorder %s15, 1
    %p117 = scmp.ne.s32.totalorder %s112, %s114
    %p118 = scmp.eq.s32.totalorder %s15, 0
    %p119 = por %p117, %p118
    %p120 = scmp.ne.s32.totalorder %s112, %s114
    %p121 = scmp.eq.s32.totalorder %s20, 1
    %p122 = por %p120, %p121
    %p123 = scmp.ne.s32.totalorder %s114, %s115
    %p124 = scmp.eq.s32.totalorder %s20, 0
    %p125 = por %p123, %p124
    %p126 = scmp.ne.s32.totalorder %s114, %s115
    %p127 = scmp.eq.s32.totalorder %s21, 1
    %p128 = por %p126, %p127
    %p130 = scmp.ne.s32.totalorder %s115, %s129
    %p131 = scmp.eq.s32.totalorder %s21, 0
    %p132 = por %p130, %p131
    %s133 = ssub.s32 %s15, %s22
    %p134 = scmp.eq.s32.totalorder %s133, 0
    %s136 = sadd.s32 %s135, 1
    %s137 = scalar_select %p134, %s135, %s136
    %p140 = pneg %p134
    %p141 = scmp.eq.s32.totalorder %s15, 1
    %p142 = por %p140, %p141
    %p143 = scmp.ne.s32.totalorder %s135, %s138
    %p144 = scmp.eq.s32.totalorder %s15, 0
    %p145 = por %p143, %p144
    %p146 = scmp.ne.s32.totalorder %s135, %s138
    %p147 = scmp.eq.s32.totalorder %s20, 1
    %p148 = por %p146, %p147
    %p149 = scmp.ne.s32.totalorder %s138, %s139
    %p150 = scmp.eq.s32.totalorder %s20, 0
    %p151 = por %p149, %p150
    %p152 = scmp.ne.s32.totalorder %s138, %s139
    %p153 = scmp.eq.s32.totalorder %s21, 1
    %p154 = por %p152, %p153
    %p156 = scmp.ne.s32.totalorder %s139, %s155
    %p157 = scmp.eq.s32.totalorder %s21, 0
    %p158 = por %p156, %p157
    %p159 = scmp.le.s32.totalorder 1, %s15
    %p160 = scmp.lt.s32.totalorder %s15, 3
    %p161 = pnand %p159, %p160
    %p162 = pneg %p161
    // Predicated region
    $region9: #{stgcn_forward.22} parent=5 // pred_check
      _
    $region10: #{stgcn_forward.22} parent=5 // pred_check_branch
      %164 = sbr.rel (%p161) target = $region12
    $region11: #{stgcn_forward.22} parent=5 // pred_region
      %s165 = ssub.s32 %s15, 1
      // Predicated region
      $region13: #{stgcn_forward.22} parent=11 // pred_check
        %p166 = pneg %p62
      $region14: #{stgcn_forward.22} parent=11 // pred_check_branch
        %168 = sbr.rel (%p166) target = $region16
      $region15: #{stgcn_forward.22} parent=11 // pred_region
        _
      $region16: #{stgcn_forward.22} parent=11 // pred_fallthru
        _
      // Predicated region
      $region17: #{stgcn_forward.22} parent=11 // pred_check
        %p169 = pneg %p83
      $region18: #{stgcn_forward.22} parent=11 // pred_check_branch
        %171 = sbr.rel (%p169) target = $region20
      $region19: #{stgcn_forward.22} parent=11 // pred_region
        _
      $region20: #{stgcn_forward.22} parent=11 // pred_fallthru
        _
      // Predicated region
      $region21: #{stgcn_forward.22} parent=11 // pred_check
        %p172 = pneg %p104
      $region22: #{stgcn_forward.22} parent=11 // pred_check_branch
        %174 = sbr.rel (%p172) target = $region24
      $region23: #{stgcn_forward.22} parent=11 // pred_region
        _
      $region24: #{stgcn_forward.22} parent=11 // pred_fallthru
        _
      // Predicated region
      $region25: #{stgcn_forward.22} parent=11 // pred_check
        %p175 = pneg %p125
      $region26: #{stgcn_forward.22} parent=11 // pred_check_branch
        %177 = sbr.rel (%p175) target = $region28
      $region27: #{stgcn_forward.22} parent=11 // pred_region
        _
      $region28: #{stgcn_forward.22} parent=11 // pred_fallthru
        _
    $region12: #{stgcn_forward.22} parent=5 // pred_fallthru
      _
    %p178 = scmp.lt.s32.totalorder %s15, 2
    // Predicated region
    $region29: #{stgcn_forward.22} parent=5 // pred_check
      %p179 = pneg %p178
    $region30: #{stgcn_forward.22} parent=5 // pred_check_branch
      %181 = sbr.rel (%p179) target = $region32
    $region31: #{stgcn_forward.22} parent=5 // pred_region
      // Predicated region
      $region33: #{stgcn_forward.22} parent=31 // pred_check
        %p182 = pneg %p35
      $region34: #{stgcn_forward.22} parent=31 // pred_check_branch
        %184 = sbr.rel (%p182) target = $region36
      $region35: #{stgcn_forward.22} parent=31 // pred_region
        %p185 = scmp.lt.s32.totalorder %s15, 1
        %s186 = scalar_select %p185, %s15, 1
        %s187 = smul.addr %s186, 5
        %s188 = smul.addr %s187, 8
        %s189 = scalar_lea.vmem %s0, %s188
      $region36: #{stgcn_forward.22} parent=31 // pred_fallthru
        _
    $region32: #{stgcn_forward.22} parent=5 // pred_fallthru
      _
    %p190 = scmp.le.s32.totalorder 1, %s15
    %p191 = scmp.lt.s32.totalorder %s15, 3
    %p192 = pnand %p190, %p191
    %p193 = pneg %p192
    // Predicated region
    $region37: #{stgcn_forward.22} parent=5 // pred_check
      _
    $region38: #{stgcn_forward.22} parent=5 // pred_check_branch
      %195 = sbr.rel (%p192) target = $region40
    $region39: #{stgcn_forward.22} parent=5 // pred_region
      %s196 = ssub.s32 %s15, 1
      %p197 = scmp.lt.s32.totalorder %s20, 1
      %s198 = scalar_select %p197, %s20, 1
      %s199 = smul.addr %s198, 5
      %s200 = smul.addr %s199, 8
      %s201 = scalar_lea.vmem %s0, %s200
      %p202 = pneg %p41
      %p203 = pneg %p38
      %p204 = pneg %p62
      %p205 = pneg %p59
      %p206 = pneg %p83
      %p207 = pneg %p80
      %p208 = pneg %p104
      %p209 = pneg %p101
      %p210 = pneg %p125
      %p211 = pneg %p122
      %p212 = pneg %p151
      %p213 = pneg %p148
      %p214 = scmp.lt.s32.totalorder %s20, 1
      %s215 = scalar_select %p214, %s20, 1
      %s216 = smul.addr %s215, 4
      %s217 = scalar_lea.vmem %s5, %s216
      %p218 = scmp.lt.s32.totalorder %s20, 1
      %s219 = scalar_select %p218, %s20, 1
      %s220 = smul.addr %s219, 5
      %s221 = smul.addr %s220, 8
      %s222 = scalar_lea.vmem %s0, %s221
      %p223 = scmp.lt.s32.totalorder %s20, 1
      %s224 = scalar_select %p223, %s20, 1
      %s225 = smul.addr %s224, 4
      %s226 = scalar_lea.vmem %s5, %s225
      %v227 = vld [vmem:[%s222] sm:$0xff]
      %v228 = vld [vmem:[%s222 + $0x8] sm:$0xff]
      %v229 = vld [vmem:[%s222 + $0x10] sm:$0xff]
      %v230 = vld [vmem:[%s222 + $0x18] sm:$0xff]
      %v231 = vld [vmem:[%s222 + $0x20] sm:$0xff]
      %v232 = vld [vmem:[%s1] sm:$0x1]
      %v233 = vld [vmem:[%s2] sm:$0x1]
      %s234 = scalar_lea.vmem %s1, 1
      %v235 = vld [vmem:[%s234] sm:$0x1]
      %241 = vrot.lane.b32.xlu0 %v227, 112
      %v242 = vpop.permute.xlu0 %241
      %243 = vrot.lane.b32.xlu0 %v228, 112
      %v244 = vpop.permute.xlu0 %243
      %245 = vrot.lane.b32.xlu0 %v229, 112
      %v246 = vpop.permute.xlu0 %245
      %247 = vrot.lane.b32.xlu0 %v230, 112
      %v248 = vpop.permute.xlu0 %247
      %249 = vrot.lane.b32.xlu0 %v231, 112
      %v250 = vpop.permute.xlu0 %249
      %vm251 = vcmask 916480
      %v252 = vsel %vm251, %v242, %v244
      %v253 = vsel %vm251, %v244, %v246
      %v254 = vsel %vm251, %v246, %v248
      %v255 = vsel %vm251, %v248, %v250
      %vm260 = vcmask 64512
      %v262 = vsel %vm260, %v235, 0
      %264 = vmatpush.msra.mxu0 0.0
      %265 = vmatpush.msra.mxu0 0.0
      %266 = vmatpush.msra.mxu0 0.0
      %267 = vmatpush.msra.mxu0 0.0
      %268 = vmatpush.msra.mxu0 0.0
      %269 = vmatpush.msra.mxu0 0.0
      %270 = vmatpush.msra.mxu0 0.0
      %271 = vmatpush.msra.mxu0 0.0
      %272 = vmatpush.msra.mxu0 0.0
      %273 = vmatpush.msra.mxu0 0.0
      %274 = vmatpush.msra.mxu0 0.0
      %275 = vmatpush.msra.mxu0 0.0
      %276 = vmatpush.msra.mxu0 0.0
      %277 = vmatpush.msra.mxu0 0.0
      %278 = vmatpush.msra.mxu0 0.0
      %279 = vmatpush.msra.mxu0 %v252
      %280 = vmatmul.f32.gmra.mxu0 %v262
      %v281 = vpop.f32.mrf.mxu0
      %v282 = vadd.f32 0.0, %v281
      %283 = vdwg.mxu0
      %284 = vmatpush.msra.mxu0 0.0
      %285 = vmatpush.msra.mxu0 0.0
      %286 = vmatpush.msra.mxu0 0.0
      %287 = vmatpush.msra.mxu0 0.0
      %288 = vmatpush.msra.mxu0 0.0
      %289 = vmatpush.msra.mxu0 0.0
      %290 = vmatpush.msra.mxu0 0.0
      %291 = vmatpush.msra.mxu0 0.0
      %292 = vmatpush.msra.mxu0 0.0
      %293 = vmatpush.msra.mxu0 0.0
      %294 = vmatpush.msra.mxu0 0.0
      %295 = vmatpush.msra.mxu0 0.0
      %296 = vmatpush.msra.mxu0 0.0
      %297 = vmatpush.msra.mxu0 0.0
      %298 = vmatpush.msra.mxu0 0.0
      %299 = vmatpush.msra.mxu0 %v253
      %300 = vmatmul.f32.gmra.mxu0 %v262
      %v301 = vpop.f32.mrf.mxu0
      %v302 = vadd.f32 0.0, %v301
      %303 = vdwg.mxu0
      %304 = vmatpush.msra.mxu0 0.0
      %305 = vmatpush.msra.mxu0 0.0
      %306 = vmatpush.msra.mxu0 0.0
      %307 = vmatpush.msra.mxu0 0.0
      %308 = vmatpush.msra.mxu0 0.0
      %309 = vmatpush.msra.mxu0 0.0
      %310 = vmatpush.msra.mxu0 0.0
      %311 = vmatpush.msra.mxu0 0.0
      %312 = vmatpush.msra.mxu0 0.0
      %313 = vmatpush.msra.mxu0 0.0
      %314 = vmatpush.msra.mxu0 0.0
      %315 = vmatpush.msra.mxu0 0.0
      %316 = vmatpush.msra.mxu0 0.0
      %317 = vmatpush.msra.mxu0 0.0
      %318 = vmatpush.msra.mxu0 0.0
      %319 = vmatpush.msra.mxu0 %v254
      %320 = vmatmul.f32.gmra.mxu0 %v262
      %v321 = vpop.f32.mrf.mxu0
      %v322 = vadd.f32 0.0, %v321
      %323 = vdwg.mxu0
      %324 = vmatpush.msra.mxu0 0.0
      %325 = vmatpush.msra.mxu0 0.0
      %326 = vmatpush.msra.mxu0 0.0
      %327 = vmatpush.msra.mxu0 0.0
      %328 = vmatpush.msra.mxu0 0.0
      %329 = vmatpush.msra.mxu0 0.0
      %330 = vmatpush.msra.mxu0 0.0
      %331 = vmatpush.msra.mxu0 0.0
      %332 = vmatpush.msra.mxu0 0.0
      %333 = vmatpush.msra.mxu0 0.0
      %334 = vmatpush.msra.mxu0 0.0
      %335 = vmatpush.msra.mxu0 0.0
      %336 = vmatpush.msra.mxu0 0.0
      %337 = vmatpush.msra.mxu0 0.0
      %338 = vmatpush.msra.mxu0 0.0
      %339 = vmatpush.msra.mxu0 %v255
      %340 = vmatmul.f32.gmra.mxu0 %v262
      %v341 = vpop.f32.mrf.mxu0
      %v342 = vadd.f32 0.0, %v341
      %343 = vdwg.mxu0
      %v345 = vsel %vm260, %v232, 0
      %347 = vmatpush.msra.mxu0 0.0
      %348 = vmatpush.msra.mxu0 0.0
      %349 = vmatpush.msra.mxu0 0.0
      %350 = vmatpush.msra.mxu0 0.0
      %351 = vmatpush.msra.mxu0 0.0
      %352 = vmatpush.msra.mxu0 0.0
      %353 = vmatpush.msra.mxu0 0.0
      %354 = vmatpush.msra.mxu0 0.0
      %355 = vmatpush.msra.mxu0 0.0
      %356 = vmatpush.msra.mxu0 0.0
      %357 = vmatpush.msra.mxu0 0.0
      %358 = vmatpush.msra.mxu0 0.0
      %359 = vmatpush.msra.mxu0 0.0
      %360 = vmatpush.msra.mxu0 0.0
      %361 = vmatpush.msra.mxu0 0.0
      %362 = vmatpush.msra.mxu0 %v227
      %363 = vmatmul.f32.gmra.mxu0 %v345
      %v364 = vpop.f32.mrf.mxu0
      %v365 = vadd.f32 %v282, %v364
      %366 = vdwg.mxu0
      %367 = vmatpush.msra.mxu0 0.0
      %368 = vmatpush.msra.mxu0 0.0
      %369 = vmatpush.msra.mxu0 0.0
      %370 = vmatpush.msra.mxu0 0.0
      %371 = vmatpush.msra.mxu0 0.0
      %372 = vmatpush.msra.mxu0 0.0
      %373 = vmatpush.msra.mxu0 0.0
      %374 = vmatpush.msra.mxu0 0.0
      %375 = vmatpush.msra.mxu0 0.0
      %376 = vmatpush.msra.mxu0 0.0
      %377 = vmatpush.msra.mxu0 0.0
      %378 = vmatpush.msra.mxu0 0.0
      %379 = vmatpush.msra.mxu0 0.0
      %380 = vmatpush.msra.mxu0 0.0
      %381 = vmatpush.msra.mxu0 0.0
      %382 = vmatpush.msra.mxu0 %v228
      %383 = vmatmul.f32.gmra.mxu0 %v345
      %v384 = vpop.f32.mrf.mxu0
      %v385 = vadd.f32 %v302, %v384
      %386 = vdwg.mxu0
      %387 = vmatpush.msra.mxu0 0.0
      %388 = vmatpush.msra.mxu0 0.0
      %389 = vmatpush.msra.mxu0 0.0
      %390 = vmatpush.msra.mxu0 0.0
      %391 = vmatpush.msra.mxu0 0.0
      %392 = vmatpush.msra.mxu0 0.0
      %393 = vmatpush.msra.mxu0 0.0
      %394 = vmatpush.msra.mxu0 0.0
      %395 = vmatpush.msra.mxu0 0.0
      %396 = vmatpush.msra.mxu0 0.0
      %397 = vmatpush.msra.mxu0 0.0
      %398 = vmatpush.msra.mxu0 0.0
      %399 = vmatpush.msra.mxu0 0.0
      %400 = vmatpush.msra.mxu0 0.0
      %401 = vmatpush.msra.mxu0 0.0
      %402 = vmatpush.msra.mxu0 %v229
      %403 = vmatmul.f32.gmra.mxu0 %v345
      %v404 = vpop.f32.mrf.mxu0
      %v405 = vadd.f32 %v322, %v404
      %406 = vdwg.mxu0
      %407 = vmatpush.msra.mxu0 0.0
      %408 = vmatpush.msra.mxu0 0.0
      %409 = vmatpush.msra.mxu0 0.0
      %410 = vmatpush.msra.mxu0 0.0
      %411 = vmatpush.msra.mxu0 0.0
      %412 = vmatpush.msra.mxu0 0.0
      %413 = vmatpush.msra.mxu0 0.0
      %414 = vmatpush.msra.mxu0 0.0
      %415 = vmatpush.msra.mxu0 0.0
      %416 = vmatpush.msra.mxu0 0.0
      %417 = vmatpush.msra.mxu0 0.0
      %418 = vmatpush.msra.mxu0 0.0
      %419 = vmatpush.msra.mxu0 0.0
      %420 = vmatpush.msra.mxu0 0.0
      %421 = vmatpush.msra.mxu0 0.0
      %422 = vmatpush.msra.mxu0 %v230
      %423 = vmatmul.f32.gmra.mxu0 %v345
      %v424 = vpop.f32.mrf.mxu0
      %v425 = vadd.f32 %v342, %v424
      %426 = vdwg.mxu0
      %s427 = scalar_lea.vmem %s2, 1
      %v428 = vld [vmem:[%s427] sm:$0x1]
      %v430 = vsel %vm260, %v428, 0
      %432 = vmatpush.msra.mxu0 0.0
      %433 = vmatpush.msra.mxu0 0.0
      %434 = vmatpush.msra.mxu0 0.0
      %435 = vmatpush.msra.mxu0 0.0
      %436 = vmatpush.msra.mxu0 0.0
      %437 = vmatpush.msra.mxu0 0.0
      %438 = vmatpush.msra.mxu0 0.0
      %439 = vmatpush.msra.mxu0 0.0
      %440 = vmatpush.msra.mxu0 0.0
      %441 = vmatpush.msra.mxu0 0.0
      %442 = vmatpush.msra.mxu0 0.0
      %443 = vmatpush.msra.mxu0 0.0
      %444 = vmatpush.msra.mxu0 0.0
      %445 = vmatpush.msra.mxu0 0.0
      %446 = vmatpush.msra.mxu0 0.0
      %447 = vmatpush.msra.mxu0 %v252
      %448 = vmatmul.f32.gmra.mxu0 %v430
      %v449 = vpop.f32.mrf.mxu0
      %v450 = vadd.f32 0.0, %v449
      %451 = vdwg.mxu0
      %452 = vmatpush.msra.mxu0 0.0
      %453 = vmatpush.msra.mxu0 0.0
      %454 = vmatpush.msra.mxu0 0.0
      %455 = vmatpush.msra.mxu0 0.0
      %456 = vmatpush.msra.mxu0 0.0
      %457 = vmatpush.msra.mxu0 0.0
      %458 = vmatpush.msra.mxu0 0.0
      %459 = vmatpush.msra.mxu0 0.0
      %460 = vmatpush.msra.mxu0 0.0
      %461 = vmatpush.msra.mxu0 0.0
      %462 = vmatpush.msra.mxu0 0.0
      %463 = vmatpush.msra.mxu0 0.0
      %464 = vmatpush.msra.mxu0 0.0
      %465 = vmatpush.msra.mxu0 0.0
      %466 = vmatpush.msra.mxu0 0.0
      %467 = vmatpush.msra.mxu0 %v253
      %468 = vmatmul.f32.gmra.mxu0 %v430
      %v469 = vpop.f32.mrf.mxu0
      %v470 = vadd.f32 0.0, %v469
      %471 = vdwg.mxu0
      %472 = vmatpush.msra.mxu0 0.0
      %473 = vmatpush.msra.mxu0 0.0
      %474 = vmatpush.msra.mxu0 0.0
      %475 = vmatpush.msra.mxu0 0.0
      %476 = vmatpush.msra.mxu0 0.0
      %477 = vmatpush.msra.mxu0 0.0
      %478 = vmatpush.msra.mxu0 0.0
      %479 = vmatpush.msra.mxu0 0.0
      %480 = vmatpush.msra.mxu0 0.0
      %481 = vmatpush.msra.mxu0 0.0
      %482 = vmatpush.msra.mxu0 0.0
      %483 = vmatpush.msra.mxu0 0.0
      %484 = vmatpush.msra.mxu0 0.0
      %485 = vmatpush.msra.mxu0 0.0
      %486 = vmatpush.msra.mxu0 0.0
      %487 = vmatpush.msra.mxu0 %v254
      %488 = vmatmul.f32.gmra.mxu0 %v430
      %v489 = vpop.f32.mrf.mxu0
      %v490 = vadd.f32 0.0, %v489
      %491 = vdwg.mxu0
      %492 = vmatpush.msra.mxu0 0.0
      %493 = vmatpush.msra.mxu0 0.0
      %494 = vmatpush.msra.mxu0 0.0
      %495 = vmatpush.msra.mxu0 0.0
      %496 = vmatpush.msra.mxu0 0.0
      %497 = vmatpush.msra.mxu0 0.0
      %498 = vmatpush.msra.mxu0 0.0
      %499 = vmatpush.msra.mxu0 0.0
      %500 = vmatpush.msra.mxu0 0.0
      %501 = vmatpush.msra.mxu0 0.0
      %502 = vmatpush.msra.mxu0 0.0
      %503 = vmatpush.msra.mxu0 0.0
      %504 = vmatpush.msra.mxu0 0.0
      %505 = vmatpush.msra.mxu0 0.0
      %506 = vmatpush.msra.mxu0 0.0
      %507 = vmatpush.msra.mxu0 %v255
      %508 = vmatmul.f32.gmra.mxu0 %v430
      %v509 = vpop.f32.mrf.mxu0
      %v510 = vadd.f32 0.0, %v509
      %511 = vdwg.mxu0
      %v513 = vsel %vm260, %v233, 0
      %515 = vmatpush.msra.mxu0 0.0
      %516 = vmatpush.msra.mxu0 0.0
      %517 = vmatpush.msra.mxu0 0.0
      %518 = vmatpush.msra.mxu0 0.0
      %519 = vmatpush.msra.mxu0 0.0
      %520 = vmatpush.msra.mxu0 0.0
      %521 = vmatpush.msra.mxu0 0.0
      %522 = vmatpush.msra.mxu0 0.0
      %523 = vmatpush.msra.mxu0 0.0
      %524 = vmatpush.msra.mxu0 0.0
      %525 = vmatpush.msra.mxu0 0.0
      %526 = vmatpush.msra.mxu0 0.0
      %527 = vmatpush.msra.mxu0 0.0
      %528 = vmatpush.msra.mxu0 0.0
      %529 = vmatpush.msra.mxu0 0.0
      %530 = vmatpush.msra.mxu0 %v227
      %531 = vmatmul.f32.gmra.mxu0 %v513
      %v532 = vpop.f32.mrf.mxu0
      %v533 = vadd.f32 %v450, %v532
      %534 = vdwg.mxu0
      %535 = vmatpush.msra.mxu0 0.0
      %536 = vmatpush.msra.mxu0 0.0
      %537 = vmatpush.msra.mxu0 0.0
      %538 = vmatpush.msra.mxu0 0.0
      %539 = vmatpush.msra.mxu0 0.0
      %540 = vmatpush.msra.mxu0 0.0
      %541 = vmatpush.msra.mxu0 0.0
      %542 = vmatpush.msra.mxu0 0.0
      %543 = vmatpush.msra.mxu0 0.0
      %544 = vmatpush.msra.mxu0 0.0
      %545 = vmatpush.msra.mxu0 0.0
      %546 = vmatpush.msra.mxu0 0.0
      %547 = vmatpush.msra.mxu0 0.0
      %548 = vmatpush.msra.mxu0 0.0
      %549 = vmatpush.msra.mxu0 0.0
      %550 = vmatpush.msra.mxu0 %v228
      %551 = vmatmul.f32.gmra.mxu0 %v513
      %v552 = vpop.f32.mrf.mxu0
      %v553 = vadd.f32 %v470, %v552
      %554 = vdwg.mxu0
      %555 = vmatpush.msra.mxu0 0.0
      %556 = vmatpush.msra.mxu0 0.0
      %557 = vmatpush.msra.mxu0 0.0
      %558 = vmatpush.msra.mxu0 0.0
      %559 = vmatpush.msra.mxu0 0.0
      %560 = vmatpush.msra.mxu0 0.0
      %561 = vmatpush.msra.mxu0 0.0
      %562 = vmatpush.msra.mxu0 0.0
      %563 = vmatpush.msra.mxu0 0.0
      %564 = vmatpush.msra.mxu0 0.0
      %565 = vmatpush.msra.mxu0 0.0
      %566 = vmatpush.msra.mxu0 0.0
      %567 = vmatpush.msra.mxu0 0.0
      %568 = vmatpush.msra.mxu0 0.0
      %569 = vmatpush.msra.mxu0 0.0
      %570 = vmatpush.msra.mxu0 %v229
      %571 = vmatmul.f32.gmra.mxu0 %v513
      %v572 = vpop.f32.mrf.mxu0
      %v573 = vadd.f32 %v490, %v572
      %574 = vdwg.mxu0
      %575 = vmatpush.msra.mxu0 0.0
      %576 = vmatpush.msra.mxu0 0.0
      %577 = vmatpush.msra.mxu0 0.0
      %578 = vmatpush.msra.mxu0 0.0
      %579 = vmatpush.msra.mxu0 0.0
      %580 = vmatpush.msra.mxu0 0.0
      %581 = vmatpush.msra.mxu0 0.0
      %582 = vmatpush.msra.mxu0 0.0
      %583 = vmatpush.msra.mxu0 0.0
      %584 = vmatpush.msra.mxu0 0.0
      %585 = vmatpush.msra.mxu0 0.0
      %586 = vmatpush.msra.mxu0 0.0
      %587 = vmatpush.msra.mxu0 0.0
      %588 = vmatpush.msra.mxu0 0.0
      %589 = vmatpush.msra.mxu0 0.0
      %590 = vmatpush.msra.mxu0 %v230
      %591 = vmatmul.f32.gmra.mxu0 %v513
      %v592 = vpop.f32.mrf.mxu0
      %v593 = vadd.f32 %v510, %v592
      %594 = vdwg.mxu0
      %s595 = scalar_lea.vmem %s1, 2
      %v596 = vld [vmem:[%s595] sm:$0x1]
      %597 = vrot.lane.b32.xlu0 %v227, 96
      %v598 = vpop.permute.xlu0 %597
      %599 = vrot.lane.b32.xlu0 %v228, 96
      %v600 = vpop.permute.xlu0 %599
      %601 = vrot.lane.b32.xlu0 %v229, 96
      %v602 = vpop.permute.xlu0 %601
      %603 = vrot.lane.b32.xlu0 %v230, 96
      %v604 = vpop.permute.xlu0 %603
      %605 = vrot.lane.b32.xlu0 %v231, 96
      %v606 = vpop.permute.xlu0 %605
      %vm607 = vcmask 785408
      %v608 = vsel %vm607, %v598, %v600
      %v609 = vsel %vm607, %v600, %v602
      %v610 = vsel %vm607, %v602, %v604
      %v611 = vsel %vm607, %v604, %v606
      %v617 = vsel %vm260, %v596, 0
      %619 = vmatpush.msra.mxu0 0.0
      %620 = vmatpush.msra.mxu0 0.0
      %621 = vmatpush.msra.mxu0 0.0
      %622 = vmatpush.msra.mxu0 0.0
      %623 = vmatpush.msra.mxu0 0.0
      %624 = vmatpush.msra.mxu0 0.0
      %625 = vmatpush.msra.mxu0 0.0
      %626 = vmatpush.msra.mxu0 0.0
      %627 = vmatpush.msra.mxu0 0.0
      %628 = vmatpush.msra.mxu0 0.0
      %629 = vmatpush.msra.mxu0 0.0
      %630 = vmatpush.msra.mxu0 0.0
      %631 = vmatpush.msra.mxu0 0.0
      %632 = vmatpush.msra.mxu0 0.0
      %633 = vmatpush.msra.mxu0 0.0
      %634 = vmatpush.msra.mxu0 %v608
      %635 = vmatmul.f32.gmra.mxu0 %v617
      %v636 = vpop.f32.mrf.mxu0
      %v637 = vadd.f32 0.0, %v636
      %638 = vdwg.mxu0
      %639 = vmatpush.msra.mxu0 0.0
      %640 = vmatpush.msra.mxu0 0.0
      %641 = vmatpush.msra.mxu0 0.0
      %642 = vmatpush.msra.mxu0 0.0
      %643 = vmatpush.msra.mxu0 0.0
      %644 = vmatpush.msra.mxu0 0.0
      %645 = vmatpush.msra.mxu0 0.0
      %646 = vmatpush.msra.mxu0 0.0
      %647 = vmatpush.msra.mxu0 0.0
      %648 = vmatpush.msra.mxu0 0.0
      %649 = vmatpush.msra.mxu0 0.0
      %650 = vmatpush.msra.mxu0 0.0
      %651 = vmatpush.msra.mxu0 0.0
      %652 = vmatpush.msra.mxu0 0.0
      %653 = vmatpush.msra.mxu0 0.0
      %654 = vmatpush.msra.mxu0 %v609
      %655 = vmatmul.f32.gmra.mxu0 %v617
      %v656 = vpop.f32.mrf.mxu0
      %v657 = vadd.f32 0.0, %v656
      %658 = vdwg.mxu0
      %659 = vmatpush.msra.mxu0 0.0
      %660 = vmatpush.msra.mxu0 0.0
      %661 = vmatpush.msra.mxu0 0.0
      %662 = vmatpush.msra.mxu0 0.0
      %663 = vmatpush.msra.mxu0 0.0
      %664 = vmatpush.msra.mxu0 0.0
      %665 = vmatpush.msra.mxu0 0.0
      %666 = vmatpush.msra.mxu0 0.0
      %667 = vmatpush.msra.mxu0 0.0
      %668 = vmatpush.msra.mxu0 0.0
      %669 = vmatpush.msra.mxu0 0.0
      %670 = vmatpush.msra.mxu0 0.0
      %671 = vmatpush.msra.mxu0 0.0
      %672 = vmatpush.msra.mxu0 0.0
      %673 = vmatpush.msra.mxu0 0.0
      %674 = vmatpush.msra.mxu0 %v610
      %675 = vmatmul.f32.gmra.mxu0 %v617
      %v676 = vpop.f32.mrf.mxu0
      %v677 = vadd.f32 0.0, %v676
      %678 = vdwg.mxu0
      %679 = vmatpush.msra.mxu0 0.0
      %680 = vmatpush.msra.mxu0 0.0
      %681 = vmatpush.msra.mxu0 0.0
      %682 = vmatpush.msra.mxu0 0.0
      %683 = vmatpush.msra.mxu0 0.0
      %684 = vmatpush.msra.mxu0 0.0
      %685 = vmatpush.msra.mxu0 0.0
      %686 = vmatpush.msra.mxu0 0.0
      %687 = vmatpush.msra.mxu0 0.0
      %688 = vmatpush.msra.mxu0 0.0
      %689 = vmatpush.msra.mxu0 0.0
      %690 = vmatpush.msra.mxu0 0.0
      %691 = vmatpush.msra.mxu0 0.0
      %692 = vmatpush.msra.mxu0 0.0
      %693 = vmatpush.msra.mxu0 0.0
      %694 = vmatpush.msra.mxu0 %v611
      %695 = vmatmul.f32.gmra.mxu0 %v617
      %v696 = vpop.f32.mrf.mxu0
      %v697 = vadd.f32 0.0, %v696
      %698 = vdwg.mxu0
      %v699 = vadd.f32 %v365, %v637
      %v700 = vadd.f32 %v385, %v657
      %v701 = vadd.f32 %v405, %v677
      %v702 = vadd.f32 %v425, %v697
      %s703 = scalar_lea.vmem %s2, 2
      %v704 = vld [vmem:[%s703] sm:$0x1]
      %v706 = vsel %vm260, %v704, 0
      %708 = vmatpush.msra.mxu0 0.0
      %709 = vmatpush.msra.mxu0 0.0
      %710 = vmatpush.msra.mxu0 0.0
      %711 = vmatpush.msra.mxu0 0.0
      %712 = vmatpush.msra.mxu0 0.0
      %713 = vmatpush.msra.mxu0 0.0
      %714 = vmatpush.msra.mxu0 0.0
      %715 = vmatpush.msra.mxu0 0.0
      %716 = vmatpush.msra.mxu0 0.0
      %717 = vmatpush.msra.mxu0 0.0
      %718 = vmatpush.msra.mxu0 0.0
      %719 = vmatpush.msra.mxu0 0.0
      %720 = vmatpush.msra.mxu0 0.0
      %721 = vmatpush.msra.mxu0 0.0
      %722 = vmatpush.msra.mxu0 0.0
      %723 = vmatpush.msra.mxu0 %v608
      %724 = vmatmul.f32.gmra.mxu0 %v706
      %v725 = vpop.f32.mrf.mxu0
      %v726 = vadd.f32 0.0, %v725
      %727 = vdwg.mxu0
      %728 = vmatpush.msra.mxu0 0.0
      %729 = vmatpush.msra.mxu0 0.0
      %730 = vmatpush.msra.mxu0 0.0
      %731 = vmatpush.msra.mxu0 0.0
      %732 = vmatpush.msra.mxu0 0.0
      %733 = vmatpush.msra.mxu0 0.0
      %734 = vmatpush.msra.mxu0 0.0
      %735 = vmatpush.msra.mxu0 0.0
      %736 = vmatpush.msra.mxu0 0.0
      %737 = vmatpush.msra.mxu0 0.0
      %738 = vmatpush.msra.mxu0 0.0
      %739 = vmatpush.msra.mxu0 0.0
      %740 = vmatpush.msra.mxu0 0.0
      %741 = vmatpush.msra.mxu0 0.0
      %742 = vmatpush.msra.mxu0 0.0
      %743 = vmatpush.msra.mxu0 %v609
      %744 = vmatmul.f32.gmra.mxu0 %v706
      %v745 = vpop.f32.mrf.mxu0
      %v746 = vadd.f32 0.0, %v745
      %747 = vdwg.mxu0
      %748 = vmatpush.msra.mxu0 0.0
      %749 = vmatpush.msra.mxu0 0.0
      %750 = vmatpush.msra.mxu0 0.0
      %751 = vmatpush.msra.mxu0 0.0
      %752 = vmatpush.msra.mxu0 0.0
      %753 = vmatpush.msra.mxu0 0.0
      %754 = vmatpush.msra.mxu0 0.0
      %755 = vmatpush.msra.mxu0 0.0
      %756 = vmatpush.msra.mxu0 0.0
      %757 = vmatpush.msra.mxu0 0.0
      %758 = vmatpush.msra.mxu0 0.0
      %759 = vmatpush.msra.mxu0 0.0
      %760 = vmatpush.msra.mxu0 0.0
      %761 = vmatpush.msra.mxu0 0.0
      %762 = vmatpush.msra.mxu0 0.0
      %763 = vmatpush.msra.mxu0 %v610
      %764 = vmatmul.f32.gmra.mxu0 %v706
      %v765 = vpop.f32.mrf.mxu0
      %v766 = vadd.f32 0.0, %v765
      %767 = vdwg.mxu0
      %768 = vmatpush.msra.mxu0 0.0
      %769 = vmatpush.msra.mxu0 0.0
      %770 = vmatpush.msra.mxu0 0.0
      %771 = vmatpush.msra.mxu0 0.0
      %772 = vmatpush.msra.mxu0 0.0
      %773 = vmatpush.msra.mxu0 0.0
      %774 = vmatpush.msra.mxu0 0.0
      %775 = vmatpush.msra.mxu0 0.0
      %776 = vmatpush.msra.mxu0 0.0
      %777 = vmatpush.msra.mxu0 0.0
      %778 = vmatpush.msra.mxu0 0.0
      %779 = vmatpush.msra.mxu0 0.0
      %780 = vmatpush.msra.mxu0 0.0
      %781 = vmatpush.msra.mxu0 0.0
      %782 = vmatpush.msra.mxu0 0.0
      %783 = vmatpush.msra.mxu0 %v611
      %784 = vmatmul.f32.gmra.mxu0 %v706
      %v785 = vpop.f32.mrf.mxu0
      %v786 = vadd.f32 0.0, %v785
      %787 = vdwg.mxu0
      %v788 = vadd.f32 %v533, %v726
      %v789 = vadd.f32 %v553, %v746
      %v790 = vadd.f32 %v573, %v766
      %v791 = vadd.f32 %v593, %v786
      %v792 = vld [vmem:[#allocation2] sm:$0x1]
      %794 = vset.pattern.permute.xlu0 0
      %795 = vperm.xlu0 %794, %v792
      %v796 = vpop.permute.xlu0 %795
      %v798 = vperm.slane %v796, 0
      %v799 = vadd.f32 %v699, %v798
      %v800 = vadd.f32 %v700, %v798
      %v801 = vadd.f32 %v701, %v798
      %v802 = vadd.f32 %v702, %v798
      %v803 = vld [vmem:[#allocation3] sm:$0x1]
      %805 = vset.pattern.permute.xlu0 0
      %806 = vperm.xlu0 %805, %v803
      %v807 = vpop.permute.xlu0 %806
      %v809 = vperm.slane %v807, 0
      %v810 = vadd.f32 %v788, %v809
      %v811 = vadd.f32 %v789, %v809
      %v812 = vadd.f32 %v790, %v809
      %v813 = vadd.f32 %v791, %v809
      %v814 = vxor.u32 %v810, 2147483648
      %v815 = vxor.u32 %v811, 2147483648
      %v816 = vxor.u32 %v812, 2147483648
      %v817 = vxor.u32 %v813, 2147483648
      %v818 = vmul.f32 %v814, 1.442695
      %v819 = vpow.pop %v818
      %v820 = vmul.f32 %v815, 1.442695
      %v821 = vpow.pop %v820
      %v822 = vmul.f32 %v816, 1.442695
      %v823 = vpow.pop %v822
      %v824 = vmul.f32 %v817, 1.442695
      %v825 = vpow.pop %v824
      %v826 = vadd.f32 %v819, 1.0
      %v827 = vadd.f32 %v821, 1.0
      %v828 = vadd.f32 %v823, 1.0
      %v829 = vadd.f32 %v825, 1.0
      %v830 = vrcp.pop %v826
      %v831 = vmul.f32 %v826, %v830
      %v832 = vsub.f32 1.0, %v831
      %v833 = vmul.f32 %v830, %v832
      %v834 = vadd.f32 %v830, %v833
      %vm835 = vweird.f32 %v826
      %vm836 = vweird.f32 %v830
      %vm837 = vmor %vm835, %vm836
      %v838 = vsel %vm837, %v830, %v834
      %v839 = vand.u32 2147483647, %v826
      %vm840 = vcmp.eq.f32.partialorder %v839, 8.507059e+37
      %v841 = vand.u32 %v826, 2147483648
      %v842 = vor.u32 1.1754944e-38, %v841
      %v843 = vsel %vm840, %v842, %v838
      %v844 = vmul.f32 1.0, %v843
      %v845 = vrcp.pop %v827
      %v846 = vmul.f32 %v827, %v845
      %v847 = vsub.f32 1.0, %v846
      %v848 = vmul.f32 %v845, %v847
      %v849 = vadd.f32 %v845, %v848
      %vm850 = vweird.f32 %v827
      %vm851 = vweird.f32 %v845
      %vm852 = vmor %vm850, %vm851
      %v853 = vsel %vm852, %v845, %v849
      %v854 = vand.u32 2147483647, %v827
      %vm855 = vcmp.eq.f32.partialorder %v854, 8.507059e+37
      %v856 = vand.u32 %v827, 2147483648
      %v857 = vor.u32 1.1754944e-38, %v856
      %v858 = vsel %vm855, %v857, %v853
      %v859 = vmul.f32 1.0, %v858
      %v860 = vrcp.pop %v828
      %v861 = vmul.f32 %v828, %v860
      %v862 = vsub.f32 1.0, %v861
      %v863 = vmul.f32 %v860, %v862
      %v864 = vadd.f32 %v860, %v863
      %vm865 = vweird.f32 %v828
      %vm866 = vweird.f32 %v860
      %vm867 = vmor %vm865, %vm866
      %v868 = vsel %vm867, %v860, %v864
      %v869 = vand.u32 2147483647, %v828
      %vm870 = vcmp.eq.f32.partialorder %v869, 8.507059e+37
      %v871 = vand.u32 %v828, 2147483648
      %v872 = vor.u32 1.1754944e-38, %v871
      %v873 = vsel %vm870, %v872, %v868
      %v874 = vmul.f32 1.0, %v873
      %v875 = vrcp.pop %v829
      %v876 = vmul.f32 %v829, %v875
      %v877 = vsub.f32 1.0, %v876
      %v878 = vmul.f32 %v875, %v877
      %v879 = vadd.f32 %v875, %v878
      %vm880 = vweird.f32 %v829
      %vm881 = vweird.f32 %v875
      %vm882 = vmor %vm880, %vm881
      %v883 = vsel %vm882, %v875, %v879
      %v884 = vand.u32 2147483647, %v829
      %vm885 = vcmp.eq.f32.partialorder %v884, 8.507059e+37
      %v886 = vand.u32 %v829, 2147483648
      %v887 = vor.u32 1.1754944e-38, %v886
      %v888 = vsel %vm885, %v887, %v883
      %v889 = vmul.f32 1.0, %v888
      %v890 = vmul.f32 %v799, %v844
      %v891 = vmul.f32 %v800, %v859
      %v892 = vmul.f32 %v801, %v874
      %v893 = vmul.f32 %v802, %v889
      %v898 = vrot.slane %v891, 7
      %v899 = vrot.slane %v892, 6
      %v900 = vrot.slane %v893, 5
      %vm901 = vcmask 1040384
      %v902 = vsel %vm901, %v890, %v898
      %vm903 = vcmask 1042434
      %v904 = vsel %vm903, %v899, %v900
      %vm905 = vcmask 1041408
      %v906 = vsel %vm905, %v902, %v904
      %v908 = vlaneseq
      %vm909 = vcmp.ge.s32.totalorder %v908, 0
      %vm910 = vcmp.lt.s32.totalorder %v908, 512
      %vm911 = vmand %vm909, %vm910
      %912 = vst.msk [vmem:[%s226] sm:$0xf] %vm911, %v906
      %p913 = scmp.lt.s32.totalorder %s20, 1
      %s914 = scalar_select %p913, %s20, 1
      %s915 = smul.addr %s914, 4
      %s916 = scalar_lea.vmem %s5, %s915
      // Predicated region
      $region41: #{stgcn_forward.22} parent=39 // pred_check
        %p917 = pneg %p148
      $region42: #{stgcn_forward.22} parent=39 // pred_check_branch
        %919 = sbr.rel (%p917) target = $region44
      $region43: #{stgcn_forward.22} parent=39 // pred_region
        _
      $region44: #{stgcn_forward.22} parent=39 // pred_fallthru
        _
    $region40: #{stgcn_forward.22} parent=5 // pred_fallthru
      _
    %p920 = scmp.le.s32.totalorder 2, %s15
    // Predicated region
    $region45: #{stgcn_forward.22} parent=5 // pred_check
      %p921 = pneg %p920
    $region46: #{stgcn_forward.22} parent=5 // pred_check_branch
      %923 = sbr.rel (%p921) target = $region48
    $region47: #{stgcn_forward.22} parent=5 // pred_region
      %s924 = ssub.s32 %s15, 2
      // Predicated region
      $region49: #{stgcn_forward.22} parent=47 // pred_check
        %p925 = pneg %p154
      $region50: #{stgcn_forward.22} parent=47 // pred_check_branch
        %927 = sbr.rel (%p925) target = $region52
      $region51: #{stgcn_forward.22} parent=47 // pred_region
        %p928 = scmp.lt.s32.totalorder %s21, 1
        %s929 = scalar_select %p928, %s21, 1
        %s930 = smul.addr %s929, 4
        %s931 = scalar_lea.vmem %s5, %s930
      $region52: #{stgcn_forward.22} parent=47 // pred_fallthru
        _
    $region48: #{stgcn_forward.22} parent=5 // pred_fallthru
      _
  $region6: #{stgcn_forward.22} parent=0 // loop_footer
    %s19 = sadd.s32 1, %s15
  $region7: #{stgcn_forward.22} parent=0 // loop_footer_branch
    %14 = sbr.rel target = $region3
  $region8: #{stgcn_forward.22} parent=0 // loop_exit
    _

// kernel: stgcn_forward.21
$region0: #{stgcn_forward.21}
  #allocation0 [shape = 'u32[]', space=smem, size = 0x4, offset = 0x4, fixed_abs, tag = 'smem constant byte address 0x4 - core index']
  #allocation1 [shape = 'u32[72,128]{1,0:T(1,128)}', space=vmem, size = 0x9000, scoped, tag = 'internal scratch']
  %s0 = inlined_call_operand.vmem [shape: f32[512,16], index: 0, kind: input, shape index: {}]
  %s1 = inlined_call_operand.vmem [shape: f32[1,16], index: 1, kind: input, shape index: {}]
  %s2 = inlined_call_operand.vmem [shape: f32[1,16], index: 2, kind: input, shape index: {}]
  %s3 = inlined_call_operand.vmem [shape: f32[512,16], index: 3, kind: output, shape index: {}]
  %s4 = sld [smem:[#allocation0]]
  $region22: #{stgcn_forward.21} parent=0
    _
  %s6 = ssub.s32 1, %s4
  %s7 = scalar_select 0, %s6, %s4
  // Predicated region
  $region2: #{stgcn_forward.21} parent=0 // pred_check
    _
  $region3: #{stgcn_forward.21} parent=0 // pred_check_branch
    %9 = sbr.rel (0) target = $region5
  $region4: #{stgcn_forward.21} parent=0 // pred_region
    _
  $region5: #{stgcn_forward.21} parent=0 // pred_fallthru
    _
  // Predicated region
  $region6: #{stgcn_forward.21} parent=0 // pred_check
    _
  $region7: #{stgcn_forward.21} parent=0 // pred_check_branch
    %11 = sbr.rel (0) target = $region9
  $region8: #{stgcn_forward.21} parent=0 // pred_region
    _
  $region9: #{stgcn_forward.21} parent=0 // pred_fallthru
    _
  // Predicated region
  $region10: #{stgcn_forward.21} parent=0 // pred_check
    _
  $region11: #{stgcn_forward.21} parent=0 // pred_check_branch
    %13 = sbr.rel (0) target = $region13
  $region12: #{stgcn_forward.21} parent=0 // pred_region
    _
  $region13: #{stgcn_forward.21} parent=0 // pred_fallthru
    _
  %v14 = vld [vmem:[%s0] sm:$0xff]
  %v15 = vld [vmem:[%s0 + $0x8] sm:$0xff]
  %v16 = vld [vmem:[%s0 + $0x10] sm:$0xff]
  %v17 = vld [vmem:[%s0 + $0x18] sm:$0xff]
  %v18 = vld [vmem:[%s0 + $0x20] sm:$0xff]
  %v19 = vld [vmem:[%s0 + $0x28] sm:$0xff]
  %v20 = vld [vmem:[%s0 + $0x30] sm:$0xff]
  %v21 = vld [vmem:[%s0 + $0x38] sm:$0xff]
  %v22 = vld [vmem:[%s0 + $0x40] sm:$0xff]
  %v23 = vld [vmem:[%s0 + $0x48] sm:$0xff]
  %v24 = vld [vmem:[%s0 + $0x50] sm:$0xff]
  %v25 = vld [vmem:[%s0 + $0x58] sm:$0xff]
  %v26 = vld [vmem:[%s0 + $0x60] sm:$0xff]
  %v27 = vld [vmem:[%s0 + $0x68] sm:$0xff]
  %v28 = vld [vmem:[%s0 + $0x70] sm:$0xff]
  %v29 = vld [vmem:[%s0 + $0x78] sm:$0xff]
  %v30 = vld [vmem:[%s0 + $0x80] sm:$0xff]
  %v31 = vld [vmem:[%s0 + $0x88] sm:$0xff]
  %v32 = vld [vmem:[%s0 + $0x90] sm:$0xff]
  %v33 = vld [vmem:[%s0 + $0x98] sm:$0xff]
  %v34 = vld [vmem:[%s0 + $0xa0] sm:$0xff]
  %v35 = vld [vmem:[%s0 + $0xa8] sm:$0xff]
  %v36 = vld [vmem:[%s0 + $0xb0] sm:$0xff]
  %v37 = vld [vmem:[%s0 + $0xb8] sm:$0xff]
  %v38 = vld [vmem:[%s0 + $0xc0] sm:$0xff]
  %v39 = vld [vmem:[%s0 + $0xc8] sm:$0xff]
  %v40 = vld [vmem:[%s0 + $0xd0] sm:$0xff]
  %v41 = vld [vmem:[%s0 + $0xd8] sm:$0xff]
  %v42 = vld [vmem:[%s0 + $0xe0] sm:$0xff]
  %v43 = vld [vmem:[%s0 + $0xe8] sm:$0xff]
  %v44 = vld [vmem:[%s0 + $0xf0] sm:$0xff]
  %v45 = vld [vmem:[%s0 + $0xf8] sm:$0xff]
  %v46 = vld [vmem:[%s0 + $0x100] sm:$0xff]
  %v47 = vld [vmem:[%s0 + $0x108] sm:$0xff]
  %v48 = vld [vmem:[%s0 + $0x110] sm:$0xff]
  %v49 = vld [vmem:[%s0 + $0x118] sm:$0xff]
  %v50 = vld [vmem:[%s0 + $0x120] sm:$0xff]
  %v51 = vld [vmem:[%s0 + $0x128] sm:$0xff]
  %v52 = vld [vmem:[%s0 + $0x130] sm:$0xff]
  %v53 = vld [vmem:[%s0 + $0x138] sm:$0xff]
  %v54 = vld [vmem:[%s0 + $0x140] sm:$0xff]
  %v55 = vld [vmem:[%s0 + $0x148] sm:$0xff]
  %v56 = vld [vmem:[%s0 + $0x150] sm:$0xff]
  %v57 = vld [vmem:[%s0 + $0x158] sm:$0xff]
  %v58 = vld [vmem:[%s0 + $0x160] sm:$0xff]
  %v59 = vld [vmem:[%s0 + $0x168] sm:$0xff]
  %v60 = vld [vmem:[%s0 + $0x170] sm:$0xff]
  %v61 = vld [vmem:[%s0 + $0x178] sm:$0xff]
  %v62 = vld [vmem:[%s0 + $0x180] sm:$0xff]
  %v63 = vld [vmem:[%s0 + $0x188] sm:$0xff]
  %v64 = vld [vmem:[%s0 + $0x190] sm:$0xff]
  %v65 = vld [vmem:[%s0 + $0x198] sm:$0xff]
  %v66 = vld [vmem:[%s0 + $0x1a0] sm:$0xff]
  %v67 = vld [vmem:[%s0 + $0x1a8] sm:$0xff]
  %v68 = vld [vmem:[%s0 + $0x1b0] sm:$0xff]
  %v69 = vld [vmem:[%s0 + $0x1b8] sm:$0xff]
  %v70 = vld [vmem:[%s0 + $0x1c0] sm:$0xff]
  %v71 = vld [vmem:[%s0 + $0x1c8] sm:$0xff]
  %v72 = vld [vmem:[%s0 + $0x1d0] sm:$0xff]
  %v73 = vld [vmem:[%s0 + $0x1d8] sm:$0xff]
  %v74 = vld [vmem:[%s0 + $0x1e0] sm:$0xff]
  %v75 = vld [vmem:[%s0 + $0x1e8] sm:$0xff]
  %v76 = vld [vmem:[%s0 + $0x1f0] sm:$0xff]
  %v77 = vld [vmem:[%s0 + $0x1f8] sm:$0xff]
  %vm78 = vcmask 130048
  %v79 = vsel %vm78, %v14, 0.0
  %v80 = vsel %vm78, %v15, 0.0
  %v81 = vadd.f32 %v79, %v80
  %v82 = vsel %vm78, %v16, 0.0
  %v83 = vadd.f32 %v81, %v82
  %v84 = vsel %vm78, %v17, 0.0
  %v85 = vadd.f32 %v83, %v84
  %v86 = vsel %vm78, %v18, 0.0
  %v87 = vadd.f32 %v85, %v86
  %v88 = vsel %vm78, %v19, 0.0
  %v89 = vadd.f32 %v87, %v88
  %v90 = vsel %vm78, %v20, 0.0
  %v91 = vadd.f32 %v89, %v90
  %v92 = vsel %vm78, %v21, 0.0
  %v93 = vadd.f32 %v91, %v92
  %v94 = vsel %vm78, %v22, 0.0
  %v95 = vadd.f32 %v93, %v94
  %v96 = vsel %vm78, %v23, 0.0
  %v97 = vadd.f32 %v95, %v96
  %v98 = vsel %vm78, %v24, 0.0
  %v99 = vadd.f32 %v97, %v98
  %v100 = vsel %vm78, %v25, 0.0
  %v101 = vadd.f32 %v99, %v100
  %v102 = vsel %vm78, %v26, 0.0
  %v103 = vadd.f32 %v101, %v102
  %v104 = vsel %vm78, %v27, 0.0
  %v105 = vadd.f32 %v103, %v104
  %v106 = vsel %vm78, %v28, 0.0
  %v107 = vadd.f32 %v105, %v106
  %v108 = vsel %vm78, %v29, 0.0
  %v109 = vadd.f32 %v107, %v108
  %v110 = vsel %vm78, %v30, 0.0
  %v111 = vadd.f32 %v109, %v110
  %v112 = vsel %vm78, %v31, 0.0
  %v113 = vadd.f32 %v111, %v112
  %v114 = vsel %vm78, %v32, 0.0
  %v115 = vadd.f32 %v113, %v114
  %v116 = vsel %vm78, %v33, 0.0
  %v117 = vadd.f32 %v115, %v116
  %v118 = vsel %vm78, %v34, 0.0
  %v119 = vadd.f32 %v117, %v118
  %v120 = vsel %vm78, %v35, 0.0
  %v121 = vadd.f32 %v119, %v120
  %v122 = vsel %vm78, %v36, 0.0
  %v123 = vadd.f32 %v121, %v122
  %v124 = vsel %vm78, %v37, 0.0
  %v125 = vadd.f32 %v123, %v124
  %v126 = vsel %vm78, %v38, 0.0
  %v127 = vadd.f32 %v125, %v126
  %v128 = vsel %vm78, %v39, 0.0
  %v129 = vadd.f32 %v127, %v128
  %v130 = vsel %vm78, %v40, 0.0
  %v131 = vadd.f32 %v129, %v130
  %v132 = vsel %vm78, %v41, 0.0
  %v133 = vadd.f32 %v131, %v132
  %v134 = vsel %vm78, %v42, 0.0
  %v135 = vadd.f32 %v133, %v134
  %v136 = vsel %vm78, %v43, 0.0
  %v137 = vadd.f32 %v135, %v136
  %v138 = vsel %vm78, %v44, 0.0
  %v139 = vadd.f32 %v137, %v138
  %v140 = vsel %vm78, %v45, 0.0
  %v141 = vadd.f32 %v139, %v140
  %v142 = vsel %vm78, %v46, 0.0
  %v143 = vadd.f32 %v141, %v142
  %v144 = vsel %vm78, %v47, 0.0
  %v145 = vadd.f32 %v143, %v144
  %v146 = vsel %vm78, %v48, 0.0
  %v147 = vadd.f32 %v145, %v146
  %v148 = vsel %vm78, %v49, 0.0
  %v149 = vadd.f32 %v147, %v148
  %v150 = vsel %vm78, %v50, 0.0
  %v151 = vadd.f32 %v149, %v150
  %v152 = vsel %vm78, %v51, 0.0
  %v153 = vadd.f32 %v151, %v152
  %v154 = vsel %vm78, %v52, 0.0
  %v155 = vadd.f32 %v153, %v154
  %v156 = vsel %vm78, %v53, 0.0
  %v157 = vadd.f32 %v155, %v156
  %v158 = vsel %vm78, %v54, 0.0
  %v159 = vadd.f32 %v157, %v158
  %v160 = vsel %vm78, %v55, 0.0
  %v161 = vadd.f32 %v159, %v160
  %v162 = vsel %vm78, %v56, 0.0
  %v163 = vadd.f32 %v161, %v162
  %v164 = vsel %vm78, %v57, 0.0
  %v165 = vadd.f32 %v163, %v164
  %v166 = vsel %vm78, %v58, 0.0
  %v167 = vadd.f32 %v165, %v166
  %v168 = vsel %vm78, %v59, 0.0
  %v169 = vadd.f32 %v167, %v168
  %v170 = vsel %vm78, %v60, 0.0
  %v171 = vadd.f32 %v169, %v170
  %v172 = vsel %vm78, %v61, 0.0
  %v173 = vadd.f32 %v171, %v172
  %v174 = vsel %vm78, %v62, 0.0
  %v175 = vadd.f32 %v173, %v174
  %v176 = vsel %vm78, %v63, 0.0
  %v177 = vadd.f32 %v175, %v176
  %v178 = vsel %vm78, %v64, 0.0
  %v179 = vadd.f32 %v177, %v178
  %v180 = vsel %vm78, %v65, 0.0
  %v181 = vadd.f32 %v179, %v180
  %v182 = vsel %vm78, %v66, 0.0
  %v183 = vadd.f32 %v181, %v182
  %v184 = vsel %vm78, %v67, 0.0
  %v185 = vadd.f32 %v183, %v184
  %v186 = vsel %vm78, %v68, 0.0
  %v187 = vadd.f32 %v185, %v186
  %v188 = vsel %vm78, %v69, 0.0
  %v189 = vadd.f32 %v187, %v188
  %v190 = vsel %vm78, %v70, 0.0
  %v191 = vadd.f32 %v189, %v190
  %v192 = vsel %vm78, %v71, 0.0
  %v193 = vadd.f32 %v191, %v192
  %v194 = vsel %vm78, %v72, 0.0
  %v195 = vadd.f32 %v193, %v194
  %v196 = vsel %vm78, %v73, 0.0
  %v197 = vadd.f32 %v195, %v196
  %v198 = vsel %vm78, %v74, 0.0
  %v199 = vadd.f32 %v197, %v198
  %v200 = vsel %vm78, %v75, 0.0
  %v201 = vadd.f32 %v199, %v200
  %v202 = vsel %vm78, %v76, 0.0
  %v203 = vadd.f32 %v201, %v202
  %v204 = vsel %vm78, %v77, 0.0
  %v205 = vadd.f32 %v203, %v204
  %v206 = vrot.slane %v205, 4
  %v207 = vadd.f32 %v205, %v206
  %v208 = vrot.slane %v207, 2
  %v209 = vadd.f32 %v207, %v208
  %v210 = vrot.slane %v209, 1
  %v211 = vadd.f32 %v209, %v210
  %v212 = vrcp.pop 512.0
  %v213 = vmul.f32 512.0, %v212
  %v214 = vsub.f32 1.0, %v213
  %v215 = vmul.f32 %v212, %v214
  %v216 = vadd.f32 %v212, %v215
  %vm217 = vweird.f32 %v212
  %v218 = vsel %vm217, %v212, %v216
  %v219 = vmul.f32 %v211, %v218
  %v220 = vsub.f32 %v14, %v219
  %v221 = vsub.f32 %v15, %v219
  %v222 = vsub.f32 %v16, %v219
  %v223 = vsub.f32 %v17, %v219
  %v224 = vsub.f32 %v18, %v219
  %v225 = vsub.f32 %v19, %v219
  %v226 = vsub.f32 %v20, %v219
  %v227 = vsub.f32 %v21, %v219
  %v228 = vsub.f32 %v22, %v219
  %v229 = vsub.f32 %v23, %v219
  %v230 = vsub.f32 %v24, %v219
  %v231 = vsub.f32 %v25, %v219
  %v232 = vsub.f32 %v26, %v219
  %v233 = vsub.f32 %v27, %v219
  %v234 = vsub.f32 %v28, %v219
  %v235 = vsub.f32 %v29, %v219
  %v236 = vsub.f32 %v30, %v219
  %v237 = vsub.f32 %v31, %v219
  %v238 = vsub.f32 %v32, %v219
  %v239 = vsub.f32 %v33, %v219
  %v240 = vsub.f32 %v34, %v219
  %v241 = vsub.f32 %v35, %v219
  %v242 = vsub.f32 %v36, %v219
  %v243 = vsub.f32 %v37, %v219
  %v244 = vsub.f32 %v38, %v219
  %v245 = vsub.f32 %v39, %v219
  %v246 = vsub.f32 %v40, %v219
  %v247 = vsub.f32 %v41, %v219
  %v248 = vsub.f32 %v42, %v219
  %v249 = vsub.f32 %v43, %v219
  %v250 = vsub.f32 %v44, %v219
  %v251 = vsub.f32 %v45, %v219
  %v252 = vsub.f32 %v46, %v219
  %v253 = vsub.f32 %v47, %v219
  %v254 = vsub.f32 %v48, %v219
  %v255 = vsub.f32 %v49, %v219
  %v256 = vsub.f32 %v50, %v219
  %v257 = vsub.f32 %v51, %v219
  %v258 = vsub.f32 %v52, %v219
  %v259 = vsub.f32 %v53, %v219
  %v260 = vsub.f32 %v54, %v219
  %v261 = vsub.f32 %v55, %v219
  %v262 = vsub.f32 %v56, %v219
  %v263 = vsub.f32 %v57, %v219
  %v264 = vsub.f32 %v58, %v219
  %v265 = vsub.f32 %v59, %v219
  %v266 = vsub.f32 %v60, %v219
  %v267 = vsub.f32 %v61, %v219
  %v268 = vsub.f32 %v62, %v219
  %v269 = vsub.f32 %v63, %v219
  %v270 = vsub.f32 %v64, %v219
  %v271 = vsub.f32 %v65, %v219
  %v272 = vsub.f32 %v66, %v219
  %v273 = vsub.f32 %v67, %v219
  %v274 = vsub.f32 %v68, %v219
  %v275 = vsub.f32 %v69, %v219
  %v276 = vsub.f32 %v70, %v219
  %v277 = vsub.f32 %v71, %v219
  %v278 = vsub.f32 %v72, %v219
  %v279 = vsub.f32 %v73, %v219
  %v280 = vsub.f32 %v74, %v219
  %v281 = vsub.f32 %v75, %v219
  %v282 = vsub.f32 %v76, %v219
  %v283 = vsub.f32 %v77, %v219
  %v284 = vmul.f32 %v220, %v220
  %v285 = vmul.f32 %v221, %v221
  %v286 = vmul.f32 %v222, %v222
  %v287 = vmul.f32 %v223, %v223
  %v288 = vmul.f32 %v224, %v224
  %v289 = vmul.f32 %v225, %v225
  %v290 = vmul.f32 %v226, %v226
  %v291 = vmul.f32 %v227, %v227
  %v292 = vmul.f32 %v228, %v228
  %v293 = vmul.f32 %v229, %v229
  %v294 = vmul.f32 %v230, %v230
  %v295 = vmul.f32 %v231, %v231
  %v296 = vmul.f32 %v232, %v232
  %v297 = vmul.f32 %v233, %v233
  %v298 = vmul.f32 %v234, %v234
  %v299 = vmul.f32 %v235, %v235
  %v300 = vmul.f32 %v236, %v236
  %v301 = vmul.f32 %v237, %v237
  %v302 = vmul.f32 %v238, %v238
  %v303 = vmul.f32 %v239, %v239
  %v304 = vmul.f32 %v240, %v240
  %v305 = vmul.f32 %v241, %v241
  %v306 = vmul.f32 %v242, %v242
  %v307 = vmul.f32 %v243, %v243
  %v308 = vmul.f32 %v244, %v244
  %v309 = vmul.f32 %v245, %v245
  %v310 = vmul.f32 %v246, %v246
  %v311 = vmul.f32 %v247, %v247
  %v312 = vmul.f32 %v248, %v248
  %v313 = vmul.f32 %v249, %v249
  %v314 = vmul.f32 %v250, %v250
  %v315 = vmul.f32 %v251, %v251
  %v316 = vmul.f32 %v252, %v252
  %v317 = vmul.f32 %v253, %v253
  %v318 = vmul.f32 %v254, %v254
  %v319 = vmul.f32 %v255, %v255
  %v320 = vmul.f32 %v256, %v256
  %v321 = vmul.f32 %v257, %v257
  %v322 = vmul.f32 %v258, %v258
  %v323 = vmul.f32 %v259, %v259
  %v324 = vmul.f32 %v260, %v260
  %v325 = vmul.f32 %v261, %v261
  %v326 = vmul.f32 %v262, %v262
  %v327 = vmul.f32 %v263, %v263
  %v328 = vmul.f32 %v264, %v264
  %v329 = vmul.f32 %v265, %v265
  %v330 = vmul.f32 %v266, %v266
  %v331 = vmul.f32 %v267, %v267
  %v332 = vmul.f32 %v268, %v268
  %v333 = vmul.f32 %v269, %v269
  %v334 = vmul.f32 %v270, %v270
  %v335 = vmul.f32 %v271, %v271
  %v336 = vmul.f32 %v272, %v272
  %v337 = vmul.f32 %v273, %v273
  %v338 = vmul.f32 %v274, %v274
  %v339 = vmul.f32 %v275, %v275
  %v340 = vmul.f32 %v276, %v276
  %v341 = vmul.f32 %v277, %v277
  %v342 = vmul.f32 %v278, %v278
  %v343 = vmul.f32 %v279, %v279
  %v344 = vmul.f32 %v280, %v280
  %v345 = vmul.f32 %v281, %v281
  %v346 = vmul.f32 %v282, %v282
  %v347 = vmul.f32 %v283, %v283
  %v348 = vsel %vm78, %v284, 0.0
  %v349 = vsel %vm78, %v285, 0.0
  %v350 = vadd.f32 %v348, %v349
  %v351 = vsel %vm78, %v286, 0.0
  %v352 = vadd.f32 %v350, %v351
  %v353 = vsel %vm78, %v287, 0.0
  %v354 = vadd.f32 %v352, %v353
  %v355 = vsel %vm78, %v288, 0.0
  %v356 = vadd.f32 %v354, %v355
  %v357 = vsel %vm78, %v289, 0.0
  %v358 = vadd.f32 %v356, %v357
  %v359 = vsel %vm78, %v290, 0.0
  %v360 = vadd.f32 %v358, %v359
  %v361 = vsel %vm78, %v291, 0.0
  %v362 = vadd.f32 %v360, %v361
  %v363 = vsel %vm78, %v292, 0.0
  %v364 = vadd.f32 %v362, %v363
  %v365 = vsel %vm78, %v293, 0.0
  %v366 = vadd.f32 %v364, %v365
  %v367 = vsel %vm78, %v294, 0.0
  %v368 = vadd.f32 %v366, %v367
  %v369 = vsel %vm78, %v295, 0.0
  %v370 = vadd.f32 %v368, %v369
  %v371 = vsel %vm78, %v296, 0.0
  %v372 = vadd.f32 %v370, %v371
  %v373 = vsel %vm78, %v297, 0.0
  %v374 = vadd.f32 %v372, %v373
  %v375 = vsel %vm78, %v298, 0.0
  %v376 = vadd.f32 %v374, %v375
  %v377 = vsel %vm78, %v299, 0.0
  %v378 = vadd.f32 %v376, %v377
  %v379 = vsel %vm78, %v300, 0.0
  %v380 = vadd.f32 %v378, %v379
  %v381 = vsel %vm78, %v301, 0.0
  %v382 = vadd.f32 %v380, %v381
  %v383 = vsel %vm78, %v302, 0.0
  %v384 = vadd.f32 %v382, %v383
  %v385 = vsel %vm78, %v303, 0.0
  %v386 = vadd.f32 %v384, %v385
  %v387 = vsel %vm78, %v304, 0.0
  %v388 = vadd.f32 %v386, %v387
  %v389 = vsel %vm78, %v305, 0.0
  %v390 = vadd.f32 %v388, %v389
  %v391 = vsel %vm78, %v306, 0.0
  %v392 = vadd.f32 %v390, %v391
  %v393 = vsel %vm78, %v307, 0.0
  %v394 = vadd.f32 %v392, %v393
  %v395 = vsel %vm78, %v308, 0.0
  %v396 = vadd.f32 %v394, %v395
  %v397 = vsel %vm78, %v309, 0.0
  %v398 = vadd.f32 %v396, %v397
  %v399 = vsel %vm78, %v310, 0.0
  %v400 = vadd.f32 %v398, %v399
  %v401 = vsel %vm78, %v311, 0.0
  %v402 = vadd.f32 %v400, %v401
  %v403 = vsel %vm78, %v312, 0.0
  %v404 = vadd.f32 %v402, %v403
  %v405 = vsel %vm78, %v313, 0.0
  %v406 = vadd.f32 %v404, %v405
  %v407 = vsel %vm78, %v314, 0.0
  %v408 = vadd.f32 %v406, %v407
  %v409 = vsel %vm78, %v315, 0.0
  %v410 = vadd.f32 %v408, %v409
  %v411 = vsel %vm78, %v316, 0.0
  %v412 = vadd.f32 %v410, %v411
  %v413 = vsel %vm78, %v317, 0.0
  %v414 = vadd.f32 %v412, %v413
  %v415 = vsel %vm78, %v318, 0.0
  %v416 = vadd.f32 %v414, %v415
  %v417 = vsel %vm78, %v319, 0.0
  %v418 = vadd.f32 %v416, %v417
  %v419 = vsel %vm78, %v320, 0.0
  %v420 = vadd.f32 %v418, %v419
  %v421 = vsel %vm78, %v321, 0.0
  %v422 = vadd.f32 %v420, %v421
  %v423 = vsel %vm78, %v322, 0.0
  %v424 = vadd.f32 %v422, %v423
  %v425 = vsel %vm78, %v323, 0.0
  %v426 = vadd.f32 %v424, %v425
  %v427 = vsel %vm78, %v324, 0.0
  %v428 = vadd.f32 %v426, %v427
  %v429 = vsel %vm78, %v325, 0.0
  %v430 = vadd.f32 %v428, %v429
  %v431 = vsel %vm78, %v326, 0.0
  %v432 = vadd.f32 %v430, %v431
  %v433 = vsel %vm78, %v327, 0.0
  %v434 = vadd.f32 %v432, %v433
  %v435 = vsel %vm78, %v328, 0.0
  %v436 = vadd.f32 %v434, %v435
  %v437 = vsel %vm78, %v329, 0.0
  %v438 = vadd.f32 %v436, %v437
  %v439 = vsel %vm78, %v330, 0.0
  %v440 = vadd.f32 %v438, %v439
  %v441 = vsel %vm78, %v331, 0.0
  %v442 = vadd.f32 %v440, %v441
  %v443 = vsel %vm78, %v332, 0.0
  %v444 = vadd.f32 %v442, %v443
  %v445 = vsel %vm78, %v333, 0.0
  %v446 = vadd.f32 %v444, %v445
  %v447 = vsel %vm78, %v334, 0.0
  %v448 = vadd.f32 %v446, %v447
  %v449 = vsel %vm78, %v335, 0.0
  %v450 = vadd.f32 %v448, %v449
  %v451 = vsel %vm78, %v336, 0.0
  %v452 = vadd.f32 %v450, %v451
  %v453 = vsel %vm78, %v337, 0.0
  %v454 = vadd.f32 %v452, %v453
  %v455 = vsel %vm78, %v338, 0.0
  %v456 = vadd.f32 %v454, %v455
  %v457 = vsel %vm78, %v339, 0.0
  %v458 = vadd.f32 %v456, %v457
  %v459 = vsel %vm78, %v340, 0.0
  %v460 = vadd.f32 %v458, %v459
  %v461 = vsel %vm78, %v341, 0.0
  %v462 = vadd.f32 %v460, %v461
  %v463 = vsel %vm78, %v342, 0.0
  %v464 = vadd.f32 %v462, %v463
  %v465 = vsel %vm78, %v343, 0.0
  %v466 = vadd.f32 %v464, %v465
  %v467 = vsel %vm78, %v344, 0.0
  %v468 = vadd.f32 %v466, %v467
  %v469 = vsel %vm78, %v345, 0.0
  %v470 = vadd.f32 %v468, %v469
  %v471 = vsel %vm78, %v346, 0.0
  %v472 = vadd.f32 %v470, %v471
  %v473 = vsel %vm78, %v347, 0.0
  %v474 = vadd.f32 %v472, %v473
  %v475 = vrot.slane %v474, 4
  %v476 = vadd.f32 %v474, %v475
  %v477 = vrot.slane %v476, 2
  %v478 = vadd.f32 %v476, %v477
  %v479 = vrot.slane %v478, 1
  %v480 = vadd.f32 %v478, %v479
  %v481 = vmul.f32 %v480, %v218
  %v482 = vadd.f32 %v481, 1e-05
  %v483 = vrsqrt.pop %v482
  %v484 = vmul.f32 %v483, %v482
  %v485 = vmul.f32 %v484, %v483
  %v486 = vmul.f32 0.5, %v485
  %v487 = vsub.f32 1.5, %v486
  %v488 = vmul.f32 %v483, %v487
  %vm489 = vweird.f32 %v482
  %vm490 = vweird.f32 %v483
  %vm491 = vmor %vm489, %vm490
  %v492 = vsel %vm491, %v483, %v488
  %v493 = vmul.f32 %v220, %v492
  %v494 = vmul.f32 %v221, %v492
  %v495 = vmul.f32 %v222, %v492
  %v496 = vmul.f32 %v223, %v492
  %v497 = vmul.f32 %v224, %v492
  %v498 = vmul.f32 %v225, %v492
  %v499 = vmul.f32 %v226, %v492
  %v500 = vmul.f32 %v227, %v492
  %v501 = vmul.f32 %v228, %v492
  %v502 = vmul.f32 %v229, %v492
  %v503 = vmul.f32 %v230, %v492
  %v504 = vmul.f32 %v231, %v492
  %v505 = vmul.f32 %v232, %v492
  %v506 = vmul.f32 %v233, %v492
  %v507 = vmul.f32 %v234, %v492
  %v508 = vmul.f32 %v235, %v492
  %v509 = vmul.f32 %v236, %v492
  %v510 = vmul.f32 %v237, %v492
  %v511 = vmul.f32 %v238, %v492
  %v512 = vmul.f32 %v239, %v492
  %v513 = vmul.f32 %v240, %v492
  %v514 = vmul.f32 %v241, %v492
  %v515 = vmul.f32 %v242, %v492
  %v516 = vmul.f32 %v243, %v492
  %v517 = vmul.f32 %v244, %v492
  %v518 = vmul.f32 %v245, %v492
  %v519 = vmul.f32 %v246, %v492
  %v520 = vmul.f32 %v247, %v492
  %v521 = vmul.f32 %v248, %v492
  %v522 = vmul.f32 %v249, %v492
  %v523 = vmul.f32 %v250, %v492
  %v524 = vmul.f32 %v251, %v492
  %v525 = vmul.f32 %v252, %v492
  %v526 = vmul.f32 %v253, %v492
  %v527 = vmul.f32 %v254, %v492
  %v528 = vmul.f32 %v255, %v492
  %v529 = vmul.f32 %v256, %v492
  %v530 = vmul.f32 %v257, %v492
  %v531 = vmul.f32 %v258, %v492
  %v532 = vmul.f32 %v259, %v492
  %v533 = vmul.f32 %v260, %v492
  %v534 = vmul.f32 %v261, %v492
  %v535 = vmul.f32 %v262, %v492
  %v536 = vmul.f32 %v263, %v492
  %v537 = vmul.f32 %v264, %v492
  %v538 = vmul.f32 %v265, %v492
  %v539 = vmul.f32 %v266, %v492
  %v540 = vmul.f32 %v267, %v492
  %v541 = vmul.f32 %v268, %v492
  %v542 = vmul.f32 %v269, %v492
  %v543 = vmul.f32 %v270, %v492
  %v544 = vmul.f32 %v271, %v492
  %v545 = vmul.f32 %v272, %v492
  %v546 = vmul.f32 %v273, %v492
  %v547 = vmul.f32 %v274, %v492
  %v548 = vmul.f32 %v275, %v492
  %v549 = vmul.f32 %v276, %v492
  %v550 = vmul.f32 %v277, %v492
  %v551 = vmul.f32 %v278, %v492
  %v552 = vmul.f32 %v279, %v492
  %v553 = vmul.f32 %v280, %v492
  %v554 = vmul.f32 %v281, %v492
  %v555 = vmul.f32 %v282, %v492
  %v556 = vmul.f32 %v283, %v492
  %v557 = vld [vmem:[%s1] sm:$0x1]
  %v559 = vperm.slane %v557, 0
  %v561 = vmul.f32 %v493, %v559
  %v562 = vmul.f32 %v494, %v559
  %v563 = vmul.f32 %v495, %v559
  %v564 = vmul.f32 %v496, %v559
  %v565 = vmul.f32 %v497, %v559
  %v566 = vmul.f32 %v498, %v559
  %v567 = vmul.f32 %v499, %v559
  %v568 = vmul.f32 %v500, %v559
  %v569 = vmul.f32 %v501, %v559
  %v570 = vmul.f32 %v502, %v559
  %v571 = vmul.f32 %v503, %v559
  %v572 = vmul.f32 %v504, %v559
  %v573 = vmul.f32 %v505, %v559
  %v574 = vmul.f32 %v506, %v559
  %v575 = vmul.f32 %v507, %v559
  %v576 = vmul.f32 %v508, %v559
  %v577 = vmul.f32 %v509, %v559
  %v578 = vmul.f32 %v510, %v559
  %v579 = vmul.f32 %v511, %v559
  %v580 = vmul.f32 %v512, %v559
  %v581 = vmul.f32 %v513, %v559
  %v582 = vmul.f32 %v514, %v559
  %v583 = vmul.f32 %v515, %v559
  %v584 = vmul.f32 %v516, %v559
  %v585 = vmul.f32 %v517, %v559
  %v586 = vmul.f32 %v518, %v559
  %v587 = vmul.f32 %v519, %v559
  %v588 = vmul.f32 %v520, %v559
  %v589 = vmul.f32 %v521, %v559
  %v590 = vmul.f32 %v522, %v559
  %v591 = vmul.f32 %v523, %v559
  %v592 = vmul.f32 %v524, %v559
  %v593 = vmul.f32 %v525, %v559
  %v594 = vmul.f32 %v526, %v559
  %v595 = vmul.f32 %v527, %v559
  %v596 = vmul.f32 %v528, %v559
  %v597 = vmul.f32 %v529, %v559
  %v598 = vmul.f32 %v530, %v559
  %v599 = vmul.f32 %v531, %v559
  %v600 = vmul.f32 %v532, %v559
  %v601 = vmul.f32 %v533, %v559
  %v602 = vmul.f32 %v534, %v559
  %v603 = vmul.f32 %v535, %v559
  %v604 = vmul.f32 %v536, %v559
  %v605 = vmul.f32 %v537, %v559
  %v606 = vmul.f32 %v538, %v559
  %v607 = vmul.f32 %v539, %v559
  %v608 = vmul.f32 %v540, %v559
  %v609 = vmul.f32 %v541, %v559
  %v610 = vmul.f32 %v542, %v559
  %v611 = vmul.f32 %v543, %v559
  %v612 = vmul.f32 %v544, %v559
  %v613 = vmul.f32 %v545, %v559
  %v614 = vmul.f32 %v546, %v559
  %v615 = vmul.f32 %v547, %v559
  %v616 = vmul.f32 %v548, %v559
  %v617 = vmul.f32 %v549, %v559
  %v618 = vmul.f32 %v550, %v559
  %v619 = vmul.f32 %v551, %v559
  %v620 = vmul.f32 %v552, %v559
  %v621 = vmul.f32 %v553, %v559
  %v622 = vmul.f32 %v554, %v559
  %v623 = vmul.f32 %v555, %v559
  %v624 = vmul.f32 %v556, %v559
  %v625 = vld [vmem:[%s2] sm:$0x1]
  %v627 = vperm.slane %v625, 0
  %v629 = vadd.f32 %v561, %v627
  %v630 = vadd.f32 %v562, %v627
  %v631 = vadd.f32 %v563, %v627
  %v632 = vadd.f32 %v564, %v627
  %v633 = vadd.f32 %v565, %v627
  %v634 = vadd.f32 %v566, %v627
  %v635 = vadd.f32 %v567, %v627
  %v636 = vadd.f32 %v568, %v627
  %v637 = vadd.f32 %v569, %v627
  %v638 = vadd.f32 %v570, %v627
  %v639 = vadd.f32 %v571, %v627
  %v640 = vadd.f32 %v572, %v627
  %v641 = vadd.f32 %v573, %v627
  %v642 = vadd.f32 %v574, %v627
  %v643 = vadd.f32 %v575, %v627
  %v644 = vadd.f32 %v576, %v627
  %v645 = vadd.f32 %v577, %v627
  %v646 = vadd.f32 %v578, %v627
  %v647 = vadd.f32 %v579, %v627
  %v648 = vadd.f32 %v580, %v627
  %v649 = vadd.f32 %v581, %v627
  %v650 = vadd.f32 %v582, %v627
  %v651 = vadd.f32 %v583, %v627
  %v652 = vadd.f32 %v584, %v627
  %v653 = vadd.f32 %v585, %v627
  %v654 = vadd.f32 %v586, %v627
  %v655 = vadd.f32 %v587, %v627
  %v656 = vadd.f32 %v588, %v627
  %v657 = vadd.f32 %v589, %v627
  %v658 = vadd.f32 %v590, %v627
  %v659 = vadd.f32 %v591, %v627
  %v660 = vadd.f32 %v592, %v627
  %v661 = vadd.f32 %v593, %v627
  %v662 = vadd.f32 %v594, %v627
  %v663 = vadd.f32 %v595, %v627
  %v664 = vadd.f32 %v596, %v627
  %v665 = vadd.f32 %v597, %v627
  %v666 = vadd.f32 %v598, %v627
  %v667 = vadd.f32 %v599, %v627
  %v668 = vadd.f32 %v600, %v627
  %v669 = vadd.f32 %v601, %v627
  %v670 = vadd.f32 %v602, %v627
  %v671 = vadd.f32 %v603, %v627
  %v672 = vadd.f32 %v604, %v627
  %v673 = vadd.f32 %v605, %v627
  %v674 = vadd.f32 %v606, %v627
  %v675 = vadd.f32 %v607, %v627
  %v676 = vadd.f32 %v608, %v627
  %v677 = vadd.f32 %v609, %v627
  %v678 = vadd.f32 %v610, %v627
  %v679 = vadd.f32 %v611, %v627
  %v680 = vadd.f32 %v612, %v627
  %v681 = vadd.f32 %v613, %v627
  %v682 = vadd.f32 %v614, %v627
  %v683 = vadd.f32 %v615, %v627
  %v684 = vadd.f32 %v616, %v627
  %v685 = vadd.f32 %v617, %v627
  %v686 = vadd.f32 %v618, %v627
  %v687 = vadd.f32 %v619, %v627
  %v688 = vadd.f32 %v620, %v627
  %v689 = vadd.f32 %v621, %v627
  %v690 = vadd.f32 %v622, %v627
  %v691 = vadd.f32 %v623, %v627
  %v692 = vadd.f32 %v624, %v627
  %693 = vst.msk [vmem:[%s3] sm:$0xff] %vm78, %v629
  %694 = vst.msk [vmem:[%s3 + $0x8] sm:$0xff] %vm78, %v630
  %695 = vst.msk [vmem:[%s3 + $0x10] sm:$0xff] %vm78, %v631
  %696 = vst.msk [vmem:[%s3 + $0x18] sm:$0xff] %vm78, %v632
  %697 = vst.msk [vmem:[%s3 + $0x20] sm:$0xff] %vm78, %v633
  %698 = vst.msk [vmem:[%s3 + $0x28] sm:$0xff] %vm78, %v634
  %699 = vst.msk [vmem:[%s3 + $0x30] sm:$0xff] %vm78, %v635
  %700 = vst.msk [vmem:[%s3 + $0x38] sm:$0xff] %vm78, %v636
  %701 = vst.msk [vmem:[%s3 + $0x40] sm:$0xff] %vm78, %v637
  %702 = vst.msk [vmem:[%s3 + $0x48] sm:$0xff] %vm78, %v638
  %703 = vst.msk [vmem:[%s3 + $0x50] sm:$0xff] %vm78, %v639
  %704 = vst.msk [vmem:[%s3 + $0x58] sm:$0xff] %vm78, %v640
  %705 = vst.msk [vmem:[%s3 + $0x60] sm:$0xff] %vm78, %v641
  %706 = vst.msk [vmem:[%s3 + $0x68] sm:$0xff] %vm78, %v642
  %707 = vst.msk [vmem:[%s3 + $0x70] sm:$0xff] %vm78, %v643
  %708 = vst.msk [vmem:[%s3 + $0x78] sm:$0xff] %vm78, %v644
  %709 = vst.msk [vmem:[%s3 + $0x80] sm:$0xff] %vm78, %v645
  %710 = vst.msk [vmem:[%s3 + $0x88] sm:$0xff] %vm78, %v646
  %711 = vst.msk [vmem:[%s3 + $0x90] sm:$0xff] %vm78, %v647
  %712 = vst.msk [vmem:[%s3 + $0x98] sm:$0xff] %vm78, %v648
  %713 = vst.msk [vmem:[%s3 + $0xa0] sm:$0xff] %vm78, %v649
  %714 = vst.msk [vmem:[%s3 + $0xa8] sm:$0xff] %vm78, %v650
  %715 = vst.msk [vmem:[%s3 + $0xb0] sm:$0xff] %vm78, %v651
  %716 = vst.msk [vmem:[%s3 + $0xb8] sm:$0xff] %vm78, %v652
  %717 = vst.msk [vmem:[%s3 + $0xc0] sm:$0xff] %vm78, %v653
  %718 = vst.msk [vmem:[%s3 + $0xc8] sm:$0xff] %vm78, %v654
  %719 = vst.msk [vmem:[%s3 + $0xd0] sm:$0xff] %vm78, %v655
  %720 = vst.msk [vmem:[%s3 + $0xd8] sm:$0xff] %vm78, %v656
  %721 = vst.msk [vmem:[%s3 + $0xe0] sm:$0xff] %vm78, %v657
  %722 = vst.msk [vmem:[%s3 + $0xe8] sm:$0xff] %vm78, %v658
  %723 = vst.msk [vmem:[%s3 + $0xf0] sm:$0xff] %vm78, %v659
  %724 = vst.msk [vmem:[%s3 + $0xf8] sm:$0xff] %vm78, %v660
  %725 = vst.msk [vmem:[%s3 + $0x100] sm:$0xff] %vm78, %v661
  %726 = vst.msk [vmem:[%s3 + $0x108] sm:$0xff] %vm78, %v662
  %727 = vst.msk [vmem:[%s3 + $0x110] sm:$0xff] %vm78, %v663
  %728 = vst.msk [vmem:[%s3 + $0x118] sm:$0xff] %vm78, %v664
  %729 = vst.msk [vmem:[%s3 + $0x120] sm:$0xff] %vm78, %v665
  %730 = vst.msk [vmem:[%s3 + $0x128] sm:$0xff] %vm78, %v666
  %731 = vst.msk [vmem:[%s3 + $0x130] sm:$0xff] %vm78, %v667
  %732 = vst.msk [vmem:[%s3 + $0x138] sm:$0xff] %vm78, %v668
  %733 = vst.msk [vmem:[%s3 + $0x140] sm:$0xff] %vm78, %v669
  %734 = vst.msk [vmem:[%s3 + $0x148] sm:$0xff] %vm78, %v670
  %735 = vst.msk [vmem:[%s3 + $0x150] sm:$0xff] %vm78, %v671
  %736 = vst.msk [vmem:[%s3 + $0x158] sm:$0xff] %vm78, %v672
  %737 = vst.msk [vmem:[%s3 + $0x160] sm:$0xff] %vm78, %v673
  %738 = vst.msk [vmem:[%s3 + $0x168] sm:$0xff] %vm78, %v674
  %739 = vst.msk [vmem:[%s3 + $0x170] sm:$0xff] %vm78, %v675
  %740 = vst.msk [vmem:[%s3 + $0x178] sm:$0xff] %vm78, %v676
  %741 = vst.msk [vmem:[%s3 + $0x180] sm:$0xff] %vm78, %v677
  %742 = vst.msk [vmem:[%s3 + $0x188] sm:$0xff] %vm78, %v678
  %743 = vst.msk [vmem:[%s3 + $0x190] sm:$0xff] %vm78, %v679
  %744 = vst.msk [vmem:[%s3 + $0x198] sm:$0xff] %vm78, %v680
  %745 = vst.msk [vmem:[%s3 + $0x1a0] sm:$0xff] %vm78, %v681
  %746 = vst.msk [vmem:[%s3 + $0x1a8] sm:$0xff] %vm78, %v682
  %747 = vst.msk [vmem:[%s3 + $0x1b0] sm:$0xff] %vm78, %v683
  %748 = vst.msk [vmem:[%s3 + $0x1b8] sm:$0xff] %vm78, %v684
  %749 = vst.msk [vmem:[%s3 + $0x1c0] sm:$0xff] %vm78, %v685
  %750 = vst.msk [vmem:[%s3 + $0x1c8] sm:$0xff] %vm78, %v686
  %751 = vst.msk [vmem:[%s3 + $0x1d0] sm:$0xff] %vm78, %v687
  %752 = vst.msk [vmem:[%s3 + $0x1d8] sm:$0xff] %vm78, %v688
  %753 = vst.msk [vmem:[%s3 + $0x1e0] sm:$0xff] %vm78, %v689
  %754 = vst.msk [vmem:[%s3 + $0x1e8] sm:$0xff] %vm78, %v690
  %755 = vst.msk [vmem:[%s3 + $0x1f0] sm:$0xff] %vm78, %v691
  %756 = vst.msk [vmem:[%s3 + $0x1f8] sm:$0xff] %vm78, %v692
  // Predicated region
  $region14: #{stgcn_forward.21} parent=0 // pred_check
    _
  $region15: #{stgcn_forward.21} parent=0 // pred_check_branch
    %758 = sbr.rel (0) target = $region17
  $region16: #{stgcn_forward.21} parent=0 // pred_region
    _
  $region17: #{stgcn_forward.21} parent=0 // pred_fallthru
    _
  // Predicated region
  $region18: #{stgcn_forward.21} parent=0 // pred_check
    _
  $region19: #{stgcn_forward.21} parent=0 // pred_check_branch
    %760 = sbr.rel (0) target = $region21
  $region20: #{stgcn_forward.21} parent=0 // pred_region
    _
  $region21: #{stgcn_forward.21} parent=0 // pred_fallthru
    _

// kernel: stgcn_forward.23
$region0: #{stgcn_forward.23}
  #allocation0 [shape = 'u32[]', space=smem, size = 0x4, offset = 0x4, fixed_abs, tag = 'smem constant byte address 0x4 - core index']
  #allocation1 [shape = 'u32[72,128]{1,0:T(1,128)}', space=vmem, size = 0x9000, scoped, tag = 'internal scratch']
  %s0 = inlined_call_operand.vmem [shape: f32[2,32,16], index: 0, kind: input, shape index: {}]
  %s1 = inlined_call_operand.vmem [shape: f32[2,32], index: 1, kind: input, shape index: {}]
  %s2 = inlined_call_operand.vmem [shape: f32[2,1], index: 2, kind: input, shape index: {}]
  %s3 = inlined_call_operand.hbm [shape: f32[2,2,16], index: 3, kind: output, shape index: {}]
  %s4 = sld [smem:[#allocation0]]
  $region45: #{stgcn_forward.23} parent=0
    _
  %s6 = ssub.s32 1, %s4
  %s7 = scalar_select 0, %s6, %s4
  $region1: #{stgcn_forward.23} parent=0
    #allocation2 [shape = 'u8[2048]{0}', space=vmem, size = 0x800, scoped, tag = 'output window, operand 0']
    #allocation3 [shape = 's32[2]{0}', space=sflag, size = 0x8, scoped, tag = 'scoped memory for stgcn_forward.23']
    %8 = vsyncpa [#allocation3], 0
    %s9 = scalar_lea.sflag [#allocation3], 1
    %10 = vsyncpa %s9, 0
    loop: start=0, step=1, limit=4
    $region2: #{stgcn_forward.23} parent=1 // loop_pre_header
      _
    $region3: #{stgcn_forward.23} parent=1 // loop_header
      %s12 = sphi 0, %s16
      %p13 = scmp.ge.s32.totalorder %s12, 4
      %s22 = sphi 0, %s24
      %s25 = sphi 0, %s22
      %s26 = sphi 0, %s25
      %s42 = sphi 0, %s26
      %s46 = sphi 0, %s46
      %s48 = sphi 0, %s46
      %s49 = sphi 0, %s48
      %s63 = sphi 0, %s49
      %s67 = sphi 0, %s67
      %s69 = sphi 0, %s67
      %s70 = sphi 0, %s69
      %s84 = sphi 0, %s70
      %s90 = sphi 0, %s92
      %s93 = sphi 0, %s90
      %s94 = sphi 0, %s93
      %s110 = sphi 0, %s94
    $region4: #{stgcn_forward.23} parent=1 // loop_header_branch
      %15 = sbr.rel (%p13) target = $region8
    $region5: #{stgcn_forward.23} parent=1 // loop_body
      %s17 = ssub.s32 %s12, 1
      %s18 = ssub.s32 %s12, 2
      %s19 = sadd.s32 %s12, 1
      %s20 = ssub.s32 %s12, %s19
      %p21 = scmp.eq.s32.totalorder %s20, 0
      %s23 = sadd.s32 %s22, 1
      %s24 = scalar_select %p21, %s22, %s23
      %p27 = pneg %p21
      %p28 = scmp.eq.s32.totalorder %s12, 1
      %p29 = por %p27, %p28
      %p30 = scmp.ne.s32.totalorder %s22, %s25
      %p31 = scmp.eq.s32.totalorder %s12, 0
      %p32 = por %p30, %p31
      %p33 = scmp.ne.s32.totalorder %s22, %s25
      %p34 = scmp.eq.s32.totalorder %s17, 1
      %p35 = por %p33, %p34
      %p36 = scmp.ne.s32.totalorder %s25, %s26
      %p37 = scmp.eq.s32.totalorder %s17, 0
      %p38 = por %p36, %p37
      %p39 = scmp.ne.s32.totalorder %s25, %s26
      %p40 = scmp.eq.s32.totalorder %s18, 1
      %p41 = por %p39, %p40
      %p43 = scmp.ne.s32.totalorder %s26, %s42
      %p44 = scmp.eq.s32.totalorder %s18, 0
      %p45 = por %p43, %p44
      %s47 = sadd.s32 %s46, 1
      %p50 = scmp.eq.s32.totalorder %s12, 1
      %p51 = scmp.ne.s32.totalorder %s46, %s48
      %p52 = scmp.eq.s32.totalorder %s12, 0
      %p53 = por %p51, %p52
      %p54 = scmp.ne.s32.totalorder %s46, %s48
      %p55 = scmp.eq.s32.totalorder %s17, 1
      %p56 = por %p54, %p55
      %p57 = scmp.ne.s32.totalorder %s48, %s49
      %p58 = scmp.eq.s32.totalorder %s17, 0
      %p59 = por %p57, %p58
      %p60 = scmp.ne.s32.totalorder %s48, %s49
      %p61 = scmp.eq.s32.totalorder %s18, 1
      %p62 = por %p60, %p61
      %p64 = scmp.ne.s32.totalorder %s49, %s63
      %p65 = scmp.eq.s32.totalorder %s18, 0
      %p66 = por %p64, %p65
      %s68 = sadd.s32 %s67, 1
      %p71 = scmp.eq.s32.totalorder %s12, 1
      %p72 = scmp.ne.s32.totalorder %s67, %s69
      %p73 = scmp.eq.s32.totalorder %s12, 0
      %p74 = por %p72, %p73
      %p75 = scmp.ne.s32.totalorder %s67, %s69
      %p76 = scmp.eq.s32.totalorder %s17, 1
      %p77 = por %p75, %p76
      %p78 = scmp.ne.s32.totalorder %s69, %s70
      %p79 = scmp.eq.s32.totalorder %s17, 0
      %p80 = por %p78, %p79
      %p81 = scmp.ne.s32.totalorder %s69, %s70
      %p82 = scmp.eq.s32.totalorder %s18, 1
      %p83 = por %p81, %p82
      %p85 = scmp.ne.s32.totalorder %s70, %s84
      %p86 = scmp.eq.s32.totalorder %s18, 0
      %p87 = por %p85, %p86
      %s88 = ssub.s32 %s12, %s19
      %p89 = scmp.eq.s32.totalorder %s88, 0
      %s91 = sadd.s32 %s90, 1
      %s92 = scalar_select %p89, %s90, %s91
      %p95 = pneg %p89
      %p96 = scmp.eq.s32.totalorder %s12, 1
      %p97 = por %p95, %p96
      %p98 = scmp.ne.s32.totalorder %s90, %s93
      %p99 = scmp.eq.s32.totalorder %s12, 0
      %p100 = por %p98, %p99
      %p101 = scmp.ne.s32.totalorder %s90, %s93
      %p102 = scmp.eq.s32.totalorder %s17, 1
      %p103 = por %p101, %p102
      %p104 = scmp.ne.s32.totalorder %s93, %s94
      %p105 = scmp.eq.s32.totalorder %s17, 0
      %p106 = por %p104, %p105
      %p107 = scmp.ne.s32.totalorder %s93, %s94
      %p108 = scmp.eq.s32.totalorder %s18, 1
      %p109 = por %p107, %p108
      %p111 = scmp.ne.s32.totalorder %s94, %s110
      %p112 = scmp.eq.s32.totalorder %s18, 0
      %p113 = por %p111, %p112
      %p114 = scmp.le.s32.totalorder 1, %s12
      %p115 = scmp.lt.s32.totalorder %s12, 3
      %p116 = pnand %p114, %p115
      %p117 = pneg %p116
      // Predicated region
      $region9: #{stgcn_forward.23} parent=5 // pred_check
        _
      $region10: #{stgcn_forward.23} parent=5 // pred_check_branch
        %119 = sbr.rel (%p116) target = $region12
      $region11: #{stgcn_forward.23} parent=5 // pred_region
        %s120 = ssub.s32 %s12, 1
        // Predicated region
        $region13: #{stgcn_forward.23} parent=11 // pred_check
          %p121 = pneg %p59
        $region14: #{stgcn_forward.23} parent=11 // pred_check_branch
          %123 = sbr.rel (%p121) target = $region16
        $region15: #{stgcn_forward.23} parent=11 // pred_region
          _
        $region16: #{stgcn_forward.23} parent=11 // pred_fallthru
          _
        // Predicated region
        $region17: #{stgcn_forward.23} parent=11 // pred_check
          %p124 = pneg %p80
        $region18: #{stgcn_forward.23} parent=11 // pred_check_branch
          %126 = sbr.rel (%p124) target = $region20
        $region19: #{stgcn_forward.23} parent=11 // pred_region
          _
        $region20: #{stgcn_forward.23} parent=11 // pred_fallthru
          _
      $region12: #{stgcn_forward.23} parent=5 // pred_fallthru
        _
      %p127 = scmp.lt.s32.totalorder %s12, 2
      // Predicated region
      $region21: #{stgcn_forward.23} parent=5 // pred_check
        %p128 = pneg %p127
      $region22: #{stgcn_forward.23} parent=5 // pred_check_branch
        %130 = sbr.rel (%p128) target = $region24
      $region23: #{stgcn_forward.23} parent=5 // pred_region
        // Predicated region
        $region25: #{stgcn_forward.23} parent=23 // pred_check
          %p131 = pneg %p32
        $region26: #{stgcn_forward.23} parent=23 // pred_check_branch
          %133 = sbr.rel (%p131) target = $region28
        $region27: #{stgcn_forward.23} parent=23 // pred_region
          %p134 = scmp.lt.s32.totalorder %s12, 1
          %s135 = scalar_select %p134, %s12, 1
          %s136 = smul.addr %s135, 4
          %s137 = smul.addr %s136, 8
          %s138 = scalar_lea.vmem %s0, %s137
        $region28: #{stgcn_forward.23} parent=23 // pred_fallthru
          _
      $region24: #{stgcn_forward.23} parent=5 // pred_fallthru
        _
      %p139 = scmp.le.s32.totalorder 1, %s12
      %p140 = scmp.lt.s32.totalorder %s12, 3
      %p141 = pnand %p139, %p140
      %p142 = pneg %p141
      // Predicated region
      $region29: #{stgcn_forward.23} parent=5 // pred_check
        _
      $region30: #{stgcn_forward.23} parent=5 // pred_check_branch
        %144 = sbr.rel (%p141) target = $region32
      $region31: #{stgcn_forward.23} parent=5 // pred_region
        %s145 = ssub.s32 %s12, 1
        %p146 = scmp.lt.s32.totalorder %s17, 1
        %s147 = scalar_select %p146, %s17, 1
        %s148 = smul.addr %s147, 4
        %s149 = smul.addr %s148, 8
        %s150 = scalar_lea.vmem %s0, %s149
        %p151 = pneg %p38
        %p152 = pneg %p35
        %p153 = pneg %p59
        %p154 = pneg %p56
        %p155 = pneg %p80
        %p156 = pneg %p77
        %p157 = pneg %p106
        %p158 = pneg %p103
        %s159 = sand.u32 %s93, 1
        %s160 = scalar_lea.sflag [#allocation3], %s159
        %s161 = sand.u32 %s93, 1
        %s162 = smul.addr %s161, 2
        %s163 = scalar_lea.vmem [#allocation2], %s162
        %p164 = scmp.lt.s32.totalorder %s17, 1
        %s165 = scalar_select %p164, %s17, 1
        %s166 = smul.addr %s165, 4
        %s167 = smul.addr %s166, 8
        %s168 = scalar_lea.vmem %s0, %s167
        %v169 = vld [vmem:[%s1] sm:$0x3]
        %v170 = vld [vmem:[%s168] sm:$0xff]
        %v171 = vld [vmem:[%s168 + $0x8] sm:$0xff]
        %v172 = vld [vmem:[%s168 + $0x10] sm:$0xff]
        %v173 = vld [vmem:[%s168 + $0x18] sm:$0xff]
        %v174 = vld [vmem:[%s2] sm:$0x3]
        %176 = vset.pattern.permute.xlu0 0
        %177 = vperm.xlu0 %176, %v174
        %v178 = vpop.permute.xlu0 %177
        %vm180 = vcmask 261120
        %v182 = vsel %vm180, %v169, 0
        %184 = vmatpush.msra.mxu0 0.0
        %185 = vmatpush.msra.mxu0 0.0
        %186 = vmatpush.msra.mxu0 0.0
        %187 = vmatpush.msra.mxu0 0.0
        %188 = vmatpush.msra.mxu0 0.0
        %189 = vmatpush.msra.mxu0 0.0
        %190 = vmatpush.msra.mxu0 0.0
        %191 = vmatpush.msra.mxu0 0.0
        %192 = vmatpush.msra.mxu0 0.0
        %193 = vmatpush.msra.mxu0 0.0
        %194 = vmatpush.msra.mxu0 0.0
        %195 = vmatpush.msra.mxu0 0.0
        %196 = vmatpush.msra.mxu0 %v173
        %197 = vmatpush.msra.mxu0 %v172
        %198 = vmatpush.msra.mxu0 %v171
        %199 = vmatpush.msra.mxu0 %v170
        %200 = vmatmul.f32.gmra.mxu0 %v182
        %v201 = vpop.f32.mrf.mxu0
        %v202 = vadd.f32 %v178, %v201
        %203 = vdwg.mxu0
        %vm204 = vcmask 123904
        %205 = vst.msk [vmem:[%s163] sm:$0x3] %vm204, %v202
        %s206 = sand.u32 %s93, 1
        %s207 = scalar_lea.sflag [#allocation3], %s206
        %s208 = sand.u32 %s93, 1
        %s209 = smul.addr %s208, 2
        %s210 = scalar_lea.vmem [#allocation2], %s209
        // Predicated region
        $region33: #{stgcn_forward.23} parent=31 // pred_check
          %p211 = pneg %p103
        $region34: #{stgcn_forward.23} parent=31 // pred_check_branch
          %213 = sbr.rel (%p211) target = $region36
        $region35: #{stgcn_forward.23} parent=31 // pred_region
          %215 = vsyncadd %s207, 0
          %s216 = smul.addr %s17, 2
          %s217 = scalar_lea.hbm %s3, %s216
          %s219 = sshll.u32 %s210, 4
          %s220 = int_to_ptr.vmem [resolvable:$true] %s219
          %s221 = sshll.u32 %s217, 4
          %s222 = int_to_ptr.hbm [resolvable:$true] %s221
          %224 = dma.vmem_to_hbm [thread:$0]  %s220, 32, %s222, %s207
        $region36: #{stgcn_forward.23} parent=31 // pred_fallthru
          _
      $region32: #{stgcn_forward.23} parent=5 // pred_fallthru
        _
      %p225 = scmp.le.s32.totalorder 2, %s12
      // Predicated region
      $region37: #{stgcn_forward.23} parent=5 // pred_check
        %p226 = pneg %p225
      $region38: #{stgcn_forward.23} parent=5 // pred_check_branch
        %228 = sbr.rel (%p226) target = $region40
      $region39: #{stgcn_forward.23} parent=5 // pred_region
        %s229 = ssub.s32 %s12, 2
        // Predicated region
        $region41: #{stgcn_forward.23} parent=39 // pred_check
          %p230 = pneg %p109
        $region42: #{stgcn_forward.23} parent=39 // pred_check_branch
          %232 = sbr.rel (%p230) target = $region44
        $region43: #{stgcn_forward.23} parent=39 // pred_region
          %s233 = sand.u32 %s94, 1
          %s234 = scalar_lea.sflag [#allocation3], %s233
          %s235 = sand.u32 %s94, 1
          %s236 = smul.addr %s235, 2
          %s237 = scalar_lea.vmem [#allocation2], %s236
          %239 = dma.done %s234, 32
        $region44: #{stgcn_forward.23} parent=39 // pred_fallthru
          _
      $region40: #{stgcn_forward.23} parent=5 // pred_fallthru
        _
    $region6: #{stgcn_forward.23} parent=1 // loop_footer
      %s16 = sadd.s32 1, %s12
    $region7: #{stgcn_forward.23} parent=1 // loop_footer_branch
      %11 = sbr.rel target = $region3
    $region8: #{stgcn_forward.23} parent=1 // loop_exit
      _
    %240 = vsyncpa [#allocation3], 1
    %s241 = scalar_lea.sflag [#allocation3], 1
    %242 = vsyncpa %s241, 1

</llo_original>
